<compile_context>
chip_gen: v7x
topology: tpu7x:2x2x1
jax: 0.10.0
libtpu: 0.0.40
codegen_flags: <defaults>
</compile_context>

<pallas_src>
import jax
import jax.numpy as jnp
from jax import lax
from jax.experimental import pallas as pl
from jax.experimental.pallas import tpu as pltpu


# ============================================================================
# Kernel 1: conv1 + relu + conv2 + relu + 2x2 max-pool + flatten (fused).
# Grid axis t = the 4 pooling taps; pooled output block stays VMEM-resident
# and is max-accumulated across t.
# ============================================================================
def _conv_pool_kernel(lhs_ref, w1_ref, b1_ref, w2_ref, b2_ref, o_ref):
    t = pl.program_id(0)

    # relu(conv1) evaluated directly in conv2's im2col layout: (R, 288),
    # columns ordered (kh, kw, cin).  One MXU matmul, stays in VMEM.
    p2 = jnp.maximum(
        jnp.dot(lhs_ref[...], w1_ref[...], preferred_element_type=jnp.float32)
        + b1_ref[...],
        0.0,
    )
    # relu(conv2) for this pooling tap: (R, 64), rows ordered (n, h, w).
    y2 = jnp.maximum(
        jnp.dot(p2, w2_ref[...], preferred_element_type=jnp.float32)
        + b2_ref[...],
        0.0,
    )

    @pl.when(t == 0)
    def _init():
        o_ref[...] = y2

    @pl.when(t > 0)
    def _accum():
        o_ref[...] = jnp.maximum(o_ref[...], y2)


def conv_pool_pallas(lhs5, w1big, b1big, w2mat, b2mat, n_batch):
    rows = n_batch * 144  # pooled spatial positions (n, 12, 12) per pool tap
    return pl.pallas_call(
        _conv_pool_kernel,
        out_shape=jax.ShapeDtypeStruct((rows, 64), jnp.float32),
        grid_spec=pltpu.PrefetchScalarGridSpec(
            num_scalar_prefetch=0,
            grid=(4,),  # the 4 max-pool taps; output block revisited each step
            in_specs=[
                pl.BlockSpec((rows, 25), lambda t: (t, 0)),
                pl.BlockSpec((25, 288), lambda t: (0, 0)),
                pl.BlockSpec((1, 288), lambda t: (0, 0)),
                pl.BlockSpec((288, 64), lambda t: (0, 0)),
                pl.BlockSpec((1, 64), lambda t: (0, 0)),
            ],
            out_specs=pl.BlockSpec((rows, 64), lambda t: (0, 0)),
        ),
        compiler_params=pltpu.CompilerParams(
            dimension_semantics=("arbitrary",),
            vmem_limit_bytes=32 * 1024 * 1024,
        ),
    )(lhs5, w1big, b1big, w2mat, b2mat)


# ============================================================================
# Kernel 2: fc1 (bf16 weights, f32 accum) + relu + fc2 + log_softmax (fused),
# K-tiled so the fc1 weight stream pipelines with compute.
# ============================================================================
def _mlp_head_kernel(x_ref, w1_ref, b1_ref, w2_ref, b2_ref, o_ref, acc_ref):
    k = pl.program_id(0)

    @pl.when(k == 0)
    def _init():
        acc_ref[...] = jnp.zeros_like(acc_ref)

    acc_ref[...] += jnp.dot(
        x_ref[...].astype(jnp.bfloat16), w1_ref[...],
        preferred_element_type=jnp.float32,
    )

    @pl.when(k == pl.num_programs(0) - 1)
    def _finalize():
        h = jnp.maximum(acc_ref[...] + b1_ref[...], 0.0)          # fc1 + relu
        logits = (
            jnp.dot(h, w2_ref[...], preferred_element_type=jnp.float32)
            + b2_ref[...]
        )                                                         # fc2
        z = logits - jnp.max(logits, axis=-1, keepdims=True)
        lse = jnp.log(jnp.sum(jnp.exp(z), axis=-1, keepdims=True))
        o_ref[...] = (z - lse).astype(o_ref.dtype)                # log_softmax


def mlp_head_pallas(flat, w1fc, b1fc, w2fc, b2fc, *, tk=4608):
    m, k_total = flat.shape
    d = w1fc.shape[1]
    c = w2fc.shape[1]
    if k_total % tk != 0:
        tk = k_total
    nk = k_total // tk
    return pl.pallas_call(
        _mlp_head_kernel,
        out_shape=jax.ShapeDtypeStruct((m, c), jnp.float32),
        grid_spec=pltpu.PrefetchScalarGridSpec(
            num_scalar_prefetch=0,
            grid=(nk,),
            in_specs=[
                pl.BlockSpec((m, tk), lambda kk: (0, kk)),
                pl.BlockSpec((tk, d), lambda kk: (kk, 0)),
                pl.BlockSpec((1, d), lambda kk: (0, 0)),
                pl.BlockSpec((d, c), lambda kk: (0, 0)),
                pl.BlockSpec((1, c), lambda kk: (0, 0)),
            ],
            out_specs=pl.BlockSpec((m, c), lambda kk: (0, 0)),
            scratch_shapes=[pltpu.VMEM((m, d), jnp.float32)],
        ),
        compiler_params=pltpu.CompilerParams(
            dimension_semantics=("arbitrary",),
            vmem_limit_bytes=32 * 1024 * 1024,
        ),
    )(flat, w1fc, b1fc, w2fc, b2fc)


# ============================================================================
# Host-side layout glue (tiny) + one-time weight preparation.
# ============================================================================
def _build_conv_lhs(x_nchw):
    """5x5 im2col of x over the 24x24 conv2-output grid, rows pre-ordered as
    (pool_tap, n, out_h, out_w).  Pure layout plumbing (~115 KB)."""
    x = x_nchw[:, 0]                                    # (N, 28, 28), Cin == 1
    n = x.shape[0]
    cols = [x[:, a:a + 24, b:b + 24] for a in range(5) for b in range(5)]
    win = jnp.stack(cols, axis=-1)                      # (N, 24, 24, 25)
    win = win.reshape(n, 12, 2, 12, 2, 25)              # (n, hh, hl, wh, wl, t)
    win = win.transpose(4, 2, 0, 1, 3, 5)               # (wl, hl, n, hh, wh, t)
    return win.reshape(4 * n * 144, 25)


def prepare_params(p):
    """One-time host-side weight massaging for the fused kernels."""
    # Fold conv1 into a (25, 288) Toeplitz weight: output column (kh, kw, c)
    # of  lhs5 @ w1big  equals conv1 channel c evaluated at spatial offset
    # (kh, kw), i.e. exactly conv2's im2col patch entry.
    w1 = jnp.transpose(p["conv1_w"][:, 0], (1, 2, 0))   # (3, 3, 32)=(di,dj,c)
    w1big = jnp.zeros((5, 5, 3, 3, 32), jnp.float32)
    for kh in range(3):
        for kw in range(3):
            w1big = w1big.at[kh:kh + 3, kw:kw + 3, kh, kw, :].set(w1)
    w1big = w1big.reshape(25, 288)
    b1big = jnp.tile(p["conv1_b"], 9).reshape(1, 288)

    w2mat = jnp.transpose(p["conv2_w"], (2, 3, 1, 0)).reshape(288, 64)
    b2mat = p["conv2_b"].reshape(1, 64)

    # fc1: permute the 9216 inputs from PyTorch's (c, h, w) flatten order to
    # the kernel's (h, w, c) order (kills the runtime flatten transpose) and
    # cast to bf16 (halves the dominant HBM term); accumulation stays f32.
    w1fc = p["fc1_w"].reshape(128, 64, 12, 12).transpose(0, 2, 3, 1)
    w1fc = w1fc.reshape(128, 9216).T.astype(jnp.bfloat16)          # (9216,128)
    b1fc = p["fc1_b"].reshape(1, 128)
    w2fc = p["fc2_w"].T                                            # (128, 10)
    b2fc = p["fc2_b"].reshape(1, 10)

    return dict(w1big=w1big, b1big=b1big, w2mat=w2mat, b2mat=b2mat,
                w1fc=w1fc, b1fc=b1fc, w2fc=w2fc, b2fc=b2fc)


def net_forward(x_nchw, kp):
    n = x_nchw.shape[0]
    lhs5 = _build_conv_lhs(x_nchw)
    # dropout1 (p=0.25) / dropout2 (p=0.5): identity at inference time.
    pooled = conv_pool_pallas(lhs5, kp["w1big"], kp["b1big"],
                              kp["w2mat"], kp["b2mat"], n)   # (N*144, 64)
    flat = pooled.reshape(n, 9216)   # contiguous (h, w, c) order: free reshape
    return mlp_head_pallas(flat, kp["w1fc"], kp["b1fc"],
                           kp["w2fc"], kp["b2fc"])


# ============================================================================
# Deterministic parameter init (PyTorch parameter shapes, fan-in scaled).
# ============================================================================
def init_params(key):
    ks = jax.random.split(key, 8)

    def rnd(k, shape, fan_in):
        return jax.random.normal(k, shape, jnp.float32) / jnp.sqrt(
            jnp.float32(fan_in))

    return {
        "conv1_w": rnd(ks[0], (32, 1, 3, 3), 9.0),
        "conv1_b": rnd(ks[1], (32,), 9.0),
        "conv2_w": rnd(ks[2], (64, 32, 3, 3), 288.0),
        "conv2_b": rnd(ks[3], (64,), 288.0),
        "fc1_w": rnd(ks[4], (128, 9216), 9216.0),
        "fc1_b": rnd(ks[5], (128,), 9216.0),
        "fc2_w": rnd(ks[6], (10, 128), 128.0),
        "fc2_b": rnd(ks[7], (10,), 128.0),
    }


# ----------------------------------------------------------------------------
# Pure-JAX reference (numerical sanity check only).
# ----------------------------------------------------------------------------
def reference_forward(x_nchw, p):
    dn = ("NCHW", "OIHW", "NCHW")
    y = lax.conv_general_dilated(x_nchw, p["conv1_w"], (1, 1), "VALID",
                                 dimension_numbers=dn)
    y = jnp.maximum(y + p["conv1_b"][None, :, None, None], 0.0)
    y = lax.conv_general_dilated(y, p["conv2_w"], (1, 1), "VALID",
                                 dimension_numbers=dn)
    y = jnp.maximum(y + p["conv2_b"][None, :, None, None], 0.0)
    y = lax.reduce_window(y, -jnp.inf, lax.max, (1, 1, 2, 2), (1, 1, 2, 2),
                          "VALID")
    y = y.reshape(y.shape[0], -1)
    y = jnp.maximum(y @ p["fc1_w"].T + p["fc1_b"], 0.0)
    y = y @ p["fc2_w"].T + p["fc2_b"]
    return jax.nn.log_softmax(y, axis=-1)


if __name__ == "__main__":
    key = jax.random.PRNGKey(0)
    k_x, k_p = jax.random.split(key)
    x = jax.random.normal(k_x, (2, 1, 28, 28), jnp.float32)  # NCHW, batch=2
    params = init_params(k_p)
    kparams = prepare_params(params)

    fwd = jax.jit(net_forward)
    out = fwd(x, kparams)
    jax.block_until_ready(out)

    assert out.shape == (2, 10) and out.dtype == jnp.float32

    # Reference uses the same bf16-rounded fc1 weights, so the only deltas are
    # activation rounding / accumulation order.
    ref_params = dict(params)
    ref_params["fc1_w"] = (
        params["fc1_w"].astype(jnp.bfloat16).astype(jnp.float32))
    ref = reference_forward(x, ref_params)
    assert jnp.allclose(out, ref, atol=2e-2, rtol=2e-2), "mismatch vs reference"
    # log_softmax rows must exponentiate to probability distributions
    assert jnp.allclose(jnp.sum(jnp.exp(out), axis=-1), 1.0, atol=1e-4)

    print("KERNEL_OK")
</pallas_src>

<mosaic_0001>
module attributes {stable_mosaic.version = 11 : i64} {
  func.func @_conv_pool_kernel(%arg0: i32, %arg1: memref<288x25xf32, #tpu.memory_space<vmem>>, %arg2: memref<25x288xf32, #tpu.memory_space<vmem>>, %arg3: memref<1x288xf32, #tpu.memory_space<vmem>>, %arg4: memref<288x64xf32, #tpu.memory_space<vmem>>, %arg5: memref<1x64xf32, #tpu.memory_space<vmem>>, %arg6: memref<288x64xf32, #tpu.memory_space<vmem>>) attributes {dimension_semantics = [#tpu.dimension_semantics<arbitrary>], iteration_bounds = array<i64: 4>, scalar_prefetch = 0 : i64, scratch_operands = 0 : i64, tpu.core_type = #tpu.core_type<tc>, window_params = [{transform_indices = @transform_0, window_bounds = array<i64: 288, 25>}, {pipeline_mode = #tpu.pipeline_mode<synchronous>, transform_indices = @transform_1, window_bounds = array<i64: 25, 288>}, {pipeline_mode = #tpu.pipeline_mode<synchronous>, transform_indices = @transform_2, window_bounds = array<i64: 1, 288>}, {pipeline_mode = #tpu.pipeline_mode<synchronous>, transform_indices = @transform_3, window_bounds = array<i64: 288, 64>}, {pipeline_mode = #tpu.pipeline_mode<synchronous>, transform_indices = @transform_4, window_bounds = array<i64: 1, 64>}, {pipeline_mode = #tpu.pipeline_mode<synchronous>, transform_indices = @transform_5, window_bounds = array<i64: 288, 64>}]} {
    %c0 = arith.constant 0 : index
    %c0_0 = arith.constant 0 : index
    %0 = vector.load %arg1[%c0, %c0_0] : memref<288x25xf32, #tpu.memory_space<vmem>>, vector<288x25xf32>
    %c0_1 = arith.constant 0 : index
    %c0_2 = arith.constant 0 : index
    %1 = vector.load %arg2[%c0_1, %c0_2] : memref<25x288xf32, #tpu.memory_space<vmem>>, vector<25x288xf32>
    %cst = arith.constant dense<0.000000e+00> : vector<288x288xf32>
    %2 = tpu.matmul %0, %1, %cst {dimension_numbers = #tpu.dot_dimension_numbers<[1], [0], [0], [1], [0, 0, 1, 1], [], []>} : vector<288x25xf32>, vector<25x288xf32>, vector<288x288xf32> -> vector<288x288xf32>
    %c0_3 = arith.constant 0 : index
    %c0_4 = arith.constant 0 : index
    %3 = vector.load %arg3[%c0_3, %c0_4] : memref<1x288xf32, #tpu.memory_space<vmem>>, vector<1x288xf32>
    %4 = vector.broadcast %3 : vector<1x288xf32> to vector<288x288xf32>
    %5 = arith.addf %2, %4 : vector<288x288xf32>
    %cst_5 = arith.constant 0.000000e+00 : f32
    %6 = vector.broadcast %cst_5 : f32 to vector<288x288xf32>
    %7 = arith.maximumf %5, %6 : vector<288x288xf32>
    %c0_6 = arith.constant 0 : index
    %c0_7 = arith.constant 0 : index
    %8 = vector.load %arg4[%c0_6, %c0_7] : memref<288x64xf32, #tpu.memory_space<vmem>>, vector<288x64xf32>
    %cst_8 = arith.constant dense<0.000000e+00> : vector<288x64xf32>
    %9 = tpu.matmul %7, %8, %cst_8 {dimension_numbers = #tpu.dot_dimension_numbers<[1], [0], [0], [1], [0, 0, 1, 1], [], []>} : vector<288x288xf32>, vector<288x64xf32>, vector<288x64xf32> -> vector<288x64xf32>
    %c0_9 = arith.constant 0 : index
    %c0_10 = arith.constant 0 : index
    %10 = vector.load %arg5[%c0_9, %c0_10] : memref<1x64xf32, #tpu.memory_space<vmem>>, vector<1x64xf32>
    %11 = vector.broadcast %10 : vector<1x64xf32> to vector<288x64xf32>
    %12 = arith.addf %9, %11 : vector<288x64xf32>
    %cst_11 = arith.constant 0.000000e+00 : f32
    %13 = vector.broadcast %cst_11 : f32 to vector<288x64xf32>
    %14 = arith.maximumf %12, %13 : vector<288x64xf32>
    %c0_i32 = arith.constant 0 : i32
    %15 = arith.cmpi eq, %arg0, %c0_i32 : i32
    %16 = arith.extui %15 : i1 to i32
    %c0_i32_12 = arith.constant 0 : i32
    %17 = arith.cmpi ne, %16, %c0_i32_12 : i32
    scf.if %17 {
      %c0_15 = arith.constant 0 : index
      %c0_16 = arith.constant 0 : index
      %21 = vector.load %arg6[%c0_15, %c0_16] : memref<288x64xf32, #tpu.memory_space<vmem>>, vector<288x64xf32>
      tpu.vector_store %arg6[%c0_15, %c0_16], %14 {strides = array<i32>} : memref<288x64xf32, #tpu.memory_space<vmem>>, vector<288x64xf32>,
    } else {
    }
    %c0_i32_13 = arith.constant 0 : i32
    %18 = arith.cmpi sgt, %arg0, %c0_i32_13 : i32
    %19 = arith.extui %18 : i1 to i32
    %c0_i32_14 = arith.constant 0 : i32
    %20 = arith.cmpi ne, %19, %c0_i32_14 : i32
    scf.if %20 {
      %c0_15 = arith.constant 0 : index
      %c0_16 = arith.constant 0 : index
      %21 = vector.load %arg6[%c0_15, %c0_16] : memref<288x64xf32, #tpu.memory_space<vmem>>, vector<288x64xf32>
      %22 = arith.maximumf %21, %14 : vector<288x64xf32>
      %c0_17 = arith.constant 0 : index
      %c0_18 = arith.constant 0 : index
      %23 = vector.load %arg6[%c0_17, %c0_18] : memref<288x64xf32, #tpu.memory_space<vmem>>, vector<288x64xf32>
      tpu.vector_store %arg6[%c0_17, %c0_18], %22 {strides = array<i32>} : memref<288x64xf32, #tpu.memory_space<vmem>>, vector<288x64xf32>,
    } else {
    }
    return
  }
  func.func @transform_0(%arg0: i32) -> (i32, i32) {
    %c0_i32 = arith.constant 0 : i32
    %c0_i32_0 = arith.constant 0 : i32
    return %arg0, %c0_i32 : i32, i32
  }
  func.func @transform_1(%arg0: i32) -> (i32, i32) {
    %c0_i32 = arith.constant 0 : i32
    %c0_i32_0 = arith.constant 0 : i32
    %c0_i32_1 = arith.constant 0 : i32
    return %c0_i32, %c0_i32_0 : i32, i32
  }
  func.func @transform_2(%arg0: i32) -> (i32, i32) {
    %c0_i32 = arith.constant 0 : i32
    %c0_i32_0 = arith.constant 0 : i32
    %c0_i32_1 = arith.constant 0 : i32
    return %c0_i32, %c0_i32_0 : i32, i32
  }
  func.func @transform_3(%arg0: i32) -> (i32, i32) {
    %c0_i32 = arith.constant 0 : i32
    %c0_i32_0 = arith.constant 0 : i32
    %c0_i32_1 = arith.constant 0 : i32
    return %c0_i32, %c0_i32_0 : i32, i32
  }
  func.func @transform_4(%arg0: i32) -> (i32, i32) {
    %c0_i32 = arith.constant 0 : i32
    %c0_i32_0 = arith.constant 0 : i32
    %c0_i32_1 = arith.constant 0 : i32
    return %c0_i32, %c0_i32_0 : i32, i32
  }
  func.func @transform_5(%arg0: i32) -> (i32, i32) {
    %c0_i32 = arith.constant 0 : i32
    %c0_i32_0 = arith.constant 0 : i32
    %c0_i32_1 = arith.constant 0 : i32
    return %c0_i32, %c0_i32_0 : i32, i32
  }
}

module attributes {stable_mosaic.version = 11 : i64} {
  func.func @_mlp_head_kernel(%arg0: i32, %arg1: memref<2x4608xf32, #tpu.memory_space<vmem>>, %arg2: memref<4608x128xbf16, #tpu.memory_space<vmem>>, %arg3: memref<1x128xf32, #tpu.memory_space<vmem>>, %arg4: memref<128x10xf32, #tpu.memory_space<vmem>>, %arg5: memref<1x10xf32, #tpu.memory_space<vmem>>, %arg6: memref<2x10xf32, #tpu.memory_space<vmem>>, %arg7: memref<2x128xf32, #tpu.memory_space<vmem>>) attributes {dimension_semantics = [#tpu.dimension_semantics<arbitrary>], iteration_bounds = array<i64: 2>, scalar_prefetch = 0 : i64, scratch_operands = 1 : i64, tpu.core_type = #tpu.core_type<tc>, window_params = [{transform_indices = @transform_0, window_bounds = array<i64: 2, 4608>}, {transform_indices = @transform_1, window_bounds = array<i64: 4608, 128>}, {pipeline_mode = #tpu.pipeline_mode<synchronous>, transform_indices = @transform_2, window_bounds = array<i64: 1, 128>}, {pipeline_mode = #tpu.pipeline_mode<synchronous>, transform_indices = @transform_3, window_bounds = array<i64: 128, 10>}, {pipeline_mode = #tpu.pipeline_mode<synchronous>, transform_indices = @transform_4, window_bounds = array<i64: 1, 10>}, {pipeline_mode = #tpu.pipeline_mode<synchronous>, transform_indices = @transform_5, window_bounds = array<i64: 2, 10>}]} {
    %c0_i32 = arith.constant 0 : i32
    %0 = arith.cmpi eq, %arg0, %c0_i32 : i32
    %1 = arith.extui %0 : i1 to i32
    %c0_i32_0 = arith.constant 0 : i32
    %2 = arith.cmpi ne, %1, %c0_i32_0 : i32
    scf.if %2 {
      %cst_9 = arith.constant 0.000000e+00 : f32
      %13 = vector.broadcast %cst_9 : f32 to vector<2x128xf32>
      %c0_10 = arith.constant 0 : index
      %c0_11 = arith.constant 0 : index
      %14 = vector.load %arg7[%c0_10, %c0_11] : memref<2x128xf32, #tpu.memory_space<vmem>>, vector<2x128xf32>
      tpu.vector_store %arg7[%c0_10, %c0_11], %13 {strides = array<i32>} : memref<2x128xf32, #tpu.memory_space<vmem>>, vector<2x128xf32>,
    } else {
    }
    %c0 = arith.constant 0 : index
    %c0_1 = arith.constant 0 : index
    %3 = vector.load %arg7[%c0, %c0_1] : memref<2x128xf32, #tpu.memory_space<vmem>>, vector<2x128xf32>
    %c0_2 = arith.constant 0 : index
    %c0_3 = arith.constant 0 : index
    %4 = vector.load %arg1[%c0_2, %c0_3] : memref<2x4608xf32, #tpu.memory_space<vmem>>, vector<2x4608xf32>
    %5 = arith.truncf %4 : vector<2x4608xf32> to vector<2x4608xbf16>
    %c0_4 = arith.constant 0 : index
    %c0_5 = arith.constant 0 : index
    %6 = vector.load %arg2[%c0_4, %c0_5] : memref<4608x128xbf16, #tpu.memory_space<vmem>>, vector<4608x128xbf16>
    %cst = arith.constant dense<0.000000e+00> : vector<2x128xf32>
    %7 = tpu.matmul %5, %6, %cst {dimension_numbers = #tpu.dot_dimension_numbers<[1], [0], [0], [1], [0, 0, 1, 1], [], []>} : vector<2x4608xbf16>, vector<4608x128xbf16>, vector<2x128xf32> -> vector<2x128xf32>
    %8 = arith.addf %3, %7 : vector<2x128xf32>
    %c0_6 = arith.constant 0 : index
    %c0_7 = arith.constant 0 : index
    %9 = vector.load %arg7[%c0_6, %c0_7] : memref<2x128xf32, #tpu.memory_space<vmem>>, vector<2x128xf32>
    tpu.vector_store %arg7[%c0_6, %c0_7], %8 {strides = array<i32>} : memref<2x128xf32, #tpu.memory_space<vmem>>, vector<2x128xf32>,
    %c1_i32 = arith.constant 1 : i32
    %10 = arith.cmpi eq, %arg0, %c1_i32 : i32
    %11 = arith.extui %10 : i1 to i32
    %c0_i32_8 = arith.constant 0 : i32
    %12 = arith.cmpi ne, %11, %c0_i32_8 : i32
    scf.if %12 {
      %c0_9 = arith.constant 0 : index
      %c0_10 = arith.constant 0 : index
      %13 = vector.load %arg7[%c0_9, %c0_10] : memref<2x128xf32, #tpu.memory_space<vmem>>, vector<2x128xf32>
      %c0_11 = arith.constant 0 : index
      %c0_12 = arith.constant 0 : index
      %14 = vector.load %arg3[%c0_11, %c0_12] : memref<1x128xf32, #tpu.memory_space<vmem>>, vector<1x128xf32>
      %15 = vector.broadcast %14 : vector<1x128xf32> to vector<2x128xf32>
      %16 = arith.addf %13, %15 : vector<2x128xf32>
      %cst_13 = arith.constant 0.000000e+00 : f32
      %17 = vector.broadcast %cst_13 : f32 to vector<2x128xf32>
      %18 = arith.maximumf %16, %17 : vector<2x128xf32>
      %c0_14 = arith.constant 0 : index
      %c0_15 = arith.constant 0 : index
      %19 = vector.load %arg4[%c0_14, %c0_15] : memref<128x10xf32, #tpu.memory_space<vmem>>, vector<128x10xf32>
      %cst_16 = arith.constant dense<0.000000e+00> : vector<2x10xf32>
      %20 = tpu.matmul %18, %19, %cst_16 {dimension_numbers = #tpu.dot_dimension_numbers<[1], [0], [0], [1], [0, 0, 1, 1], [], []>} : vector<2x128xf32>, vector<128x10xf32>, vector<2x10xf32> -> vector<2x10xf32>
      %c0_17 = arith.constant 0 : index
      %c0_18 = arith.constant 0 : index
      %21 = vector.load %arg5[%c0_17, %c0_18] : memref<1x10xf32, #tpu.memory_space<vmem>>, vector<1x10xf32>
      %22 = vector.broadcast %21 : vector<1x10xf32> to vector<2x10xf32>
      %23 = arith.addf %20, %22 : vector<2x10xf32>
      %cst_19 = arith.constant dense<0xFF800000> : vector<2xf32>
      %24 = vector.multi_reduction <maximumf>, %23, %cst_19 [1] : vector<2x10xf32> to vector<2xf32>
      %25 = vector.shape_cast %24 : vector<2xf32> to vector<2x1xf32>
      %26 = vector.broadcast %25 : vector<2x1xf32> to vector<2x10xf32>
      %27 = arith.subf %23, %26 : vector<2x10xf32>
      %28 = math.exp %27 : vector<2x10xf32>
      %cst_20 = arith.constant dense<0.000000e+00> : vector<2xf32>
      %29 = vector.multi_reduction <add>, %28, %cst_20 [1] : vector<2x10xf32> to vector<2xf32>
      %30 = vector.shape_cast %29 : vector<2xf32> to vector<2x1xf32>
      %31 = math.log %30 : vector<2x1xf32>
      %32 = vector.broadcast %31 : vector<2x1xf32> to vector<2x10xf32>
      %33 = arith.subf %27, %32 : vector<2x10xf32>
      %c0_21 = arith.constant 0 : index
      %c0_22 = arith.constant 0 : index
      %34 = vector.load %arg6[%c0_21, %c0_22] : memref<2x10xf32, #tpu.memory_space<vmem>>, vector<2x10xf32>
      tpu.vector_store %arg6[%c0_21, %c0_22], %33 {strides = array<i32>} : memref<2x10xf32, #tpu.memory_space<vmem>>, vector<2x10xf32>,
    } else {
    }
    return
  }
  func.func @transform_0(%arg0: i32) -> (i32, i32) {
    %c0_i32 = arith.constant 0 : i32
    %c0_i32_0 = arith.constant 0 : i32
    return %c0_i32, %arg0 : i32, i32
  }
  func.func @transform_1(%arg0: i32) -> (i32, i32) {
    %c0_i32 = arith.constant 0 : i32
    %c0_i32_0 = arith.constant 0 : i32
    return %arg0, %c0_i32 : i32, i32
  }
  func.func @transform_2(%arg0: i32) -> (i32, i32) {
    %c0_i32 = arith.constant 0 : i32
    %c0_i32_0 = arith.constant 0 : i32
    %c0_i32_1 = arith.constant 0 : i32
    return %c0_i32, %c0_i32_0 : i32, i32
  }
  func.func @transform_3(%arg0: i32) -> (i32, i32) {
    %c0_i32 = arith.constant 0 : i32
    %c0_i32_0 = arith.constant 0 : i32
    %c0_i32_1 = arith.constant 0 : i32
    return %c0_i32, %c0_i32_0 : i32, i32
  }
  func.func @transform_4(%arg0: i32) -> (i32, i32) {
    %c0_i32 = arith.constant 0 : i32
    %c0_i32_0 = arith.constant 0 : i32
    %c0_i32_1 = arith.constant 0 : i32
    return %c0_i32, %c0_i32_0 : i32, i32
  }
  func.func @transform_5(%arg0: i32) -> (i32, i32) {
    %c0_i32 = arith.constant 0 : i32
    %c0_i32_0 = arith.constant 0 : i32
    %c0_i32_1 = arith.constant 0 : i32
    return %c0_i32, %c0_i32_0 : i32, i32
  }
}

</mosaic_0001>

<llo_original>
// kernel: net_forward.2
$region0: #{net_forward.2}
  #allocation0 [shape = 'u32[]', space=smem, size = 0x4, offset = 0x4, fixed_abs, tag = 'smem constant byte address 0x4 - core index']
  #allocation1 [shape = 'u32[144,128]{1,0:T(1,128)}', space=vmem, size = 0x12000, scoped, tag = 'internal scratch']
  %s0 = inlined_call_operand.vmem [shape: f32[1152,25], index: 0, kind: input, shape index: {}]
  %s1 = inlined_call_operand.vmem [shape: f32[25,288], index: 1, kind: input, shape index: {}]
  %s2 = inlined_call_operand.vmem [shape: f32[1,288], index: 2, kind: input, shape index: {}]
  %s3 = inlined_call_operand.vmem [shape: f32[288,64], index: 3, kind: input, shape index: {}]
  %s4 = inlined_call_operand.vmem [shape: f32[1,64], index: 4, kind: input, shape index: {}]
  %s5 = inlined_call_operand.vmem [shape: f32[288,64], index: 5, kind: output, shape index: {}]
  %s6 = sld [smem:[#allocation0]]
  $region61: #{net_forward.2} parent=0
    _
  %s8 = ssub.s32 1, %s6
  %s9 = scalar_select 0, %s8, %s6
  loop: start=0, step=1, limit=6
  $region2: #{net_forward.2} parent=0 // loop_pre_header
    _
  $region3: #{net_forward.2} parent=0 // loop_header
    %s11 = sphi 0, %s15
    %p12 = scmp.ge.s32.totalorder %s11, 6
    %s21 = sphi 0, %s23
    %s24 = sphi 0, %s21
    %s25 = sphi 0, %s24
    %s41 = sphi 0, %s25
    %s45 = sphi 0, %s45
    %s47 = sphi 0, %s45
    %s48 = sphi 0, %s47
    %s62 = sphi 0, %s48
    %s66 = sphi 0, %s66
    %s68 = sphi 0, %s66
    %s69 = sphi 0, %s68
    %s83 = sphi 0, %s69
    %s87 = sphi 0, %s87
    %s89 = sphi 0, %s87
    %s90 = sphi 0, %s89
    %s104 = sphi 0, %s90
    %s108 = sphi 0, %s108
    %s110 = sphi 0, %s108
    %s111 = sphi 0, %s110
    %s125 = sphi 0, %s111
    %s129 = sphi 0, %s129
    %s131 = sphi 0, %s129
    %s132 = sphi 0, %s131
    %s146 = sphi 0, %s132
  $region4: #{net_forward.2} parent=0 // loop_header_branch
    %14 = sbr.rel (%p12) target = $region8
  $region5: #{net_forward.2} parent=0 // loop_body
    %s16 = ssub.s32 %s11, 1
    %s17 = ssub.s32 %s11, 2
    %s18 = sadd.s32 %s11, 1
    %s19 = ssub.s32 %s11, %s18
    %p20 = scmp.eq.s32.totalorder %s19, 0
    %s22 = sadd.s32 %s21, 1
    %s23 = scalar_select %p20, %s21, %s22
    %p26 = pneg %p20
    %p27 = scmp.eq.s32.totalorder %s11, 3
    %p28 = por %p26, %p27
    %p29 = scmp.ne.s32.totalorder %s21, %s24
    %p30 = scmp.eq.s32.totalorder %s11, 0
    %p31 = por %p29, %p30
    %p32 = scmp.ne.s32.totalorder %s21, %s24
    %p33 = scmp.eq.s32.totalorder %s16, 3
    %p34 = por %p32, %p33
    %p35 = scmp.ne.s32.totalorder %s24, %s25
    %p36 = scmp.eq.s32.totalorder %s16, 0
    %p37 = por %p35, %p36
    %p38 = scmp.ne.s32.totalorder %s24, %s25
    %p39 = scmp.eq.s32.totalorder %s17, 3
    %p40 = por %p38, %p39
    %p42 = scmp.ne.s32.totalorder %s25, %s41
    %p43 = scmp.eq.s32.totalorder %s17, 0
    %p44 = por %p42, %p43
    %s46 = sadd.s32 %s45, 1
    %p49 = scmp.eq.s32.totalorder %s11, 3
    %p50 = scmp.ne.s32.totalorder %s45, %s47
    %p51 = scmp.eq.s32.totalorder %s11, 0
    %p52 = por %p50, %p51
    %p53 = scmp.ne.s32.totalorder %s45, %s47
    %p54 = scmp.eq.s32.totalorder %s16, 3
    %p55 = por %p53, %p54
    %p56 = scmp.ne.s32.totalorder %s47, %s48
    %p57 = scmp.eq.s32.totalorder %s16, 0
    %p58 = por %p56, %p57
    %p59 = scmp.ne.s32.totalorder %s47, %s48
    %p60 = scmp.eq.s32.totalorder %s17, 3
    %p61 = por %p59, %p60
    %p63 = scmp.ne.s32.totalorder %s48, %s62
    %p64 = scmp.eq.s32.totalorder %s17, 0
    %p65 = por %p63, %p64
    %s67 = sadd.s32 %s66, 1
    %p70 = scmp.eq.s32.totalorder %s11, 3
    %p71 = scmp.ne.s32.totalorder %s66, %s68
    %p72 = scmp.eq.s32.totalorder %s11, 0
    %p73 = por %p71, %p72
    %p74 = scmp.ne.s32.totalorder %s66, %s68
    %p75 = scmp.eq.s32.totalorder %s16, 3
    %p76 = por %p74, %p75
    %p77 = scmp.ne.s32.totalorder %s68, %s69
    %p78 = scmp.eq.s32.totalorder %s16, 0
    %p79 = por %p77, %p78
    %p80 = scmp.ne.s32.totalorder %s68, %s69
    %p81 = scmp.eq.s32.totalorder %s17, 3
    %p82 = por %p80, %p81
    %p84 = scmp.ne.s32.totalorder %s69, %s83
    %p85 = scmp.eq.s32.totalorder %s17, 0
    %p86 = por %p84, %p85
    %s88 = sadd.s32 %s87, 1
    %p91 = scmp.eq.s32.totalorder %s11, 3
    %p92 = scmp.ne.s32.totalorder %s87, %s89
    %p93 = scmp.eq.s32.totalorder %s11, 0
    %p94 = por %p92, %p93
    %p95 = scmp.ne.s32.totalorder %s87, %s89
    %p96 = scmp.eq.s32.totalorder %s16, 3
    %p97 = por %p95, %p96
    %p98 = scmp.ne.s32.totalorder %s89, %s90
    %p99 = scmp.eq.s32.totalorder %s16, 0
    %p100 = por %p98, %p99
    %p101 = scmp.ne.s32.totalorder %s89, %s90
    %p102 = scmp.eq.s32.totalorder %s17, 3
    %p103 = por %p101, %p102
    %p105 = scmp.ne.s32.totalorder %s90, %s104
    %p106 = scmp.eq.s32.totalorder %s17, 0
    %p107 = por %p105, %p106
    %s109 = sadd.s32 %s108, 1
    %p112 = scmp.eq.s32.totalorder %s11, 3
    %p113 = scmp.ne.s32.totalorder %s108, %s110
    %p114 = scmp.eq.s32.totalorder %s11, 0
    %p115 = por %p113, %p114
    %p116 = scmp.ne.s32.totalorder %s108, %s110
    %p117 = scmp.eq.s32.totalorder %s16, 3
    %p118 = por %p116, %p117
    %p119 = scmp.ne.s32.totalorder %s110, %s111
    %p120 = scmp.eq.s32.totalorder %s16, 0
    %p121 = por %p119, %p120
    %p122 = scmp.ne.s32.totalorder %s110, %s111
    %p123 = scmp.eq.s32.totalorder %s17, 3
    %p124 = por %p122, %p123
    %p126 = scmp.ne.s32.totalorder %s111, %s125
    %p127 = scmp.eq.s32.totalorder %s17, 0
    %p128 = por %p126, %p127
    %s130 = sadd.s32 %s129, 1
    %p133 = scmp.eq.s32.totalorder %s11, 3
    %p134 = scmp.ne.s32.totalorder %s129, %s131
    %p135 = scmp.eq.s32.totalorder %s11, 0
    %p136 = por %p134, %p135
    %p137 = scmp.ne.s32.totalorder %s129, %s131
    %p138 = scmp.eq.s32.totalorder %s16, 3
    %p139 = por %p137, %p138
    %p140 = scmp.ne.s32.totalorder %s131, %s132
    %p141 = scmp.eq.s32.totalorder %s16, 0
    %p142 = por %p140, %p141
    %p143 = scmp.ne.s32.totalorder %s131, %s132
    %p144 = scmp.eq.s32.totalorder %s17, 3
    %p145 = por %p143, %p144
    %p147 = scmp.ne.s32.totalorder %s132, %s146
    %p148 = scmp.eq.s32.totalorder %s17, 0
    %p149 = por %p147, %p148
    %p150 = scmp.le.s32.totalorder 1, %s11
    %p151 = scmp.lt.s32.totalorder %s11, 5
    %p152 = pnand %p150, %p151
    %p153 = pneg %p152
    // Predicated region
    $region9: #{net_forward.2} parent=5 // pred_check
      _
    $region10: #{net_forward.2} parent=5 // pred_check_branch
      %155 = sbr.rel (%p152) target = $region12
    $region11: #{net_forward.2} parent=5 // pred_region
      %s156 = ssub.s32 %s11, 1
      // Predicated region
      $region13: #{net_forward.2} parent=11 // pred_check
        %p157 = pneg %p58
      $region14: #{net_forward.2} parent=11 // pred_check_branch
        %159 = sbr.rel (%p157) target = $region16
      $region15: #{net_forward.2} parent=11 // pred_region
        _
      $region16: #{net_forward.2} parent=11 // pred_fallthru
        _
      // Predicated region
      $region17: #{net_forward.2} parent=11 // pred_check
        %p160 = pneg %p79
      $region18: #{net_forward.2} parent=11 // pred_check_branch
        %162 = sbr.rel (%p160) target = $region20
      $region19: #{net_forward.2} parent=11 // pred_region
        _
      $region20: #{net_forward.2} parent=11 // pred_fallthru
        _
      // Predicated region
      $region21: #{net_forward.2} parent=11 // pred_check
        %p163 = pneg %p100
      $region22: #{net_forward.2} parent=11 // pred_check_branch
        %165 = sbr.rel (%p163) target = $region24
      $region23: #{net_forward.2} parent=11 // pred_region
        _
      $region24: #{net_forward.2} parent=11 // pred_fallthru
        _
      // Predicated region
      $region25: #{net_forward.2} parent=11 // pred_check
        %p166 = pneg %p121
      $region26: #{net_forward.2} parent=11 // pred_check_branch
        %168 = sbr.rel (%p166) target = $region28
      $region27: #{net_forward.2} parent=11 // pred_region
        _
      $region28: #{net_forward.2} parent=11 // pred_fallthru
        _
    $region12: #{net_forward.2} parent=5 // pred_fallthru
      _
    %p169 = scmp.lt.s32.totalorder %s11, 4
    // Predicated region
    $region29: #{net_forward.2} parent=5 // pred_check
      %p170 = pneg %p169
    $region30: #{net_forward.2} parent=5 // pred_check_branch
      %172 = sbr.rel (%p170) target = $region32
    $region31: #{net_forward.2} parent=5 // pred_region
      // Predicated region
      $region33: #{net_forward.2} parent=31 // pred_check
        %p173 = pneg %p31
      $region34: #{net_forward.2} parent=31 // pred_check_branch
        %175 = sbr.rel (%p173) target = $region36
      $region35: #{net_forward.2} parent=31 // pred_region
        %s176 = smul.u32 36, %s11
        %p177 = scmp.lt.s32.totalorder %s176, 143
        %s178 = scalar_select %p177, %s176, 143
        %s179 = smul.addr %s178, 8
        %s180 = scalar_lea.vmem %s0, %s179
        %s181 = smul.u32 36, %s11
      $region36: #{net_forward.2} parent=31 // pred_fallthru
        _
    $region32: #{net_forward.2} parent=5 // pred_fallthru
      _
    %p182 = scmp.le.s32.totalorder 1, %s11
    %p183 = scmp.lt.s32.totalorder %s11, 5
    %p184 = pnand %p182, %p183
    %p185 = pneg %p184
    // Predicated region
    $region37: #{net_forward.2} parent=5 // pred_check
      _
    $region38: #{net_forward.2} parent=5 // pred_check_branch
      %187 = sbr.rel (%p184) target = $region40
    $region39: #{net_forward.2} parent=5 // pred_region
      %s188 = ssub.s32 %s11, 1
      %s189 = smul.u32 36, %s16
      %p190 = scmp.lt.s32.totalorder %s189, 143
      %s191 = scalar_select %p190, %s189, 143
      %s192 = smul.addr %s191, 8
      %s193 = scalar_lea.vmem %s0, %s192
      %p194 = pneg %p37
      %p195 = pneg %p34
      %p196 = pneg %p58
      %p197 = pneg %p55
      %p198 = pneg %p79
      %p199 = pneg %p76
      %p200 = pneg %p100
      %p201 = pneg %p97
      %p202 = pneg %p121
      %p203 = pneg %p118
      %p204 = pneg %p142
      %p205 = pneg %p139
      %s206 = smul.u32 36, %s16
      %p207 = scmp.lt.s32.totalorder %s206, 143
      %s208 = scalar_select %p207, %s206, 143
      %s209 = smul.addr %s208, 8
      %s210 = scalar_lea.vmem %s0, %s209
      %s211 = smul.u32 36, %s16
      %v212 = vld [vmem:[%s210] sm:$0xff]
      %v213 = vld [vmem:[%s210 + $0x8] sm:$0xff]
      %v214 = vld [vmem:[%s210 + $0x10] sm:$0xff]
      %v215 = vld [vmem:[%s210 + $0x18] sm:$0xff]
      %v216 = vld [vmem:[%s210 + $0x20] sm:$0xff]
      %v217 = vld [vmem:[%s210 + $0x28] sm:$0xff]
      %v218 = vld [vmem:[%s210 + $0x30] sm:$0xff]
      %v219 = vld [vmem:[%s210 + $0x38] sm:$0xff]
      %v220 = vld [vmem:[%s210 + $0x40] sm:$0xff]
      %v221 = vld [vmem:[%s210 + $0x48] sm:$0xff]
      %v222 = vld [vmem:[%s210 + $0x50] sm:$0xff]
      %v223 = vld [vmem:[%s210 + $0x58] sm:$0xff]
      %v224 = vld [vmem:[%s210 + $0x60] sm:$0xff]
      %v225 = vld [vmem:[%s210 + $0x68] sm:$0xff]
      %v226 = vld [vmem:[%s210 + $0x70] sm:$0xff]
      %v227 = vld [vmem:[%s210 + $0x78] sm:$0xff]
      %v228 = vld [vmem:[%s210 + $0x80] sm:$0xff]
      %v229 = vld [vmem:[%s210 + $0x88] sm:$0xff]
      %v230 = vld [vmem:[%s210 + $0x90] sm:$0xff]
      %v231 = vld [vmem:[%s210 + $0x98] sm:$0xff]
      %v232 = vld [vmem:[%s210 + $0xa0] sm:$0xff]
      %v233 = vld [vmem:[%s210 + $0xa8] sm:$0xff]
      %v234 = vld [vmem:[%s210 + $0xb0] sm:$0xff]
      %v235 = vld [vmem:[%s210 + $0xb8] sm:$0xff]
      %v236 = vld [vmem:[%s210 + $0xc0] sm:$0xff]
      %v237 = vld [vmem:[%s210 + $0xc8] sm:$0xff]
      %v238 = vld [vmem:[%s210 + $0xd0] sm:$0xff]
      %v239 = vld [vmem:[%s210 + $0xd8] sm:$0xff]
      %v240 = vld [vmem:[%s210 + $0xe0] sm:$0xff]
      %v241 = vld [vmem:[%s210 + $0xe8] sm:$0xff]
      %v242 = vld [vmem:[%s210 + $0xf0] sm:$0xff]
      %v243 = vld [vmem:[%s210 + $0xf8] sm:$0xff]
      %v244 = vld [vmem:[%s210 + $0x100] sm:$0xff]
      %v245 = vld [vmem:[%s210 + $0x108] sm:$0xff]
      %v246 = vld [vmem:[%s210 + $0x110] sm:$0xff]
      %v247 = vld [vmem:[%s210 + $0x118] sm:$0xff]
      %v248 = vld [vmem:[%s1] sm:$0xff]
      %v249 = vld [vmem:[%s1 + $0x8] sm:$0xff]
      %v250 = vld [vmem:[%s1 + $0x10] sm:$0xff]
      %v251 = vld [vmem:[%s1 + $0x18] sm:$0xff]
      %v252 = vld [vmem:[%s1 + $0x20] sm:$0xff]
      %v253 = vld [vmem:[%s1 + $0x28] sm:$0xff]
      %v254 = vld [vmem:[%s1 + $0x30] sm:$0xff]
      %v255 = vld [vmem:[%s1 + $0x38] sm:$0xff]
      %v256 = vld [vmem:[%s1 + $0x40] sm:$0xff]
      %v257 = vld [vmem:[%s1 + $0x48] sm:$0x1]
      %v258 = vld [vmem:[%s1 + $0x50] sm:$0x1]
      %v259 = vld [vmem:[%s1 + $0x58] sm:$0x1]
      %v260 = vld [vmem:[%s2] sm:$0x7]
      %v262 = vlaneseq
      %v263 = vshrl.u32 %v262, 7
      %v264 = vsub.s32 0, %v263
      %v265 = vrot.slane %v260, %v264
      %v266 = vlaneseq
      %v267 = vshrl.u32 %v266, 7
      %v268 = vsub.s32 1, %v267
      %v269 = vrot.slane %v260, %v268
      %v270 = vlaneseq
      %v271 = vshrl.u32 %v270, 7
      %v272 = vsub.s32 2, %v271
      %v273 = vrot.slane %v260, %v272
      %vm277 = vcmask 203776
      %v279 = vsel %vm277, %v212, 0
      %v282 = vsel %vm277, %v213, 0
      %v285 = vsel %vm277, %v214, 0
      %v288 = vsel %vm277, %v215, 0
      %v291 = vsel %vm277, %v216, 0
      %v294 = vsel %vm277, %v217, 0
      %v297 = vsel %vm277, %v218, 0
      %v300 = vsel %vm277, %v219, 0
      %v303 = vsel %vm277, %v220, 0
      %v306 = vsel %vm277, %v221, 0
      %v309 = vsel %vm277, %v222, 0
      %v312 = vsel %vm277, %v223, 0
      %v315 = vsel %vm277, %v224, 0
      %v318 = vsel %vm277, %v225, 0
      %v321 = vsel %vm277, %v226, 0
      %v324 = vsel %vm277, %v227, 0
      %v327 = vsel %vm277, %v228, 0
      %v330 = vsel %vm277, %v229, 0
      %v333 = vsel %vm277, %v230, 0
      %v336 = vsel %vm277, %v231, 0
      %v339 = vsel %vm277, %v232, 0
      %v342 = vsel %vm277, %v233, 0
      %v345 = vsel %vm277, %v234, 0
      %v348 = vsel %vm277, %v235, 0
      %v351 = vsel %vm277, %v236, 0
      %v354 = vsel %vm277, %v237, 0
      %v357 = vsel %vm277, %v238, 0
      %v360 = vsel %vm277, %v239, 0
      %v363 = vsel %vm277, %v240, 0
      %v366 = vsel %vm277, %v241, 0
      %v369 = vsel %vm277, %v242, 0
      %v372 = vsel %vm277, %v243, 0
      %v375 = vsel %vm277, %v244, 0
      %v378 = vsel %vm277, %v245, 0
      %v381 = vsel %vm277, %v246, 0
      %v384 = vsel %vm277, %v247, 0
      %vm386 = vcmask 1040384
      %v388 = vsel %vm386, %v257, 0
      %v391 = vsel %vm386, %v258, 0
      %v394 = vsel %vm386, %v259, 0
      %396 = vmatprep.subr.mxu0 %v249
      %397 = vmatpush1.msra.mxu0 %v248
      %398 = vmatprep.subr.mxu0 %v252
      %399 = vmatpush1.msra.mxu0 %v251
      %400 = vmatprep.subr.mxu0 %v255
      %401 = vmatpush1.msra.mxu0 %v254
      %402 = vmatprep.subr.mxu0 %v391
      %403 = vmatpush1.msra.mxu0 %v388
      %404 = vmatprep.subr.mxu0 0.0
      %405 = vmatpush1.msra.mxu0 0.0
      %406 = vmatprep.subr.mxu0 0.0
      %407 = vmatpush1.msra.mxu0 0.0
      %408 = vmatprep.subr.mxu0 0.0
      %409 = vmatpush1.msra.mxu0 0.0
      %410 = vmatprep.subr.mxu0 0.0
      %411 = vmatpush1.msra.mxu0 0.0
      %412 = vmatprep.subr.mxu0 0.0
      %413 = vmatpush1.msra.mxu0 0.0
      %414 = vmatprep.subr.mxu0 0.0
      %415 = vmatpush1.msra.mxu0 0.0
      %416 = vmatprep.subr.mxu0 0.0
      %417 = vmatpush1.msra.mxu0 0.0
      %418 = vmatprep.subr.mxu0 0.0
      %419 = vmatpush1.msra.mxu0 0.0
      %420 = vmatprep.subr.mxu0 0.0
      %421 = vmatpush1.msra.mxu0 0.0
      %422 = vmatprep.subr.mxu0 0.0
      %423 = vmatpush1.msra.mxu0 0.0
      %424 = vmatprep.subr.mxu0 0.0
      %425 = vmatpush1.msra.mxu0 0.0
      %426 = vmatprep.subr.mxu0 0.0
      %427 = vmatpush1.msra.mxu0 0.0
      %428 = vmatprep.subr.mxu0 0.0
      %429 = vmatpush1.msra.mxu0 0.0
      %430 = vmatprep.subr.mxu0 0.0
      %431 = vmatpush1.msra.mxu0 0.0
      %432 = vmatprep.subr.mxu0 0.0
      %433 = vmatpush1.msra.mxu0 0.0
      %434 = vmatprep.subr.mxu0 0.0
      %435 = vmatpush1.msra.mxu0 0.0
      %436 = vmatprep.subr.mxu0 0.0
      %437 = vmatpush1.msra.mxu0 0.0
      %438 = vmatprep.subr.mxu0 0.0
      %439 = vmatpush1.msra.mxu0 0.0
      %440 = vmatprep.subr.mxu0 0.0
      %441 = vmatpush1.msra.mxu0 0.0
      %442 = vmatprep.subr.mxu0 0.0
      %443 = vmatpush1.msra.mxu0 0.0
      %444 = vmatprep.subr.mxu0 0.0
      %445 = vmatpush1.msra.mxu0 0.0
      %446 = vmatprep.subr.mxu0 0.0
      %447 = vmatpush1.msra.mxu0 0.0
      %448 = vmatprep.subr.mxu0 0.0
      %449 = vmatpush1.msra.mxu0 0.0
      %450 = vmatprep.subr.mxu0 0.0
      %451 = vmatpush1.msra.mxu0 0.0
      %452 = vmatprep.subr.mxu0 0.0
      %453 = vmatpush1.msra.mxu0 0.0
      %454 = vmatprep.subr.mxu0 0.0
      %455 = vmatpush1.msra.mxu0 0.0
      %456 = vmatprep.subr.mxu0 0.0
      %457 = vmatpush1.msra.mxu0 0.0
      %458 = vmatprep.subr.mxu0 0.0
      %459 = vmatpush1.msra.mxu0 0.0
      %460 = vmatprep.mubr.f32.mxu0 0.0
      %461 = vmatmul.mubr.f32.gmra.mrb[0].mxu0 %v279
      %v462 = vpop.f32.mrb[0].mxu0
      %v463 = vadd.f32 %v265, %v462
      %v464 = vpop.f32.mrb[0].mxu0
      %v465 = vadd.f32 %v269, %v464
      %466 = vmatprep.mubr.f32.mxu0 0.0
      %467 = vmatmul.mubr.f32.gmra.mrb[0].mxu0 %v282
      %v468 = vpop.f32.mrb[0].mxu0
      %v469 = vadd.f32 %v265, %v468
      %v470 = vpop.f32.mrb[0].mxu0
      %v471 = vadd.f32 %v269, %v470
      %472 = vmatprep.mubr.f32.mxu0 0.0
      %473 = vmatmul.mubr.f32.gmra.mrb[0].mxu0 %v285
      %v474 = vpop.f32.mrb[0].mxu0
      %v475 = vadd.f32 %v265, %v474
      %v476 = vpop.f32.mrb[0].mxu0
      %v477 = vadd.f32 %v269, %v476
      %478 = vmatprep.mubr.f32.mxu0 0.0
      %479 = vmatmul.mubr.f32.gmra.mrb[0].mxu0 %v288
      %v480 = vpop.f32.mrb[0].mxu0
      %v481 = vadd.f32 %v265, %v480
      %v482 = vpop.f32.mrb[0].mxu0
      %v483 = vadd.f32 %v269, %v482
      %484 = vmatprep.mubr.f32.mxu0 0.0
      %485 = vmatmul.mubr.f32.gmra.mrb[0].mxu0 %v291
      %v486 = vpop.f32.mrb[0].mxu0
      %v487 = vadd.f32 %v265, %v486
      %v488 = vpop.f32.mrb[0].mxu0
      %v489 = vadd.f32 %v269, %v488
      %490 = vmatprep.mubr.f32.mxu0 0.0
      %491 = vmatmul.mubr.f32.gmra.mrb[0].mxu0 %v294
      %v492 = vpop.f32.mrb[0].mxu0
      %v493 = vadd.f32 %v265, %v492
      %v494 = vpop.f32.mrb[0].mxu0
      %v495 = vadd.f32 %v269, %v494
      %496 = vmatprep.mubr.f32.mxu0 0.0
      %497 = vmatmul.mubr.f32.gmra.mrb[0].mxu0 %v297
      %v498 = vpop.f32.mrb[0].mxu0
      %v499 = vadd.f32 %v265, %v498
      %v500 = vpop.f32.mrb[0].mxu0
      %v501 = vadd.f32 %v269, %v500
      %502 = vmatprep.mubr.f32.mxu0 0.0
      %503 = vmatmul.mubr.f32.gmra.mrb[0].mxu0 %v300
      %v504 = vpop.f32.mrb[0].mxu0
      %v505 = vadd.f32 %v265, %v504
      %v506 = vpop.f32.mrb[0].mxu0
      %v507 = vadd.f32 %v269, %v506
      %508 = vmatprep.mubr.f32.mxu0 0.0
      %509 = vmatmul.mubr.f32.gmra.mrb[0].mxu0 %v303
      %v510 = vpop.f32.mrb[0].mxu0
      %v511 = vadd.f32 %v265, %v510
      %v512 = vpop.f32.mrb[0].mxu0
      %v513 = vadd.f32 %v269, %v512
      %514 = vmatprep.mubr.f32.mxu0 0.0
      %515 = vmatmul.mubr.f32.gmra.mrb[0].mxu0 %v306
      %v516 = vpop.f32.mrb[0].mxu0
      %v517 = vadd.f32 %v265, %v516
      %v518 = vpop.f32.mrb[0].mxu0
      %v519 = vadd.f32 %v269, %v518
      %520 = vmatprep.mubr.f32.mxu0 0.0
      %521 = vmatmul.mubr.f32.gmra.mrb[0].mxu0 %v309
      %v522 = vpop.f32.mrb[0].mxu0
      %v523 = vadd.f32 %v265, %v522
      %v524 = vpop.f32.mrb[0].mxu0
      %v525 = vadd.f32 %v269, %v524
      %526 = vmatprep.mubr.f32.mxu0 0.0
      %527 = vmatmul.mubr.f32.gmra.mrb[0].mxu0 %v312
      %v528 = vpop.f32.mrb[0].mxu0
      %v529 = vadd.f32 %v265, %v528
      %v530 = vpop.f32.mrb[0].mxu0
      %v531 = vadd.f32 %v269, %v530
      %532 = vmatprep.mubr.f32.mxu0 0.0
      %533 = vmatmul.mubr.f32.gmra.mrb[0].mxu0 %v315
      %v534 = vpop.f32.mrb[0].mxu0
      %v535 = vadd.f32 %v265, %v534
      %v536 = vpop.f32.mrb[0].mxu0
      %v537 = vadd.f32 %v269, %v536
      %538 = vmatprep.mubr.f32.mxu0 0.0
      %539 = vmatmul.mubr.f32.gmra.mrb[0].mxu0 %v318
      %v540 = vpop.f32.mrb[0].mxu0
      %v541 = vadd.f32 %v265, %v540
      %v542 = vpop.f32.mrb[0].mxu0
      %v543 = vadd.f32 %v269, %v542
      %544 = vmatprep.mubr.f32.mxu0 0.0
      %545 = vmatmul.mubr.f32.gmra.mrb[0].mxu0 %v321
      %v546 = vpop.f32.mrb[0].mxu0
      %v547 = vadd.f32 %v265, %v546
      %v548 = vpop.f32.mrb[0].mxu0
      %v549 = vadd.f32 %v269, %v548
      %550 = vmatprep.mubr.f32.mxu0 0.0
      %551 = vmatmul.mubr.f32.gmra.mrb[0].mxu0 %v324
      %v552 = vpop.f32.mrb[0].mxu0
      %v553 = vadd.f32 %v265, %v552
      %v554 = vpop.f32.mrb[0].mxu0
      %v555 = vadd.f32 %v269, %v554
      %556 = vmatprep.mubr.f32.mxu0 0.0
      %557 = vmatmul.mubr.f32.gmra.mrb[0].mxu0 %v327
      %v558 = vpop.f32.mrb[0].mxu0
      %v559 = vadd.f32 %v265, %v558
      %v560 = vpop.f32.mrb[0].mxu0
      %v561 = vadd.f32 %v269, %v560
      %562 = vmatprep.mubr.f32.mxu0 0.0
      %563 = vmatmul.mubr.f32.gmra.mrb[0].mxu0 %v330
      %v564 = vpop.f32.mrb[0].mxu0
      %v565 = vadd.f32 %v265, %v564
      %v566 = vpop.f32.mrb[0].mxu0
      %v567 = vadd.f32 %v269, %v566
      %568 = vmatprep.mubr.f32.mxu0 0.0
      %569 = vmatmul.mubr.f32.gmra.mrb[0].mxu0 %v333
      %v570 = vpop.f32.mrb[0].mxu0
      %v571 = vadd.f32 %v265, %v570
      %v572 = vpop.f32.mrb[0].mxu0
      %v573 = vadd.f32 %v269, %v572
      %574 = vmatprep.mubr.f32.mxu0 0.0
      %575 = vmatmul.mubr.f32.gmra.mrb[0].mxu0 %v336
      %v576 = vpop.f32.mrb[0].mxu0
      %v577 = vadd.f32 %v265, %v576
      %v578 = vpop.f32.mrb[0].mxu0
      %v579 = vadd.f32 %v269, %v578
      %580 = vmatprep.mubr.f32.mxu0 0.0
      %581 = vmatmul.mubr.f32.gmra.mrb[0].mxu0 %v339
      %v582 = vpop.f32.mrb[0].mxu0
      %v583 = vadd.f32 %v265, %v582
      %v584 = vpop.f32.mrb[0].mxu0
      %v585 = vadd.f32 %v269, %v584
      %586 = vmatprep.mubr.f32.mxu0 0.0
      %587 = vmatmul.mubr.f32.gmra.mrb[0].mxu0 %v342
      %v588 = vpop.f32.mrb[0].mxu0
      %v589 = vadd.f32 %v265, %v588
      %v590 = vpop.f32.mrb[0].mxu0
      %v591 = vadd.f32 %v269, %v590
      %592 = vmatprep.mubr.f32.mxu0 0.0
      %593 = vmatmul.mubr.f32.gmra.mrb[0].mxu0 %v345
      %v594 = vpop.f32.mrb[0].mxu0
      %v595 = vadd.f32 %v265, %v594
      %v596 = vpop.f32.mrb[0].mxu0
      %v597 = vadd.f32 %v269, %v596
      %598 = vmatprep.mubr.f32.mxu0 0.0
      %599 = vmatmul.mubr.f32.gmra.mrb[0].mxu0 %v348
      %v600 = vpop.f32.mrb[0].mxu0
      %v601 = vadd.f32 %v265, %v600
      %v602 = vpop.f32.mrb[0].mxu0
      %v603 = vadd.f32 %v269, %v602
      %604 = vmatprep.mubr.f32.mxu0 0.0
      %605 = vmatmul.mubr.f32.gmra.mrb[0].mxu0 %v351
      %v606 = vpop.f32.mrb[0].mxu0
      %v607 = vadd.f32 %v265, %v606
      %v608 = vpop.f32.mrb[0].mxu0
      %v609 = vadd.f32 %v269, %v608
      %610 = vmatprep.mubr.f32.mxu0 0.0
      %611 = vmatmul.mubr.f32.gmra.mrb[0].mxu0 %v354
      %v612 = vpop.f32.mrb[0].mxu0
      %v613 = vadd.f32 %v265, %v612
      %v614 = vpop.f32.mrb[0].mxu0
      %v615 = vadd.f32 %v269, %v614
      %616 = vmatprep.mubr.f32.mxu0 0.0
      %617 = vmatmul.mubr.f32.gmra.mrb[0].mxu0 %v357
      %v618 = vpop.f32.mrb[0].mxu0
      %v619 = vadd.f32 %v265, %v618
      %v620 = vpop.f32.mrb[0].mxu0
      %v621 = vadd.f32 %v269, %v620
      %622 = vmatprep.mubr.f32.mxu0 0.0
      %623 = vmatmul.mubr.f32.gmra.mrb[0].mxu0 %v360
      %v624 = vpop.f32.mrb[0].mxu0
      %v625 = vadd.f32 %v265, %v624
      %v626 = vpop.f32.mrb[0].mxu0
      %v627 = vadd.f32 %v269, %v626
      %628 = vmatprep.mubr.f32.mxu0 0.0
      %629 = vmatmul.mubr.f32.gmra.mrb[0].mxu0 %v363
      %v630 = vpop.f32.mrb[0].mxu0
      %v631 = vadd.f32 %v265, %v630
      %v632 = vpop.f32.mrb[0].mxu0
      %v633 = vadd.f32 %v269, %v632
      %634 = vmatprep.mubr.f32.mxu0 0.0
      %635 = vmatmul.mubr.f32.gmra.mrb[0].mxu0 %v366
      %v636 = vpop.f32.mrb[0].mxu0
      %v637 = vadd.f32 %v265, %v636
      %v638 = vpop.f32.mrb[0].mxu0
      %v639 = vadd.f32 %v269, %v638
      %640 = vmatprep.mubr.f32.mxu0 0.0
      %641 = vmatmul.mubr.f32.gmra.mrb[0].mxu0 %v369
      %v642 = vpop.f32.mrb[0].mxu0
      %v643 = vadd.f32 %v265, %v642
      %v644 = vpop.f32.mrb[0].mxu0
      %v645 = vadd.f32 %v269, %v644
      %646 = vmatprep.mubr.f32.mxu0 0.0
      %647 = vmatmul.mubr.f32.gmra.mrb[0].mxu0 %v372
      %v648 = vpop.f32.mrb[0].mxu0
      %v649 = vadd.f32 %v265, %v648
      %v650 = vpop.f32.mrb[0].mxu0
      %v651 = vadd.f32 %v269, %v650
      %652 = vmatprep.mubr.f32.mxu0 0.0
      %653 = vmatmul.mubr.f32.gmra.mrb[0].mxu0 %v375
      %v654 = vpop.f32.mrb[0].mxu0
      %v655 = vadd.f32 %v265, %v654
      %v656 = vpop.f32.mrb[0].mxu0
      %v657 = vadd.f32 %v269, %v656
      %658 = vmatprep.mubr.f32.mxu0 0.0
      %659 = vmatmul.mubr.f32.gmra.mrb[0].mxu0 %v378
      %v660 = vpop.f32.mrb[0].mxu0
      %v661 = vadd.f32 %v265, %v660
      %v662 = vpop.f32.mrb[0].mxu0
      %v663 = vadd.f32 %v269, %v662
      %664 = vmatprep.mubr.f32.mxu0 0.0
      %665 = vmatmul.mubr.f32.gmra.mrb[0].mxu0 %v381
      %v666 = vpop.f32.mrb[0].mxu0
      %v667 = vadd.f32 %v265, %v666
      %v668 = vpop.f32.mrb[0].mxu0
      %v669 = vadd.f32 %v269, %v668
      %670 = vmatprep.mubr.f32.mxu0 0.0
      %671 = vmatmul.mubr.f32.gmra.mrb[0].mxu0 %v384
      %v672 = vpop.f32.mrb[0].mxu0
      %v673 = vadd.f32 %v265, %v672
      %v674 = vpop.f32.mrb[0].mxu0
      %v675 = vadd.f32 %v269, %v674
      %676 = vdwg.mxu0
      %677 = vmatprep.subr.mxu0 0.0
      %678 = vmatpush1.msra.mxu0 %v250
      %679 = vmatprep.subr.mxu0 0.0
      %680 = vmatpush1.msra.mxu0 %v253
      %681 = vmatprep.subr.mxu0 0.0
      %682 = vmatpush1.msra.mxu0 %v256
      %683 = vmatprep.subr.mxu0 0.0
      %684 = vmatpush1.msra.mxu0 %v394
      %685 = vmatprep.subr.mxu0 0.0
      %686 = vmatpush1.msra.mxu0 0.0
      %687 = vmatprep.subr.mxu0 0.0
      %688 = vmatpush1.msra.mxu0 0.0
      %689 = vmatprep.subr.mxu0 0.0
      %690 = vmatpush1.msra.mxu0 0.0
      %691 = vmatprep.subr.mxu0 0.0
      %692 = vmatpush1.msra.mxu0 0.0
      %693 = vmatprep.subr.mxu0 0.0
      %694 = vmatpush1.msra.mxu0 0.0
      %695 = vmatprep.subr.mxu0 0.0
      %696 = vmatpush1.msra.mxu0 0.0
      %697 = vmatprep.subr.mxu0 0.0
      %698 = vmatpush1.msra.mxu0 0.0
      %699 = vmatprep.subr.mxu0 0.0
      %700 = vmatpush1.msra.mxu0 0.0
      %701 = vmatprep.subr.mxu0 0.0
      %702 = vmatpush1.msra.mxu0 0.0
      %703 = vmatprep.subr.mxu0 0.0
      %704 = vmatpush1.msra.mxu0 0.0
      %705 = vmatprep.subr.mxu0 0.0
      %706 = vmatpush1.msra.mxu0 0.0
      %707 = vmatprep.subr.mxu0 0.0
      %708 = vmatpush1.msra.mxu0 0.0
      %709 = vmatprep.subr.mxu0 0.0
      %710 = vmatpush1.msra.mxu0 0.0
      %711 = vmatprep.subr.mxu0 0.0
      %712 = vmatpush1.msra.mxu0 0.0
      %713 = vmatprep.subr.mxu0 0.0
      %714 = vmatpush1.msra.mxu0 0.0
      %715 = vmatprep.subr.mxu0 0.0
      %716 = vmatpush1.msra.mxu0 0.0
      %717 = vmatprep.subr.mxu0 0.0
      %718 = vmatpush1.msra.mxu0 0.0
      %719 = vmatprep.subr.mxu0 0.0
      %720 = vmatpush1.msra.mxu0 0.0
      %721 = vmatprep.subr.mxu0 0.0
      %722 = vmatpush1.msra.mxu0 0.0
      %723 = vmatprep.subr.mxu0 0.0
      %724 = vmatpush1.msra.mxu0 0.0
      %725 = vmatprep.subr.mxu0 0.0
      %726 = vmatpush1.msra.mxu0 0.0
      %727 = vmatprep.subr.mxu0 0.0
      %728 = vmatpush1.msra.mxu0 0.0
      %729 = vmatprep.subr.mxu0 0.0
      %730 = vmatpush1.msra.mxu0 0.0
      %731 = vmatprep.subr.mxu0 0.0
      %732 = vmatpush1.msra.mxu0 0.0
      %733 = vmatprep.subr.mxu0 0.0
      %734 = vmatpush1.msra.mxu0 0.0
      %735 = vmatprep.subr.mxu0 0.0
      %736 = vmatpush1.msra.mxu0 0.0
      %737 = vmatprep.subr.mxu0 0.0
      %738 = vmatpush1.msra.mxu0 0.0
      %739 = vmatprep.subr.mxu0 0.0
      %740 = vmatpush1.msra.mxu0 0.0
      %741 = vmatprep.mubr.f32.mxu0 0.0
      %742 = vmatmul.mubr.f32.gmra.mrb[0].mxu0 %v279
      %v743 = vpop.f32.mrb[0].mxu0
      %v744 = vadd.f32 %v273, %v743
      %v745 = vpop.f32.mrb[0].mxu0
      %746 = vmatprep.mubr.f32.mxu0 0.0
      %747 = vmatmul.mubr.f32.gmra.mrb[0].mxu0 %v282
      %v748 = vpop.f32.mrb[0].mxu0
      %v749 = vadd.f32 %v273, %v748
      %v750 = vpop.f32.mrb[0].mxu0
      %751 = vmatprep.mubr.f32.mxu0 0.0
      %752 = vmatmul.mubr.f32.gmra.mrb[0].mxu0 %v285
      %v753 = vpop.f32.mrb[0].mxu0
      %v754 = vadd.f32 %v273, %v753
      %v755 = vpop.f32.mrb[0].mxu0
      %756 = vmatprep.mubr.f32.mxu0 0.0
      %757 = vmatmul.mubr.f32.gmra.mrb[0].mxu0 %v288
      %v758 = vpop.f32.mrb[0].mxu0
      %v759 = vadd.f32 %v273, %v758
      %v760 = vpop.f32.mrb[0].mxu0
      %761 = vmatprep.mubr.f32.mxu0 0.0
      %762 = vmatmul.mubr.f32.gmra.mrb[0].mxu0 %v291
      %v763 = vpop.f32.mrb[0].mxu0
      %v764 = vadd.f32 %v273, %v763
      %v765 = vpop.f32.mrb[0].mxu0
      %766 = vmatprep.mubr.f32.mxu0 0.0
      %767 = vmatmul.mubr.f32.gmra.mrb[0].mxu0 %v294
      %v768 = vpop.f32.mrb[0].mxu0
      %v769 = vadd.f32 %v273, %v768
      %v770 = vpop.f32.mrb[0].mxu0
      %771 = vmatprep.mubr.f32.mxu0 0.0
      %772 = vmatmul.mubr.f32.gmra.mrb[0].mxu0 %v297
      %v773 = vpop.f32.mrb[0].mxu0
      %v774 = vadd.f32 %v273, %v773
      %v775 = vpop.f32.mrb[0].mxu0
      %776 = vmatprep.mubr.f32.mxu0 0.0
      %777 = vmatmul.mubr.f32.gmra.mrb[0].mxu0 %v300
      %v778 = vpop.f32.mrb[0].mxu0
      %v779 = vadd.f32 %v273, %v778
      %v780 = vpop.f32.mrb[0].mxu0
      %781 = vmatprep.mubr.f32.mxu0 0.0
      %782 = vmatmul.mubr.f32.gmra.mrb[0].mxu0 %v303
      %v783 = vpop.f32.mrb[0].mxu0
      %v784 = vadd.f32 %v273, %v783
      %v785 = vpop.f32.mrb[0].mxu0
      %786 = vmatprep.mubr.f32.mxu0 0.0
      %787 = vmatmul.mubr.f32.gmra.mrb[0].mxu0 %v306
      %v788 = vpop.f32.mrb[0].mxu0
      %v789 = vadd.f32 %v273, %v788
      %v790 = vpop.f32.mrb[0].mxu0
      %791 = vmatprep.mubr.f32.mxu0 0.0
      %792 = vmatmul.mubr.f32.gmra.mrb[0].mxu0 %v309
      %v793 = vpop.f32.mrb[0].mxu0
      %v794 = vadd.f32 %v273, %v793
      %v795 = vpop.f32.mrb[0].mxu0
      %796 = vmatprep.mubr.f32.mxu0 0.0
      %797 = vmatmul.mubr.f32.gmra.mrb[0].mxu0 %v312
      %v798 = vpop.f32.mrb[0].mxu0
      %v799 = vadd.f32 %v273, %v798
      %v800 = vpop.f32.mrb[0].mxu0
      %801 = vmatprep.mubr.f32.mxu0 0.0
      %802 = vmatmul.mubr.f32.gmra.mrb[0].mxu0 %v315
      %v803 = vpop.f32.mrb[0].mxu0
      %v804 = vadd.f32 %v273, %v803
      %v805 = vpop.f32.mrb[0].mxu0
      %806 = vmatprep.mubr.f32.mxu0 0.0
      %807 = vmatmul.mubr.f32.gmra.mrb[0].mxu0 %v318
      %v808 = vpop.f32.mrb[0].mxu0
      %v809 = vadd.f32 %v273, %v808
      %v810 = vpop.f32.mrb[0].mxu0
      %811 = vmatprep.mubr.f32.mxu0 0.0
      %812 = vmatmul.mubr.f32.gmra.mrb[0].mxu0 %v321
      %v813 = vpop.f32.mrb[0].mxu0
      %v814 = vadd.f32 %v273, %v813
      %v815 = vpop.f32.mrb[0].mxu0
      %816 = vmatprep.mubr.f32.mxu0 0.0
      %817 = vmatmul.mubr.f32.gmra.mrb[0].mxu0 %v324
      %v818 = vpop.f32.mrb[0].mxu0
      %v819 = vadd.f32 %v273, %v818
      %v820 = vpop.f32.mrb[0].mxu0
      %821 = vmatprep.mubr.f32.mxu0 0.0
      %822 = vmatmul.mubr.f32.gmra.mrb[0].mxu0 %v327
      %v823 = vpop.f32.mrb[0].mxu0
      %v824 = vadd.f32 %v273, %v823
      %v825 = vpop.f32.mrb[0].mxu0
      %826 = vmatprep.mubr.f32.mxu0 0.0
      %827 = vmatmul.mubr.f32.gmra.mrb[0].mxu0 %v330
      %v828 = vpop.f32.mrb[0].mxu0
      %v829 = vadd.f32 %v273, %v828
      %v830 = vpop.f32.mrb[0].mxu0
      %831 = vmatprep.mubr.f32.mxu0 0.0
      %832 = vmatmul.mubr.f32.gmra.mrb[0].mxu0 %v333
      %v833 = vpop.f32.mrb[0].mxu0
      %v834 = vadd.f32 %v273, %v833
      %v835 = vpop.f32.mrb[0].mxu0
      %836 = vmatprep.mubr.f32.mxu0 0.0
      %837 = vmatmul.mubr.f32.gmra.mrb[0].mxu0 %v336
      %v838 = vpop.f32.mrb[0].mxu0
      %v839 = vadd.f32 %v273, %v838
      %v840 = vpop.f32.mrb[0].mxu0
      %841 = vmatprep.mubr.f32.mxu0 0.0
      %842 = vmatmul.mubr.f32.gmra.mrb[0].mxu0 %v339
      %v843 = vpop.f32.mrb[0].mxu0
      %v844 = vadd.f32 %v273, %v843
      %v845 = vpop.f32.mrb[0].mxu0
      %846 = vmatprep.mubr.f32.mxu0 0.0
      %847 = vmatmul.mubr.f32.gmra.mrb[0].mxu0 %v342
      %v848 = vpop.f32.mrb[0].mxu0
      %v849 = vadd.f32 %v273, %v848
      %v850 = vpop.f32.mrb[0].mxu0
      %851 = vmatprep.mubr.f32.mxu0 0.0
      %852 = vmatmul.mubr.f32.gmra.mrb[0].mxu0 %v345
      %v853 = vpop.f32.mrb[0].mxu0
      %v854 = vadd.f32 %v273, %v853
      %v855 = vpop.f32.mrb[0].mxu0
      %856 = vmatprep.mubr.f32.mxu0 0.0
      %857 = vmatmul.mubr.f32.gmra.mrb[0].mxu0 %v348
      %v858 = vpop.f32.mrb[0].mxu0
      %v859 = vadd.f32 %v273, %v858
      %v860 = vpop.f32.mrb[0].mxu0
      %861 = vmatprep.mubr.f32.mxu0 0.0
      %862 = vmatmul.mubr.f32.gmra.mrb[0].mxu0 %v351
      %v863 = vpop.f32.mrb[0].mxu0
      %v864 = vadd.f32 %v273, %v863
      %v865 = vpop.f32.mrb[0].mxu0
      %866 = vmatprep.mubr.f32.mxu0 0.0
      %867 = vmatmul.mubr.f32.gmra.mrb[0].mxu0 %v354
      %v868 = vpop.f32.mrb[0].mxu0
      %v869 = vadd.f32 %v273, %v868
      %v870 = vpop.f32.mrb[0].mxu0
      %871 = vmatprep.mubr.f32.mxu0 0.0
      %872 = vmatmul.mubr.f32.gmra.mrb[0].mxu0 %v357
      %v873 = vpop.f32.mrb[0].mxu0
      %v874 = vadd.f32 %v273, %v873
      %v875 = vpop.f32.mrb[0].mxu0
      %876 = vmatprep.mubr.f32.mxu0 0.0
      %877 = vmatmul.mubr.f32.gmra.mrb[0].mxu0 %v360
      %v878 = vpop.f32.mrb[0].mxu0
      %v879 = vadd.f32 %v273, %v878
      %v880 = vpop.f32.mrb[0].mxu0
      %881 = vmatprep.mubr.f32.mxu0 0.0
      %882 = vmatmul.mubr.f32.gmra.mrb[0].mxu0 %v363
      %v883 = vpop.f32.mrb[0].mxu0
      %v884 = vadd.f32 %v273, %v883
      %v885 = vpop.f32.mrb[0].mxu0
      %886 = vmatprep.mubr.f32.mxu0 0.0
      %887 = vmatmul.mubr.f32.gmra.mrb[0].mxu0 %v366
      %v888 = vpop.f32.mrb[0].mxu0
      %v889 = vadd.f32 %v273, %v888
      %v890 = vpop.f32.mrb[0].mxu0
      %891 = vmatprep.mubr.f32.mxu0 0.0
      %892 = vmatmul.mubr.f32.gmra.mrb[0].mxu0 %v369
      %v893 = vpop.f32.mrb[0].mxu0
      %v894 = vadd.f32 %v273, %v893
      %v895 = vpop.f32.mrb[0].mxu0
      %896 = vmatprep.mubr.f32.mxu0 0.0
      %897 = vmatmul.mubr.f32.gmra.mrb[0].mxu0 %v372
      %v898 = vpop.f32.mrb[0].mxu0
      %v899 = vadd.f32 %v273, %v898
      %v900 = vpop.f32.mrb[0].mxu0
      %901 = vmatprep.mubr.f32.mxu0 0.0
      %902 = vmatmul.mubr.f32.gmra.mrb[0].mxu0 %v375
      %v903 = vpop.f32.mrb[0].mxu0
      %v904 = vadd.f32 %v273, %v903
      %v905 = vpop.f32.mrb[0].mxu0
      %906 = vmatprep.mubr.f32.mxu0 0.0
      %907 = vmatmul.mubr.f32.gmra.mrb[0].mxu0 %v378
      %v908 = vpop.f32.mrb[0].mxu0
      %v909 = vadd.f32 %v273, %v908
      %v910 = vpop.f32.mrb[0].mxu0
      %911 = vmatprep.mubr.f32.mxu0 0.0
      %912 = vmatmul.mubr.f32.gmra.mrb[0].mxu0 %v381
      %v913 = vpop.f32.mrb[0].mxu0
      %v914 = vadd.f32 %v273, %v913
      %v915 = vpop.f32.mrb[0].mxu0
      %916 = vmatprep.mubr.f32.mxu0 0.0
      %917 = vmatmul.mubr.f32.gmra.mrb[0].mxu0 %v384
      %v918 = vpop.f32.mrb[0].mxu0
      %v919 = vadd.f32 %v273, %v918
      %v920 = vpop.f32.mrb[0].mxu0
      %921 = vdwg.mxu0
      %v922 = vmax.f32 %v463, 0.0
      %v923 = vmax.f32 %v465, 0.0
      %v924 = vmax.f32 %v744, 0.0
      %v925 = vmax.f32 %v469, 0.0
      %v926 = vmax.f32 %v471, 0.0
      %v927 = vmax.f32 %v749, 0.0
      %v928 = vmax.f32 %v475, 0.0
      %v929 = vmax.f32 %v477, 0.0
      %v930 = vmax.f32 %v754, 0.0
      %v931 = vmax.f32 %v481, 0.0
      %v932 = vmax.f32 %v483, 0.0
      %v933 = vmax.f32 %v759, 0.0
      %v934 = vmax.f32 %v487, 0.0
      %v935 = vmax.f32 %v489, 0.0
      %v936 = vmax.f32 %v764, 0.0
      %v937 = vmax.f32 %v493, 0.0
      %v938 = vmax.f32 %v495, 0.0
      %v939 = vmax.f32 %v769, 0.0
      %v940 = vmax.f32 %v499, 0.0
      %v941 = vmax.f32 %v501, 0.0
      %v942 = vmax.f32 %v774, 0.0
      %v943 = vmax.f32 %v505, 0.0
      %v944 = vmax.f32 %v507, 0.0
      %v945 = vmax.f32 %v779, 0.0
      %v946 = vmax.f32 %v511, 0.0
      %v947 = vmax.f32 %v513, 0.0
      %v948 = vmax.f32 %v784, 0.0
      %v949 = vmax.f32 %v517, 0.0
      %v950 = vmax.f32 %v519, 0.0
      %v951 = vmax.f32 %v789, 0.0
      %v952 = vmax.f32 %v523, 0.0
      %v953 = vmax.f32 %v525, 0.0
      %v954 = vmax.f32 %v794, 0.0
      %v955 = vmax.f32 %v529, 0.0
      %v956 = vmax.f32 %v531, 0.0
      %v957 = vmax.f32 %v799, 0.0
      %v958 = vmax.f32 %v535, 0.0
      %v959 = vmax.f32 %v537, 0.0
      %v960 = vmax.f32 %v804, 0.0
      %v961 = vmax.f32 %v541, 0.0
      %v962 = vmax.f32 %v543, 0.0
      %v963 = vmax.f32 %v809, 0.0
      %v964 = vmax.f32 %v547, 0.0
      %v965 = vmax.f32 %v549, 0.0
      %v966 = vmax.f32 %v814, 0.0
      %v967 = vmax.f32 %v553, 0.0
      %v968 = vmax.f32 %v555, 0.0
      %v969 = vmax.f32 %v819, 0.0
      %v970 = vmax.f32 %v559, 0.0
      %v971 = vmax.f32 %v561, 0.0
      %v972 = vmax.f32 %v824, 0.0
      %v973 = vmax.f32 %v565, 0.0
      %v974 = vmax.f32 %v567, 0.0
      %v975 = vmax.f32 %v829, 0.0
      %v976 = vmax.f32 %v571, 0.0
      %v977 = vmax.f32 %v573, 0.0
      %v978 = vmax.f32 %v834, 0.0
      %v979 = vmax.f32 %v577, 0.0
      %v980 = vmax.f32 %v579, 0.0
      %v981 = vmax.f32 %v839, 0.0
      %v982 = vmax.f32 %v583, 0.0
      %v983 = vmax.f32 %v585, 0.0
      %v984 = vmax.f32 %v844, 0.0
      %v985 = vmax.f32 %v589, 0.0
      %v986 = vmax.f32 %v591, 0.0
      %v987 = vmax.f32 %v849, 0.0
      %v988 = vmax.f32 %v595, 0.0
      %v989 = vmax.f32 %v597, 0.0
      %v990 = vmax.f32 %v854, 0.0
      %v991 = vmax.f32 %v601, 0.0
      %v992 = vmax.f32 %v603, 0.0
      %v993 = vmax.f32 %v859, 0.0
      %v994 = vmax.f32 %v607, 0.0
      %v995 = vmax.f32 %v609, 0.0
      %v996 = vmax.f32 %v864, 0.0
      %v997 = vmax.f32 %v613, 0.0
      %v998 = vmax.f32 %v615, 0.0
      %v999 = vmax.f32 %v869, 0.0
      %v1000 = vmax.f32 %v619, 0.0
      %v1001 = vmax.f32 %v621, 0.0
      %v1002 = vmax.f32 %v874, 0.0
      %v1003 = vmax.f32 %v625, 0.0
      %v1004 = vmax.f32 %v627, 0.0
      %v1005 = vmax.f32 %v879, 0.0
      %v1006 = vmax.f32 %v631, 0.0
      %v1007 = vmax.f32 %v633, 0.0
      %v1008 = vmax.f32 %v884, 0.0
      %v1009 = vmax.f32 %v637, 0.0
      %v1010 = vmax.f32 %v639, 0.0
      %v1011 = vmax.f32 %v889, 0.0
      %v1012 = vmax.f32 %v643, 0.0
      %v1013 = vmax.f32 %v645, 0.0
      %v1014 = vmax.f32 %v894, 0.0
      %v1015 = vmax.f32 %v649, 0.0
      %v1016 = vmax.f32 %v651, 0.0
      %v1017 = vmax.f32 %v899, 0.0
      %v1018 = vmax.f32 %v655, 0.0
      %v1019 = vmax.f32 %v657, 0.0
      %v1020 = vmax.f32 %v904, 0.0
      %v1021 = vmax.f32 %v661, 0.0
      %v1022 = vmax.f32 %v663, 0.0
      %v1023 = vmax.f32 %v909, 0.0
      %v1024 = vmax.f32 %v667, 0.0
      %v1025 = vmax.f32 %v669, 0.0
      %v1026 = vmax.f32 %v914, 0.0
      %v1027 = vmax.f32 %v673, 0.0
      %v1028 = vmax.f32 %v675, 0.0
      %v1029 = vmax.f32 %v919, 0.0
      %v1030 = vld [vmem:[%s3] sm:$0xff]
      %v1031 = vld [vmem:[%s3 + $0x8] sm:$0xff]
      %v1032 = vld [vmem:[%s3 + $0x10] sm:$0xff]
      %v1033 = vld [vmem:[%s3 + $0x18] sm:$0xff]
      %v1034 = vld [vmem:[%s3 + $0x20] sm:$0xff]
      %v1035 = vld [vmem:[%s3 + $0x28] sm:$0xff]
      %v1036 = vld [vmem:[%s3 + $0x30] sm:$0xff]
      %v1037 = vld [vmem:[%s3 + $0x38] sm:$0xff]
      %v1038 = vld [vmem:[%s3 + $0x40] sm:$0xff]
      %v1039 = vld [vmem:[%s3 + $0x48] sm:$0xff]
      %v1040 = vld [vmem:[%s3 + $0x50] sm:$0xff]
      %v1041 = vld [vmem:[%s3 + $0x58] sm:$0xff]
      %v1042 = vld [vmem:[%s3 + $0x60] sm:$0xff]
      %v1043 = vld [vmem:[%s3 + $0x68] sm:$0xff]
      %v1044 = vld [vmem:[%s3 + $0x70] sm:$0xff]
      %v1045 = vld [vmem:[%s3 + $0x78] sm:$0xff]
      %v1046 = vld [vmem:[%s3 + $0x80] sm:$0xff]
      %v1047 = vld [vmem:[%s3 + $0x88] sm:$0xff]
      %v1048 = vld [vmem:[%s3 + $0x90] sm:$0xff]
      %v1049 = vld [vmem:[%s3 + $0x98] sm:$0xff]
      %v1050 = vld [vmem:[%s3 + $0xa0] sm:$0xff]
      %v1051 = vld [vmem:[%s3 + $0xa8] sm:$0xff]
      %v1052 = vld [vmem:[%s3 + $0xb0] sm:$0xff]
      %v1053 = vld [vmem:[%s3 + $0xb8] sm:$0xff]
      %v1054 = vld [vmem:[%s3 + $0xc0] sm:$0xff]
      %v1055 = vld [vmem:[%s3 + $0xc8] sm:$0xff]
      %v1056 = vld [vmem:[%s3 + $0xd0] sm:$0xff]
      %v1057 = vld [vmem:[%s3 + $0xd8] sm:$0xff]
      %v1058 = vld [vmem:[%s3 + $0xe0] sm:$0xff]
      %v1059 = vld [vmem:[%s3 + $0xe8] sm:$0xff]
      %v1060 = vld [vmem:[%s3 + $0xf0] sm:$0xff]
      %v1061 = vld [vmem:[%s3 + $0xf8] sm:$0xff]
      %v1062 = vld [vmem:[%s3 + $0x100] sm:$0xff]
      %v1063 = vld [vmem:[%s3 + $0x108] sm:$0xff]
      %v1064 = vld [vmem:[%s3 + $0x110] sm:$0xff]
      %v1065 = vld [vmem:[%s3 + $0x118] sm:$0xff]
      %v1066 = vld [vmem:[%s4] sm:$0x1]
      %v1068 = vlaneseq
      %v1069 = vshrl.u32 %v1068, 7
      %v1070 = vsub.s32 0, %v1069
      %v1071 = vrot.slane %v1066, %v1070
      %vm1073 = vcmask 261120
      %v1075 = vsel %vm1073, %v924, 0
      %v1078 = vsel %vm1073, %v927, 0
      %v1081 = vsel %vm1073, %v930, 0
      %v1084 = vsel %vm1073, %v933, 0
      %v1087 = vsel %vm1073, %v936, 0
      %v1090 = vsel %vm1073, %v939, 0
      %v1093 = vsel %vm1073, %v942, 0
      %v1096 = vsel %vm1073, %v945, 0
      %v1099 = vsel %vm1073, %v948, 0
      %v1102 = vsel %vm1073, %v951, 0
      %v1105 = vsel %vm1073, %v954, 0
      %v1108 = vsel %vm1073, %v957, 0
      %v1111 = vsel %vm1073, %v960, 0
      %v1114 = vsel %vm1073, %v963, 0
      %v1117 = vsel %vm1073, %v966, 0
      %v1120 = vsel %vm1073, %v969, 0
      %v1123 = vsel %vm1073, %v972, 0
      %v1126 = vsel %vm1073, %v975, 0
      %v1129 = vsel %vm1073, %v978, 0
      %v1132 = vsel %vm1073, %v981, 0
      %v1135 = vsel %vm1073, %v984, 0
      %v1138 = vsel %vm1073, %v987, 0
      %v1141 = vsel %vm1073, %v990, 0
      %v1144 = vsel %vm1073, %v993, 0
      %v1147 = vsel %vm1073, %v996, 0
      %v1150 = vsel %vm1073, %v999, 0
      %v1153 = vsel %vm1073, %v1002, 0
      %v1156 = vsel %vm1073, %v1005, 0
      %v1159 = vsel %vm1073, %v1008, 0
      %v1162 = vsel %vm1073, %v1011, 0
      %v1165 = vsel %vm1073, %v1014, 0
      %v1168 = vsel %vm1073, %v1017, 0
      %v1171 = vsel %vm1073, %v1020, 0
      %v1174 = vsel %vm1073, %v1023, 0
      %v1177 = vsel %vm1073, %v1026, 0
      %v1180 = vsel %vm1073, %v1029, 0
      %1182 = vmatprep.subr.mxu0 0.0
      %1183 = vmatpush1.msra.mxu0 %v1030
      %1184 = vmatprep.subr.mxu0 0.0
      %1185 = vmatpush1.msra.mxu0 %v1031
      %1186 = vmatprep.subr.mxu0 0.0
      %1187 = vmatpush1.msra.mxu0 %v1032
      %1188 = vmatprep.subr.mxu0 0.0
      %1189 = vmatpush1.msra.mxu0 %v1033
      %1190 = vmatprep.subr.mxu0 0.0
      %1191 = vmatpush1.msra.mxu0 %v1034
      %1192 = vmatprep.subr.mxu0 0.0
      %1193 = vmatpush1.msra.mxu0 %v1035
      %1194 = vmatprep.subr.mxu0 0.0
      %1195 = vmatpush1.msra.mxu0 %v1036
      %1196 = vmatprep.subr.mxu0 0.0
      %1197 = vmatpush1.msra.mxu0 %v1037
      %1198 = vmatprep.subr.mxu0 0.0
      %1199 = vmatpush1.msra.mxu0 %v1038
      %1200 = vmatprep.subr.mxu0 0.0
      %1201 = vmatpush1.msra.mxu0 %v1039
      %1202 = vmatprep.subr.mxu0 0.0
      %1203 = vmatpush1.msra.mxu0 %v1040
      %1204 = vmatprep.subr.mxu0 0.0
      %1205 = vmatpush1.msra.mxu0 %v1041
      %1206 = vmatprep.subr.mxu0 0.0
      %1207 = vmatpush1.msra.mxu0 %v1042
      %1208 = vmatprep.subr.mxu0 0.0
      %1209 = vmatpush1.msra.mxu0 %v1043
      %1210 = vmatprep.subr.mxu0 0.0
      %1211 = vmatpush1.msra.mxu0 %v1044
      %1212 = vmatprep.subr.mxu0 0.0
      %1213 = vmatpush1.msra.mxu0 %v1045
      %1214 = vmatprep.subr.mxu0 0.0
      %1215 = vmatpush1.msra.mxu0 %v1046
      %1216 = vmatprep.subr.mxu0 0.0
      %1217 = vmatpush1.msra.mxu0 %v1047
      %1218 = vmatprep.subr.mxu0 0.0
      %1219 = vmatpush1.msra.mxu0 %v1048
      %1220 = vmatprep.subr.mxu0 0.0
      %1221 = vmatpush1.msra.mxu0 %v1049
      %1222 = vmatprep.subr.mxu0 0.0
      %1223 = vmatpush1.msra.mxu0 %v1050
      %1224 = vmatprep.subr.mxu0 0.0
      %1225 = vmatpush1.msra.mxu0 %v1051
      %1226 = vmatprep.subr.mxu0 0.0
      %1227 = vmatpush1.msra.mxu0 %v1052
      %1228 = vmatprep.subr.mxu0 0.0
      %1229 = vmatpush1.msra.mxu0 %v1053
      %1230 = vmatprep.subr.mxu0 0.0
      %1231 = vmatpush1.msra.mxu0 %v1054
      %1232 = vmatprep.subr.mxu0 0.0
      %1233 = vmatpush1.msra.mxu0 %v1055
      %1234 = vmatprep.subr.mxu0 0.0
      %1235 = vmatpush1.msra.mxu0 %v1056
      %1236 = vmatprep.subr.mxu0 0.0
      %1237 = vmatpush1.msra.mxu0 %v1057
      %1238 = vmatprep.subr.mxu0 0.0
      %1239 = vmatpush1.msra.mxu0 %v1058
      %1240 = vmatprep.subr.mxu0 0.0
      %1241 = vmatpush1.msra.mxu0 %v1059
      %1242 = vmatprep.subr.mxu0 0.0
      %1243 = vmatpush1.msra.mxu0 %v1060
      %1244 = vmatprep.subr.mxu0 0.0
      %1245 = vmatpush1.msra.mxu0 %v1061
      %1246 = vmatprep.mubr.f32.mxu0 %v923
      %1247 = vmatmul.mubr.f32.gmra.mrb[0].mxu0 %v922
      %v1248 = vpop.f32.mrb[0].mxu0
      %v1249 = vadd.f32 %v1071, %v1248
      %v1250 = vpop.f32.mrb[0].mxu0
      %1251 = vmatprep.mubr.f32.mxu0 %v926
      %1252 = vmatmul.mubr.f32.gmra.mrb[0].mxu0 %v925
      %v1253 = vpop.f32.mrb[0].mxu0
      %v1254 = vadd.f32 %v1071, %v1253
      %v1255 = vpop.f32.mrb[0].mxu0
      %1256 = vmatprep.mubr.f32.mxu0 %v929
      %1257 = vmatmul.mubr.f32.gmra.mrb[0].mxu0 %v928
      %v1258 = vpop.f32.mrb[0].mxu0
      %v1259 = vadd.f32 %v1071, %v1258
      %v1260 = vpop.f32.mrb[0].mxu0
      %1261 = vmatprep.mubr.f32.mxu0 %v932
      %1262 = vmatmul.mubr.f32.gmra.mrb[0].mxu0 %v931
      %v1263 = vpop.f32.mrb[0].mxu0
      %v1264 = vadd.f32 %v1071, %v1263
      %v1265 = vpop.f32.mrb[0].mxu0
      %1266 = vmatprep.mubr.f32.mxu0 %v935
      %1267 = vmatmul.mubr.f32.gmra.mrb[0].mxu0 %v934
      %v1268 = vpop.f32.mrb[0].mxu0
      %v1269 = vadd.f32 %v1071, %v1268
      %v1270 = vpop.f32.mrb[0].mxu0
      %1271 = vmatprep.mubr.f32.mxu0 %v938
      %1272 = vmatmul.mubr.f32.gmra.mrb[0].mxu0 %v937
      %v1273 = vpop.f32.mrb[0].mxu0
      %v1274 = vadd.f32 %v1071, %v1273
      %v1275 = vpop.f32.mrb[0].mxu0
      %1276 = vmatprep.mubr.f32.mxu0 %v941
      %1277 = vmatmul.mubr.f32.gmra.mrb[0].mxu0 %v940
      %v1278 = vpop.f32.mrb[0].mxu0
      %v1279 = vadd.f32 %v1071, %v1278
      %v1280 = vpop.f32.mrb[0].mxu0
      %1281 = vmatprep.mubr.f32.mxu0 %v944
      %1282 = vmatmul.mubr.f32.gmra.mrb[0].mxu0 %v943
      %v1283 = vpop.f32.mrb[0].mxu0
      %v1284 = vadd.f32 %v1071, %v1283
      %v1285 = vpop.f32.mrb[0].mxu0
      %1286 = vmatprep.mubr.f32.mxu0 %v947
      %1287 = vmatmul.mubr.f32.gmra.mrb[0].mxu0 %v946
      %v1288 = vpop.f32.mrb[0].mxu0
      %v1289 = vadd.f32 %v1071, %v1288
      %v1290 = vpop.f32.mrb[0].mxu0
      %1291 = vmatprep.mubr.f32.mxu0 %v950
      %1292 = vmatmul.mubr.f32.gmra.mrb[0].mxu0 %v949
      %v1293 = vpop.f32.mrb[0].mxu0
      %v1294 = vadd.f32 %v1071, %v1293
      %v1295 = vpop.f32.mrb[0].mxu0
      %1296 = vmatprep.mubr.f32.mxu0 %v953
      %1297 = vmatmul.mubr.f32.gmra.mrb[0].mxu0 %v952
      %v1298 = vpop.f32.mrb[0].mxu0
      %v1299 = vadd.f32 %v1071, %v1298
      %v1300 = vpop.f32.mrb[0].mxu0
      %1301 = vmatprep.mubr.f32.mxu0 %v956
      %1302 = vmatmul.mubr.f32.gmra.mrb[0].mxu0 %v955
      %v1303 = vpop.f32.mrb[0].mxu0
      %v1304 = vadd.f32 %v1071, %v1303
      %v1305 = vpop.f32.mrb[0].mxu0
      %1306 = vmatprep.mubr.f32.mxu0 %v959
      %1307 = vmatmul.mubr.f32.gmra.mrb[0].mxu0 %v958
      %v1308 = vpop.f32.mrb[0].mxu0
      %v1309 = vadd.f32 %v1071, %v1308
      %v1310 = vpop.f32.mrb[0].mxu0
      %1311 = vmatprep.mubr.f32.mxu0 %v962
      %1312 = vmatmul.mubr.f32.gmra.mrb[0].mxu0 %v961
      %v1313 = vpop.f32.mrb[0].mxu0
      %v1314 = vadd.f32 %v1071, %v1313
      %v1315 = vpop.f32.mrb[0].mxu0
      %1316 = vmatprep.mubr.f32.mxu0 %v965
      %1317 = vmatmul.mubr.f32.gmra.mrb[0].mxu0 %v964
      %v1318 = vpop.f32.mrb[0].mxu0
      %v1319 = vadd.f32 %v1071, %v1318
      %v1320 = vpop.f32.mrb[0].mxu0
      %1321 = vmatprep.mubr.f32.mxu0 %v968
      %1322 = vmatmul.mubr.f32.gmra.mrb[0].mxu0 %v967
      %v1323 = vpop.f32.mrb[0].mxu0
      %v1324 = vadd.f32 %v1071, %v1323
      %v1325 = vpop.f32.mrb[0].mxu0
      %1326 = vmatprep.mubr.f32.mxu0 %v971
      %1327 = vmatmul.mubr.f32.gmra.mrb[0].mxu0 %v970
      %v1328 = vpop.f32.mrb[0].mxu0
      %v1329 = vadd.f32 %v1071, %v1328
      %v1330 = vpop.f32.mrb[0].mxu0
      %1331 = vmatprep.mubr.f32.mxu0 %v974
      %1332 = vmatmul.mubr.f32.gmra.mrb[0].mxu0 %v973
      %v1333 = vpop.f32.mrb[0].mxu0
      %v1334 = vadd.f32 %v1071, %v1333
      %v1335 = vpop.f32.mrb[0].mxu0
      %1336 = vmatprep.mubr.f32.mxu0 %v977
      %1337 = vmatmul.mubr.f32.gmra.mrb[0].mxu0 %v976
      %v1338 = vpop.f32.mrb[0].mxu0
      %v1339 = vadd.f32 %v1071, %v1338
      %v1340 = vpop.f32.mrb[0].mxu0
      %1341 = vmatprep.mubr.f32.mxu0 %v980
      %1342 = vmatmul.mubr.f32.gmra.mrb[0].mxu0 %v979
      %v1343 = vpop.f32.mrb[0].mxu0
      %v1344 = vadd.f32 %v1071, %v1343
      %v1345 = vpop.f32.mrb[0].mxu0
      %1346 = vmatprep.mubr.f32.mxu0 %v983
      %1347 = vmatmul.mubr.f32.gmra.mrb[0].mxu0 %v982
      %v1348 = vpop.f32.mrb[0].mxu0
      %v1349 = vadd.f32 %v1071, %v1348
      %v1350 = vpop.f32.mrb[0].mxu0
      %1351 = vmatprep.mubr.f32.mxu0 %v986
      %1352 = vmatmul.mubr.f32.gmra.mrb[0].mxu0 %v985
      %v1353 = vpop.f32.mrb[0].mxu0
      %v1354 = vadd.f32 %v1071, %v1353
      %v1355 = vpop.f32.mrb[0].mxu0
      %1356 = vmatprep.mubr.f32.mxu0 %v989
      %1357 = vmatmul.mubr.f32.gmra.mrb[0].mxu0 %v988
      %v1358 = vpop.f32.mrb[0].mxu0
      %v1359 = vadd.f32 %v1071, %v1358
      %v1360 = vpop.f32.mrb[0].mxu0
      %1361 = vmatprep.mubr.f32.mxu0 %v992
      %1362 = vmatmul.mubr.f32.gmra.mrb[0].mxu0 %v991
      %v1363 = vpop.f32.mrb[0].mxu0
      %v1364 = vadd.f32 %v1071, %v1363
      %v1365 = vpop.f32.mrb[0].mxu0
      %1366 = vmatprep.mubr.f32.mxu0 %v995
      %1367 = vmatmul.mubr.f32.gmra.mrb[0].mxu0 %v994
      %v1368 = vpop.f32.mrb[0].mxu0
      %v1369 = vadd.f32 %v1071, %v1368
      %v1370 = vpop.f32.mrb[0].mxu0
      %1371 = vmatprep.mubr.f32.mxu0 %v998
      %1372 = vmatmul.mubr.f32.gmra.mrb[0].mxu0 %v997
      %v1373 = vpop.f32.mrb[0].mxu0
      %v1374 = vadd.f32 %v1071, %v1373
      %v1375 = vpop.f32.mrb[0].mxu0
      %1376 = vmatprep.mubr.f32.mxu0 %v1001
      %1377 = vmatmul.mubr.f32.gmra.mrb[0].mxu0 %v1000
      %v1378 = vpop.f32.mrb[0].mxu0
      %v1379 = vadd.f32 %v1071, %v1378
      %v1380 = vpop.f32.mrb[0].mxu0
      %1381 = vmatprep.mubr.f32.mxu0 %v1004
      %1382 = vmatmul.mubr.f32.gmra.mrb[0].mxu0 %v1003
      %v1383 = vpop.f32.mrb[0].mxu0
      %v1384 = vadd.f32 %v1071, %v1383
      %v1385 = vpop.f32.mrb[0].mxu0
      %1386 = vmatprep.mubr.f32.mxu0 %v1007
      %1387 = vmatmul.mubr.f32.gmra.mrb[0].mxu0 %v1006
      %v1388 = vpop.f32.mrb[0].mxu0
      %v1389 = vadd.f32 %v1071, %v1388
      %v1390 = vpop.f32.mrb[0].mxu0
      %1391 = vmatprep.mubr.f32.mxu0 %v1010
      %1392 = vmatmul.mubr.f32.gmra.mrb[0].mxu0 %v1009
      %v1393 = vpop.f32.mrb[0].mxu0
      %v1394 = vadd.f32 %v1071, %v1393
      %v1395 = vpop.f32.mrb[0].mxu0
      %1396 = vmatprep.mubr.f32.mxu0 %v1013
      %1397 = vmatmul.mubr.f32.gmra.mrb[0].mxu0 %v1012
      %v1398 = vpop.f32.mrb[0].mxu0
      %v1399 = vadd.f32 %v1071, %v1398
      %v1400 = vpop.f32.mrb[0].mxu0
      %1401 = vmatprep.mubr.f32.mxu0 %v1016
      %1402 = vmatmul.mubr.f32.gmra.mrb[0].mxu0 %v1015
      %v1403 = vpop.f32.mrb[0].mxu0
      %v1404 = vadd.f32 %v1071, %v1403
      %v1405 = vpop.f32.mrb[0].mxu0
      %1406 = vmatprep.mubr.f32.mxu0 %v1019
      %1407 = vmatmul.mubr.f32.gmra.mrb[0].mxu0 %v1018
      %v1408 = vpop.f32.mrb[0].mxu0
      %v1409 = vadd.f32 %v1071, %v1408
      %v1410 = vpop.f32.mrb[0].mxu0
      %1411 = vmatprep.mubr.f32.mxu0 %v1022
      %1412 = vmatmul.mubr.f32.gmra.mrb[0].mxu0 %v1021
      %v1413 = vpop.f32.mrb[0].mxu0
      %v1414 = vadd.f32 %v1071, %v1413
      %v1415 = vpop.f32.mrb[0].mxu0
      %1416 = vmatprep.mubr.f32.mxu0 %v1025
      %1417 = vmatmul.mubr.f32.gmra.mrb[0].mxu0 %v1024
      %v1418 = vpop.f32.mrb[0].mxu0
      %v1419 = vadd.f32 %v1071, %v1418
      %v1420 = vpop.f32.mrb[0].mxu0
      %1421 = vmatprep.mubr.f32.mxu0 %v1028
      %1422 = vmatmul.mubr.f32.gmra.mrb[0].mxu0 %v1027
      %v1423 = vpop.f32.mrb[0].mxu0
      %v1424 = vadd.f32 %v1071, %v1423
      %v1425 = vpop.f32.mrb[0].mxu0
      %1426 = vdwg.mxu0
      %1427 = vmatprep.subr.mxu0 0.0
      %1428 = vmatpush1.msra.mxu0 %v1062
      %1429 = vmatprep.subr.mxu0 0.0
      %1430 = vmatpush1.msra.mxu0 %v1063
      %1431 = vmatprep.subr.mxu0 0.0
      %1432 = vmatpush1.msra.mxu0 %v1064
      %1433 = vmatprep.subr.mxu0 0.0
      %1434 = vmatpush1.msra.mxu0 %v1065
      %1435 = vmatprep.subr.mxu0 0.0
      %1436 = vmatpush1.msra.mxu0 0.0
      %1437 = vmatprep.subr.mxu0 0.0
      %1438 = vmatpush1.msra.mxu0 0.0
      %1439 = vmatprep.subr.mxu0 0.0
      %1440 = vmatpush1.msra.mxu0 0.0
      %1441 = vmatprep.subr.mxu0 0.0
      %1442 = vmatpush1.msra.mxu0 0.0
      %1443 = vmatprep.subr.mxu0 0.0
      %1444 = vmatpush1.msra.mxu0 0.0
      %1445 = vmatprep.subr.mxu0 0.0
      %1446 = vmatpush1.msra.mxu0 0.0
      %1447 = vmatprep.subr.mxu0 0.0
      %1448 = vmatpush1.msra.mxu0 0.0
      %1449 = vmatprep.subr.mxu0 0.0
      %1450 = vmatpush1.msra.mxu0 0.0
      %1451 = vmatprep.subr.mxu0 0.0
      %1452 = vmatpush1.msra.mxu0 0.0
      %1453 = vmatprep.subr.mxu0 0.0
      %1454 = vmatpush1.msra.mxu0 0.0
      %1455 = vmatprep.subr.mxu0 0.0
      %1456 = vmatpush1.msra.mxu0 0.0
      %1457 = vmatprep.subr.mxu0 0.0
      %1458 = vmatpush1.msra.mxu0 0.0
      %1459 = vmatprep.subr.mxu0 0.0
      %1460 = vmatpush1.msra.mxu0 0.0
      %1461 = vmatprep.subr.mxu0 0.0
      %1462 = vmatpush1.msra.mxu0 0.0
      %1463 = vmatprep.subr.mxu0 0.0
      %1464 = vmatpush1.msra.mxu0 0.0
      %1465 = vmatprep.subr.mxu0 0.0
      %1466 = vmatpush1.msra.mxu0 0.0
      %1467 = vmatprep.subr.mxu0 0.0
      %1468 = vmatpush1.msra.mxu0 0.0
      %1469 = vmatprep.subr.mxu0 0.0
      %1470 = vmatpush1.msra.mxu0 0.0
      %1471 = vmatprep.subr.mxu0 0.0
      %1472 = vmatpush1.msra.mxu0 0.0
      %1473 = vmatprep.subr.mxu0 0.0
      %1474 = vmatpush1.msra.mxu0 0.0
      %1475 = vmatprep.subr.mxu0 0.0
      %1476 = vmatpush1.msra.mxu0 0.0
      %1477 = vmatprep.subr.mxu0 0.0
      %1478 = vmatpush1.msra.mxu0 0.0
      %1479 = vmatprep.subr.mxu0 0.0
      %1480 = vmatpush1.msra.mxu0 0.0
      %1481 = vmatprep.subr.mxu0 0.0
      %1482 = vmatpush1.msra.mxu0 0.0
      %1483 = vmatprep.subr.mxu0 0.0
      %1484 = vmatpush1.msra.mxu0 0.0
      %1485 = vmatprep.subr.mxu0 0.0
      %1486 = vmatpush1.msra.mxu0 0.0
      %1487 = vmatprep.subr.mxu0 0.0
      %1488 = vmatpush1.msra.mxu0 0.0
      %1489 = vmatprep.subr.mxu0 0.0
      %1490 = vmatpush1.msra.mxu0 0.0
      %1491 = vmatprep.mubr.f32.mxu0 0.0
      %1492 = vmatmul.mubr.f32.gmra.mrb[0].mxu0 %v1075
      %v1493 = vpop.f32.mrb[0].mxu0
      %v1494 = vadd.f32 %v1249, %v1493
      %v1495 = vpop.f32.mrb[0].mxu0
      %1496 = vmatprep.mubr.f32.mxu0 0.0
      %1497 = vmatmul.mubr.f32.gmra.mrb[0].mxu0 %v1078
      %v1498 = vpop.f32.mrb[0].mxu0
      %v1499 = vadd.f32 %v1254, %v1498
      %v1500 = vpop.f32.mrb[0].mxu0
      %1501 = vmatprep.mubr.f32.mxu0 0.0
      %1502 = vmatmul.mubr.f32.gmra.mrb[0].mxu0 %v1081
      %v1503 = vpop.f32.mrb[0].mxu0
      %v1504 = vadd.f32 %v1259, %v1503
      %v1505 = vpop.f32.mrb[0].mxu0
      %1506 = vmatprep.mubr.f32.mxu0 0.0
      %1507 = vmatmul.mubr.f32.gmra.mrb[0].mxu0 %v1084
      %v1508 = vpop.f32.mrb[0].mxu0
      %v1509 = vadd.f32 %v1264, %v1508
      %v1510 = vpop.f32.mrb[0].mxu0
      %1511 = vmatprep.mubr.f32.mxu0 0.0
      %1512 = vmatmul.mubr.f32.gmra.mrb[0].mxu0 %v1087
      %v1513 = vpop.f32.mrb[0].mxu0
      %v1514 = vadd.f32 %v1269, %v1513
      %v1515 = vpop.f32.mrb[0].mxu0
      %1516 = vmatprep.mubr.f32.mxu0 0.0
      %1517 = vmatmul.mubr.f32.gmra.mrb[0].mxu0 %v1090
      %v1518 = vpop.f32.mrb[0].mxu0
      %v1519 = vadd.f32 %v1274, %v1518
      %v1520 = vpop.f32.mrb[0].mxu0
      %1521 = vmatprep.mubr.f32.mxu0 0.0
      %1522 = vmatmul.mubr.f32.gmra.mrb[0].mxu0 %v1093
      %v1523 = vpop.f32.mrb[0].mxu0
      %v1524 = vadd.f32 %v1279, %v1523
      %v1525 = vpop.f32.mrb[0].mxu0
      %1526 = vmatprep.mubr.f32.mxu0 0.0
      %1527 = vmatmul.mubr.f32.gmra.mrb[0].mxu0 %v1096
      %v1528 = vpop.f32.mrb[0].mxu0
      %v1529 = vadd.f32 %v1284, %v1528
      %v1530 = vpop.f32.mrb[0].mxu0
      %1531 = vmatprep.mubr.f32.mxu0 0.0
      %1532 = vmatmul.mubr.f32.gmra.mrb[0].mxu0 %v1099
      %v1533 = vpop.f32.mrb[0].mxu0
      %v1534 = vadd.f32 %v1289, %v1533
      %v1535 = vpop.f32.mrb[0].mxu0
      %1536 = vmatprep.mubr.f32.mxu0 0.0
      %1537 = vmatmul.mubr.f32.gmra.mrb[0].mxu0 %v1102
      %v1538 = vpop.f32.mrb[0].mxu0
      %v1539 = vadd.f32 %v1294, %v1538
      %v1540 = vpop.f32.mrb[0].mxu0
      %1541 = vmatprep.mubr.f32.mxu0 0.0
      %1542 = vmatmul.mubr.f32.gmra.mrb[0].mxu0 %v1105
      %v1543 = vpop.f32.mrb[0].mxu0
      %v1544 = vadd.f32 %v1299, %v1543
      %v1545 = vpop.f32.mrb[0].mxu0
      %1546 = vmatprep.mubr.f32.mxu0 0.0
      %1547 = vmatmul.mubr.f32.gmra.mrb[0].mxu0 %v1108
      %v1548 = vpop.f32.mrb[0].mxu0
      %v1549 = vadd.f32 %v1304, %v1548
      %v1550 = vpop.f32.mrb[0].mxu0
      %1551 = vmatprep.mubr.f32.mxu0 0.0
      %1552 = vmatmul.mubr.f32.gmra.mrb[0].mxu0 %v1111
      %v1553 = vpop.f32.mrb[0].mxu0
      %v1554 = vadd.f32 %v1309, %v1553
      %v1555 = vpop.f32.mrb[0].mxu0
      %1556 = vmatprep.mubr.f32.mxu0 0.0
      %1557 = vmatmul.mubr.f32.gmra.mrb[0].mxu0 %v1114
      %v1558 = vpop.f32.mrb[0].mxu0
      %v1559 = vadd.f32 %v1314, %v1558
      %v1560 = vpop.f32.mrb[0].mxu0
      %1561 = vmatprep.mubr.f32.mxu0 0.0
      %1562 = vmatmul.mubr.f32.gmra.mrb[0].mxu0 %v1117
      %v1563 = vpop.f32.mrb[0].mxu0
      %v1564 = vadd.f32 %v1319, %v1563
      %v1565 = vpop.f32.mrb[0].mxu0
      %1566 = vmatprep.mubr.f32.mxu0 0.0
      %1567 = vmatmul.mubr.f32.gmra.mrb[0].mxu0 %v1120
      %v1568 = vpop.f32.mrb[0].mxu0
      %v1569 = vadd.f32 %v1324, %v1568
      %v1570 = vpop.f32.mrb[0].mxu0
      %1571 = vmatprep.mubr.f32.mxu0 0.0
      %1572 = vmatmul.mubr.f32.gmra.mrb[0].mxu0 %v1123
      %v1573 = vpop.f32.mrb[0].mxu0
      %v1574 = vadd.f32 %v1329, %v1573
      %v1575 = vpop.f32.mrb[0].mxu0
      %1576 = vmatprep.mubr.f32.mxu0 0.0
      %1577 = vmatmul.mubr.f32.gmra.mrb[0].mxu0 %v1126
      %v1578 = vpop.f32.mrb[0].mxu0
      %v1579 = vadd.f32 %v1334, %v1578
      %v1580 = vpop.f32.mrb[0].mxu0
      %1581 = vmatprep.mubr.f32.mxu0 0.0
      %1582 = vmatmul.mubr.f32.gmra.mrb[0].mxu0 %v1129
      %v1583 = vpop.f32.mrb[0].mxu0
      %v1584 = vadd.f32 %v1339, %v1583
      %v1585 = vpop.f32.mrb[0].mxu0
      %1586 = vmatprep.mubr.f32.mxu0 0.0
      %1587 = vmatmul.mubr.f32.gmra.mrb[0].mxu0 %v1132
      %v1588 = vpop.f32.mrb[0].mxu0
      %v1589 = vadd.f32 %v1344, %v1588
      %v1590 = vpop.f32.mrb[0].mxu0
      %1591 = vmatprep.mubr.f32.mxu0 0.0
      %1592 = vmatmul.mubr.f32.gmra.mrb[0].mxu0 %v1135
      %v1593 = vpop.f32.mrb[0].mxu0
      %v1594 = vadd.f32 %v1349, %v1593
      %v1595 = vpop.f32.mrb[0].mxu0
      %1596 = vmatprep.mubr.f32.mxu0 0.0
      %1597 = vmatmul.mubr.f32.gmra.mrb[0].mxu0 %v1138
      %v1598 = vpop.f32.mrb[0].mxu0
      %v1599 = vadd.f32 %v1354, %v1598
      %v1600 = vpop.f32.mrb[0].mxu0
      %1601 = vmatprep.mubr.f32.mxu0 0.0
      %1602 = vmatmul.mubr.f32.gmra.mrb[0].mxu0 %v1141
      %v1603 = vpop.f32.mrb[0].mxu0
      %v1604 = vadd.f32 %v1359, %v1603
      %v1605 = vpop.f32.mrb[0].mxu0
      %1606 = vmatprep.mubr.f32.mxu0 0.0
      %1607 = vmatmul.mubr.f32.gmra.mrb[0].mxu0 %v1144
      %v1608 = vpop.f32.mrb[0].mxu0
      %v1609 = vadd.f32 %v1364, %v1608
      %v1610 = vpop.f32.mrb[0].mxu0
      %1611 = vmatprep.mubr.f32.mxu0 0.0
      %1612 = vmatmul.mubr.f32.gmra.mrb[0].mxu0 %v1147
      %v1613 = vpop.f32.mrb[0].mxu0
      %v1614 = vadd.f32 %v1369, %v1613
      %v1615 = vpop.f32.mrb[0].mxu0
      %1616 = vmatprep.mubr.f32.mxu0 0.0
      %1617 = vmatmul.mubr.f32.gmra.mrb[0].mxu0 %v1150
      %v1618 = vpop.f32.mrb[0].mxu0
      %v1619 = vadd.f32 %v1374, %v1618
      %v1620 = vpop.f32.mrb[0].mxu0
      %1621 = vmatprep.mubr.f32.mxu0 0.0
      %1622 = vmatmul.mubr.f32.gmra.mrb[0].mxu0 %v1153
      %v1623 = vpop.f32.mrb[0].mxu0
      %v1624 = vadd.f32 %v1379, %v1623
      %v1625 = vpop.f32.mrb[0].mxu0
      %1626 = vmatprep.mubr.f32.mxu0 0.0
      %1627 = vmatmul.mubr.f32.gmra.mrb[0].mxu0 %v1156
      %v1628 = vpop.f32.mrb[0].mxu0
      %v1629 = vadd.f32 %v1384, %v1628
      %v1630 = vpop.f32.mrb[0].mxu0
      %1631 = vmatprep.mubr.f32.mxu0 0.0
      %1632 = vmatmul.mubr.f32.gmra.mrb[0].mxu0 %v1159
      %v1633 = vpop.f32.mrb[0].mxu0
      %v1634 = vadd.f32 %v1389, %v1633
      %v1635 = vpop.f32.mrb[0].mxu0
      %1636 = vmatprep.mubr.f32.mxu0 0.0
      %1637 = vmatmul.mubr.f32.gmra.mrb[0].mxu0 %v1162
      %v1638 = vpop.f32.mrb[0].mxu0
      %v1639 = vadd.f32 %v1394, %v1638
      %v1640 = vpop.f32.mrb[0].mxu0
      %1641 = vmatprep.mubr.f32.mxu0 0.0
      %1642 = vmatmul.mubr.f32.gmra.mrb[0].mxu0 %v1165
      %v1643 = vpop.f32.mrb[0].mxu0
      %v1644 = vadd.f32 %v1399, %v1643
      %v1645 = vpop.f32.mrb[0].mxu0
      %1646 = vmatprep.mubr.f32.mxu0 0.0
      %1647 = vmatmul.mubr.f32.gmra.mrb[0].mxu0 %v1168
      %v1648 = vpop.f32.mrb[0].mxu0
      %v1649 = vadd.f32 %v1404, %v1648
      %v1650 = vpop.f32.mrb[0].mxu0
      %1651 = vmatprep.mubr.f32.mxu0 0.0
      %1652 = vmatmul.mubr.f32.gmra.mrb[0].mxu0 %v1171
      %v1653 = vpop.f32.mrb[0].mxu0
      %v1654 = vadd.f32 %v1409, %v1653
      %v1655 = vpop.f32.mrb[0].mxu0
      %1656 = vmatprep.mubr.f32.mxu0 0.0
      %1657 = vmatmul.mubr.f32.gmra.mrb[0].mxu0 %v1174
      %v1658 = vpop.f32.mrb[0].mxu0
      %v1659 = vadd.f32 %v1414, %v1658
      %v1660 = vpop.f32.mrb[0].mxu0
      %1661 = vmatprep.mubr.f32.mxu0 0.0
      %1662 = vmatmul.mubr.f32.gmra.mrb[0].mxu0 %v1177
      %v1663 = vpop.f32.mrb[0].mxu0
      %v1664 = vadd.f32 %v1419, %v1663
      %v1665 = vpop.f32.mrb[0].mxu0
      %1666 = vmatprep.mubr.f32.mxu0 0.0
      %1667 = vmatmul.mubr.f32.gmra.mrb[0].mxu0 %v1180
      %v1668 = vpop.f32.mrb[0].mxu0
      %v1669 = vadd.f32 %v1424, %v1668
      %v1670 = vpop.f32.mrb[0].mxu0
      %1671 = vdwg.mxu0
      %v1672 = vmax.f32 %v1494, 0.0
      %v1673 = vmax.f32 %v1499, 0.0
      %v1674 = vmax.f32 %v1504, 0.0
      %v1675 = vmax.f32 %v1509, 0.0
      %v1676 = vmax.f32 %v1514, 0.0
      %v1677 = vmax.f32 %v1519, 0.0
      %v1678 = vmax.f32 %v1524, 0.0
      %v1679 = vmax.f32 %v1529, 0.0
      %v1680 = vmax.f32 %v1534, 0.0
      %v1681 = vmax.f32 %v1539, 0.0
      %v1682 = vmax.f32 %v1544, 0.0
      %v1683 = vmax.f32 %v1549, 0.0
      %v1684 = vmax.f32 %v1554, 0.0
      %v1685 = vmax.f32 %v1559, 0.0
      %v1686 = vmax.f32 %v1564, 0.0
      %v1687 = vmax.f32 %v1569, 0.0
      %v1688 = vmax.f32 %v1574, 0.0
      %v1689 = vmax.f32 %v1579, 0.0
      %v1690 = vmax.f32 %v1584, 0.0
      %v1691 = vmax.f32 %v1589, 0.0
      %v1692 = vmax.f32 %v1594, 0.0
      %v1693 = vmax.f32 %v1599, 0.0
      %v1694 = vmax.f32 %v1604, 0.0
      %v1695 = vmax.f32 %v1609, 0.0
      %v1696 = vmax.f32 %v1614, 0.0
      %v1697 = vmax.f32 %v1619, 0.0
      %v1698 = vmax.f32 %v1624, 0.0
      %v1699 = vmax.f32 %v1629, 0.0
      %v1700 = vmax.f32 %v1634, 0.0
      %v1701 = vmax.f32 %v1639, 0.0
      %v1702 = vmax.f32 %v1644, 0.0
      %v1703 = vmax.f32 %v1649, 0.0
      %v1704 = vmax.f32 %v1654, 0.0
      %v1705 = vmax.f32 %v1659, 0.0
      %v1706 = vmax.f32 %v1664, 0.0
      %v1707 = vmax.f32 %v1669, 0.0
      %p1708 = scmp.eq.s32.totalorder %s16, 0
      // Predicated region
      $region41: #{net_forward.2} parent=39 // pred_check
        %p1709 = pneg %p1708
      $region42: #{net_forward.2} parent=39 // pred_check_branch
        %1711 = sbr.rel (%p1709) target = $region44
      $region43: #{net_forward.2} parent=39 // pred_region
        %vm1712 = vcmask 523264
        %1713 = vst.msk [vmem:[%s5] sm:$0xff] %vm1712, %v1672
        %1714 = vst.msk [vmem:[%s5 + $0x8] sm:$0xff] %vm1712, %v1673
        %1715 = vst.msk [vmem:[%s5 + $0x10] sm:$0xff] %vm1712, %v1674
        %1716 = vst.msk [vmem:[%s5 + $0x18] sm:$0xff] %vm1712, %v1675
        %1717 = vst.msk [vmem:[%s5 + $0x20] sm:$0xff] %vm1712, %v1676
        %1718 = vst.msk [vmem:[%s5 + $0x28] sm:$0xff] %vm1712, %v1677
        %1719 = vst.msk [vmem:[%s5 + $0x30] sm:$0xff] %vm1712, %v1678
        %1720 = vst.msk [vmem:[%s5 + $0x38] sm:$0xff] %vm1712, %v1679
        %1721 = vst.msk [vmem:[%s5 + $0x40] sm:$0xff] %vm1712, %v1680
        %1722 = vst.msk [vmem:[%s5 + $0x48] sm:$0xff] %vm1712, %v1681
        %1723 = vst.msk [vmem:[%s5 + $0x50] sm:$0xff] %vm1712, %v1682
        %1724 = vst.msk [vmem:[%s5 + $0x58] sm:$0xff] %vm1712, %v1683
        %1725 = vst.msk [vmem:[%s5 + $0x60] sm:$0xff] %vm1712, %v1684
        %1726 = vst.msk [vmem:[%s5 + $0x68] sm:$0xff] %vm1712, %v1685
        %1727 = vst.msk [vmem:[%s5 + $0x70] sm:$0xff] %vm1712, %v1686
        %1728 = vst.msk [vmem:[%s5 + $0x78] sm:$0xff] %vm1712, %v1687
        %1729 = vst.msk [vmem:[%s5 + $0x80] sm:$0xff] %vm1712, %v1688
        %1730 = vst.msk [vmem:[%s5 + $0x88] sm:$0xff] %vm1712, %v1689
        %1731 = vst.msk [vmem:[%s5 + $0x90] sm:$0xff] %vm1712, %v1690
        %1732 = vst.msk [vmem:[%s5 + $0x98] sm:$0xff] %vm1712, %v1691
        %1733 = vst.msk [vmem:[%s5 + $0xa0] sm:$0xff] %vm1712, %v1692
        %1734 = vst.msk [vmem:[%s5 + $0xa8] sm:$0xff] %vm1712, %v1693
        %1735 = vst.msk [vmem:[%s5 + $0xb0] sm:$0xff] %vm1712, %v1694
        %1736 = vst.msk [vmem:[%s5 + $0xb8] sm:$0xff] %vm1712, %v1695
        %1737 = vst.msk [vmem:[%s5 + $0xc0] sm:$0xff] %vm1712, %v1696
        %1738 = vst.msk [vmem:[%s5 + $0xc8] sm:$0xff] %vm1712, %v1697
        %1739 = vst.msk [vmem:[%s5 + $0xd0] sm:$0xff] %vm1712, %v1698
        %1740 = vst.msk [vmem:[%s5 + $0xd8] sm:$0xff] %vm1712, %v1699
        %1741 = vst.msk [vmem:[%s5 + $0xe0] sm:$0xff] %vm1712, %v1700
        %1742 = vst.msk [vmem:[%s5 + $0xe8] sm:$0xff] %vm1712, %v1701
        %1743 = vst.msk [vmem:[%s5 + $0xf0] sm:$0xff] %vm1712, %v1702
        %1744 = vst.msk [vmem:[%s5 + $0xf8] sm:$0xff] %vm1712, %v1703
        %1745 = vst.msk [vmem:[%s5 + $0x100] sm:$0xff] %vm1712, %v1704
        %1746 = vst.msk [vmem:[%s5 + $0x108] sm:$0xff] %vm1712, %v1705
        %1747 = vst.msk [vmem:[%s5 + $0x110] sm:$0xff] %vm1712, %v1706
        %1748 = vst.msk [vmem:[%s5 + $0x118] sm:$0xff] %vm1712, %v1707
      $region44: #{net_forward.2} parent=39 // pred_fallthru
        _
      %p1749 = scmp.gt.s32.totalorder %s16, 0
      // Predicated region
      $region45: #{net_forward.2} parent=39 // pred_check
        %p1750 = pneg %p1749
      $region46: #{net_forward.2} parent=39 // pred_check_branch
        %1752 = sbr.rel (%p1750) target = $region48
      $region47: #{net_forward.2} parent=39 // pred_region
        %v1753 = vld [vmem:[%s5] sm:$0xff]
        %v1754 = vld [vmem:[%s5 + $0x8] sm:$0xff]
        %v1755 = vld [vmem:[%s5 + $0x10] sm:$0xff]
        %v1756 = vld [vmem:[%s5 + $0x18] sm:$0xff]
        %v1757 = vld [vmem:[%s5 + $0x20] sm:$0xff]
        %v1758 = vld [vmem:[%s5 + $0x28] sm:$0xff]
        %v1759 = vld [vmem:[%s5 + $0x30] sm:$0xff]
        %v1760 = vld [vmem:[%s5 + $0x38] sm:$0xff]
        %v1761 = vld [vmem:[%s5 + $0x40] sm:$0xff]
        %v1762 = vld [vmem:[%s5 + $0x48] sm:$0xff]
        %v1763 = vld [vmem:[%s5 + $0x50] sm:$0xff]
        %v1764 = vld [vmem:[%s5 + $0x58] sm:$0xff]
        %v1765 = vld [vmem:[%s5 + $0x60] sm:$0xff]
        %v1766 = vld [vmem:[%s5 + $0x68] sm:$0xff]
        %v1767 = vld [vmem:[%s5 + $0x70] sm:$0xff]
        %v1768 = vld [vmem:[%s5 + $0x78] sm:$0xff]
        %v1769 = vld [vmem:[%s5 + $0x80] sm:$0xff]
        %v1770 = vld [vmem:[%s5 + $0x88] sm:$0xff]
        %v1771 = vld [vmem:[%s5 + $0x90] sm:$0xff]
        %v1772 = vld [vmem:[%s5 + $0x98] sm:$0xff]
        %v1773 = vld [vmem:[%s5 + $0xa0] sm:$0xff]
        %v1774 = vld [vmem:[%s5 + $0xa8] sm:$0xff]
        %v1775 = vld [vmem:[%s5 + $0xb0] sm:$0xff]
        %v1776 = vld [vmem:[%s5 + $0xb8] sm:$0xff]
        %v1777 = vld [vmem:[%s5 + $0xc0] sm:$0xff]
        %v1778 = vld [vmem:[%s5 + $0xc8] sm:$0xff]
        %v1779 = vld [vmem:[%s5 + $0xd0] sm:$0xff]
        %v1780 = vld [vmem:[%s5 + $0xd8] sm:$0xff]
        %v1781 = vld [vmem:[%s5 + $0xe0] sm:$0xff]
        %v1782 = vld [vmem:[%s5 + $0xe8] sm:$0xff]
        %v1783 = vld [vmem:[%s5 + $0xf0] sm:$0xff]
        %v1784 = vld [vmem:[%s5 + $0xf8] sm:$0xff]
        %v1785 = vld [vmem:[%s5 + $0x100] sm:$0xff]
        %v1786 = vld [vmem:[%s5 + $0x108] sm:$0xff]
        %v1787 = vld [vmem:[%s5 + $0x110] sm:$0xff]
        %v1788 = vld [vmem:[%s5 + $0x118] sm:$0xff]
        %v1789 = vmax.f32 %v1753, %v1672
        %v1790 = vmax.f32 %v1754, %v1673
        %v1791 = vmax.f32 %v1755, %v1674
        %v1792 = vmax.f32 %v1756, %v1675
        %v1793 = vmax.f32 %v1757, %v1676
        %v1794 = vmax.f32 %v1758, %v1677
        %v1795 = vmax.f32 %v1759, %v1678
        %v1796 = vmax.f32 %v1760, %v1679
        %v1797 = vmax.f32 %v1761, %v1680
        %v1798 = vmax.f32 %v1762, %v1681
        %v1799 = vmax.f32 %v1763, %v1682
        %v1800 = vmax.f32 %v1764, %v1683
        %v1801 = vmax.f32 %v1765, %v1684
        %v1802 = vmax.f32 %v1766, %v1685
        %v1803 = vmax.f32 %v1767, %v1686
        %v1804 = vmax.f32 %v1768, %v1687
        %v1805 = vmax.f32 %v1769, %v1688
        %v1806 = vmax.f32 %v1770, %v1689
        %v1807 = vmax.f32 %v1771, %v1690
        %v1808 = vmax.f32 %v1772, %v1691
        %v1809 = vmax.f32 %v1773, %v1692
        %v1810 = vmax.f32 %v1774, %v1693
        %v1811 = vmax.f32 %v1775, %v1694
        %v1812 = vmax.f32 %v1776, %v1695
        %v1813 = vmax.f32 %v1777, %v1696
        %v1814 = vmax.f32 %v1778, %v1697
        %v1815 = vmax.f32 %v1779, %v1698
        %v1816 = vmax.f32 %v1780, %v1699
        %v1817 = vmax.f32 %v1781, %v1700
        %v1818 = vmax.f32 %v1782, %v1701
        %v1819 = vmax.f32 %v1783, %v1702
        %v1820 = vmax.f32 %v1784, %v1703
        %v1821 = vmax.f32 %v1785, %v1704
        %v1822 = vmax.f32 %v1786, %v1705
        %v1823 = vmax.f32 %v1787, %v1706
        %v1824 = vmax.f32 %v1788, %v1707
        %vm1825 = vcmask 523264
        %1826 = vst.msk [vmem:[%s5] sm:$0xff] %vm1825, %v1789
        %1827 = vst.msk [vmem:[%s5 + $0x8] sm:$0xff] %vm1825, %v1790
        %1828 = vst.msk [vmem:[%s5 + $0x10] sm:$0xff] %vm1825, %v1791
        %1829 = vst.msk [vmem:[%s5 + $0x18] sm:$0xff] %vm1825, %v1792
        %1830 = vst.msk [vmem:[%s5 + $0x20] sm:$0xff] %vm1825, %v1793
        %1831 = vst.msk [vmem:[%s5 + $0x28] sm:$0xff] %vm1825, %v1794
        %1832 = vst.msk [vmem:[%s5 + $0x30] sm:$0xff] %vm1825, %v1795
        %1833 = vst.msk [vmem:[%s5 + $0x38] sm:$0xff] %vm1825, %v1796
        %1834 = vst.msk [vmem:[%s5 + $0x40] sm:$0xff] %vm1825, %v1797
        %1835 = vst.msk [vmem:[%s5 + $0x48] sm:$0xff] %vm1825, %v1798
        %1836 = vst.msk [vmem:[%s5 + $0x50] sm:$0xff] %vm1825, %v1799
        %1837 = vst.msk [vmem:[%s5 + $0x58] sm:$0xff] %vm1825, %v1800
        %1838 = vst.msk [vmem:[%s5 + $0x60] sm:$0xff] %vm1825, %v1801
        %1839 = vst.msk [vmem:[%s5 + $0x68] sm:$0xff] %vm1825, %v1802
        %1840 = vst.msk [vmem:[%s5 + $0x70] sm:$0xff] %vm1825, %v1803
        %1841 = vst.msk [vmem:[%s5 + $0x78] sm:$0xff] %vm1825, %v1804
        %1842 = vst.msk [vmem:[%s5 + $0x80] sm:$0xff] %vm1825, %v1805
        %1843 = vst.msk [vmem:[%s5 + $0x88] sm:$0xff] %vm1825, %v1806
        %1844 = vst.msk [vmem:[%s5 + $0x90] sm:$0xff] %vm1825, %v1807
        %1845 = vst.msk [vmem:[%s5 + $0x98] sm:$0xff] %vm1825, %v1808
        %1846 = vst.msk [vmem:[%s5 + $0xa0] sm:$0xff] %vm1825, %v1809
        %1847 = vst.msk [vmem:[%s5 + $0xa8] sm:$0xff] %vm1825, %v1810
        %1848 = vst.msk [vmem:[%s5 + $0xb0] sm:$0xff] %vm1825, %v1811
        %1849 = vst.msk [vmem:[%s5 + $0xb8] sm:$0xff] %vm1825, %v1812
        %1850 = vst.msk [vmem:[%s5 + $0xc0] sm:$0xff] %vm1825, %v1813
        %1851 = vst.msk [vmem:[%s5 + $0xc8] sm:$0xff] %vm1825, %v1814
        %1852 = vst.msk [vmem:[%s5 + $0xd0] sm:$0xff] %vm1825, %v1815
        %1853 = vst.msk [vmem:[%s5 + $0xd8] sm:$0xff] %vm1825, %v1816
        %1854 = vst.msk [vmem:[%s5 + $0xe0] sm:$0xff] %vm1825, %v1817
        %1855 = vst.msk [vmem:[%s5 + $0xe8] sm:$0xff] %vm1825, %v1818
        %1856 = vst.msk [vmem:[%s5 + $0xf0] sm:$0xff] %vm1825, %v1819
        %1857 = vst.msk [vmem:[%s5 + $0xf8] sm:$0xff] %vm1825, %v1820
        %1858 = vst.msk [vmem:[%s5 + $0x100] sm:$0xff] %vm1825, %v1821
        %1859 = vst.msk [vmem:[%s5 + $0x108] sm:$0xff] %vm1825, %v1822
        %1860 = vst.msk [vmem:[%s5 + $0x110] sm:$0xff] %vm1825, %v1823
        %1861 = vst.msk [vmem:[%s5 + $0x118] sm:$0xff] %vm1825, %v1824
      $region48: #{net_forward.2} parent=39 // pred_fallthru
        _
      // Predicated region
      $region49: #{net_forward.2} parent=39 // pred_check
        %p1862 = pneg %p139
      $region50: #{net_forward.2} parent=39 // pred_check_branch
        %1864 = sbr.rel (%p1862) target = $region52
      $region51: #{net_forward.2} parent=39 // pred_region
        _
      $region52: #{net_forward.2} parent=39 // pred_fallthru
        _
      // Predicated region
      $region53: #{net_forward.2} parent=39 // pred_check
        %p1865 = pneg %p139
      $region54: #{net_forward.2} parent=39 // pred_check_branch
        %1867 = sbr.rel (%p1865) target = $region56
      $region55: #{net_forward.2} parent=39 // pred_region
        _
      $region56: #{net_forward.2} parent=39 // pred_fallthru
        _
    $region40: #{net_forward.2} parent=5 // pred_fallthru
      _
    %p1868 = scmp.le.s32.totalorder 2, %s11
    // Predicated region
    $region57: #{net_forward.2} parent=5 // pred_check
      %p1869 = pneg %p1868
    $region58: #{net_forward.2} parent=5 // pred_check_branch
      %1871 = sbr.rel (%p1869) target = $region60
    $region59: #{net_forward.2} parent=5 // pred_region
      %s1872 = ssub.s32 %s11, 2
    $region60: #{net_forward.2} parent=5 // pred_fallthru
      _
  $region6: #{net_forward.2} parent=0 // loop_footer
    %s15 = sadd.s32 1, %s11
  $region7: #{net_forward.2} parent=0 // loop_footer_branch
    %10 = sbr.rel target = $region3
  $region8: #{net_forward.2} parent=0 // loop_exit
    _

// kernel: net_forward.3
$region0: #{net_forward.3}
  #allocation0 [shape = 'u32[]', space=smem, size = 0x4, offset = 0x4, fixed_abs, tag = 'smem constant byte address 0x4 - core index']
  #allocation1 [shape = 'u32[144,128]{1,0:T(1,128)}', space=vmem, size = 0x12000, scoped, tag = 'internal scratch']
  #allocation2 [shape = 'f32[2,128]{1,0:T(2,128)}', space=vmem, size = 0x400, scoped, tag = 'scratch operand']
  %s0 = inlined_call_operand.vmem [shape: f32[2,9216], index: 0, kind: input, shape index: {}]
  %s1 = inlined_call_operand.vmem [shape: bf16[9216,128], index: 1, kind: input, shape index: {}]
  %s2 = inlined_call_operand.vmem [shape: f32[1,128], index: 2, kind: input, shape index: {}]
  %s3 = inlined_call_operand.vmem [shape: f32[128,10], index: 3, kind: input, shape index: {}]
  %s4 = inlined_call_operand.vmem [shape: f32[1,10], index: 4, kind: input, shape index: {}]
  %s5 = inlined_call_operand.hbm [shape: f32[2,10], index: 5, kind: output, shape index: {}]
  %s6 = sld [smem:[#allocation0]]
  $region61: #{net_forward.3} parent=0
    _
  %s8 = ssub.s32 1, %s6
  %s9 = scalar_select 0, %s8, %s6
  $region1: #{net_forward.3} parent=0
    #allocation3 [shape = 'u8[1024]{0}', space=vmem, size = 0x400, scoped, tag = 'output window, operand 0, single buffered']
    #allocation4 [shape = 's32[2]{0}', space=sflag, size = 0x8, scoped, tag = 'scoped memory for net_forward.3']
    %10 = vsyncpa [#allocation4], 0
    loop: start=0, step=1, limit=4
    $region2: #{net_forward.3} parent=1 // loop_pre_header
      _
    $region3: #{net_forward.3} parent=1 // loop_header
      %s12 = sphi 0, %s16
      %p13 = scmp.ge.s32.totalorder %s12, 4
      %s22 = sphi 0, %s24
      %s25 = sphi 0, %s22
      %s26 = sphi 0, %s25
      %s42 = sphi 0, %s26
      %s48 = sphi 0, %s50
      %s51 = sphi 0, %s48
      %s52 = sphi 0, %s51
      %s68 = sphi 0, %s52
      %s72 = sphi 0, %s72
      %s74 = sphi 0, %s72
      %s75 = sphi 0, %s74
      %s89 = sphi 0, %s75
      %s93 = sphi 0, %s93
      %s95 = sphi 0, %s93
      %s96 = sphi 0, %s95
      %s110 = sphi 0, %s96
      %s114 = sphi 0, %s114
      %s116 = sphi 0, %s114
      %s117 = sphi 0, %s116
      %s131 = sphi 0, %s117
      %s135 = sphi 0, %s135
      %s137 = sphi 0, %s135
      %s138 = sphi 0, %s137
      %s152 = sphi 0, %s138
    $region4: #{net_forward.3} parent=1 // loop_header_branch
      %15 = sbr.rel (%p13) target = $region8
    $region5: #{net_forward.3} parent=1 // loop_body
      %s17 = ssub.s32 %s12, 1
      %s18 = ssub.s32 %s12, 2
      %s19 = sadd.s32 %s12, 1
      %s20 = ssub.s32 %s12, %s19
      %p21 = scmp.eq.s32.totalorder %s20, 0
      %s23 = sadd.s32 %s22, 1
      %s24 = scalar_select %p21, %s22, %s23
      %p27 = pneg %p21
      %p28 = scmp.eq.s32.totalorder %s12, 1
      %p29 = por %p27, %p28
      %p30 = scmp.ne.s32.totalorder %s22, %s25
      %p31 = scmp.eq.s32.totalorder %s12, 0
      %p32 = por %p30, %p31
      %p33 = scmp.ne.s32.totalorder %s22, %s25
      %p34 = scmp.eq.s32.totalorder %s17, 1
      %p35 = por %p33, %p34
      %p36 = scmp.ne.s32.totalorder %s25, %s26
      %p37 = scmp.eq.s32.totalorder %s17, 0
      %p38 = por %p36, %p37
      %p39 = scmp.ne.s32.totalorder %s25, %s26
      %p40 = scmp.eq.s32.totalorder %s18, 1
      %p41 = por %p39, %p40
      %p43 = scmp.ne.s32.totalorder %s26, %s42
      %p44 = scmp.eq.s32.totalorder %s18, 0
      %p45 = por %p43, %p44
      %s46 = ssub.s32 %s12, %s19
      %p47 = scmp.eq.s32.totalorder %s46, 0
      %s49 = sadd.s32 %s48, 1
      %s50 = scalar_select %p47, %s48, %s49
      %p53 = pneg %p47
      %p54 = scmp.eq.s32.totalorder %s12, 1
      %p55 = por %p53, %p54
      %p56 = scmp.ne.s32.totalorder %s48, %s51
      %p57 = scmp.eq.s32.totalorder %s12, 0
      %p58 = por %p56, %p57
      %p59 = scmp.ne.s32.totalorder %s48, %s51
      %p60 = scmp.eq.s32.totalorder %s17, 1
      %p61 = por %p59, %p60
      %p62 = scmp.ne.s32.totalorder %s51, %s52
      %p63 = scmp.eq.s32.totalorder %s17, 0
      %p64 = por %p62, %p63
      %p65 = scmp.ne.s32.totalorder %s51, %s52
      %p66 = scmp.eq.s32.totalorder %s18, 1
      %p67 = por %p65, %p66
      %p69 = scmp.ne.s32.totalorder %s52, %s68
      %p70 = scmp.eq.s32.totalorder %s18, 0
      %p71 = por %p69, %p70
      %s73 = sadd.s32 %s72, 1
      %p76 = scmp.eq.s32.totalorder %s12, 1
      %p77 = scmp.ne.s32.totalorder %s72, %s74
      %p78 = scmp.eq.s32.totalorder %s12, 0
      %p79 = por %p77, %p78
      %p80 = scmp.ne.s32.totalorder %s72, %s74
      %p81 = scmp.eq.s32.totalorder %s17, 1
      %p82 = por %p80, %p81
      %p83 = scmp.ne.s32.totalorder %s74, %s75
      %p84 = scmp.eq.s32.totalorder %s17, 0
      %p85 = por %p83, %p84
      %p86 = scmp.ne.s32.totalorder %s74, %s75
      %p87 = scmp.eq.s32.totalorder %s18, 1
      %p88 = por %p86, %p87
      %p90 = scmp.ne.s32.totalorder %s75, %s89
      %p91 = scmp.eq.s32.totalorder %s18, 0
      %p92 = por %p90, %p91
      %s94 = sadd.s32 %s93, 1
      %p97 = scmp.eq.s32.totalorder %s12, 1
      %p98 = scmp.ne.s32.totalorder %s93, %s95
      %p99 = scmp.eq.s32.totalorder %s12, 0
      %p100 = por %p98, %p99
      %p101 = scmp.ne.s32.totalorder %s93, %s95
      %p102 = scmp.eq.s32.totalorder %s17, 1
      %p103 = por %p101, %p102
      %p104 = scmp.ne.s32.totalorder %s95, %s96
      %p105 = scmp.eq.s32.totalorder %s17, 0
      %p106 = por %p104, %p105
      %p107 = scmp.ne.s32.totalorder %s95, %s96
      %p108 = scmp.eq.s32.totalorder %s18, 1
      %p109 = por %p107, %p108
      %p111 = scmp.ne.s32.totalorder %s96, %s110
      %p112 = scmp.eq.s32.totalorder %s18, 0
      %p113 = por %p111, %p112
      %s115 = sadd.s32 %s114, 1
      %p118 = scmp.eq.s32.totalorder %s12, 1
      %p119 = scmp.ne.s32.totalorder %s114, %s116
      %p120 = scmp.eq.s32.totalorder %s12, 0
      %p121 = por %p119, %p120
      %p122 = scmp.ne.s32.totalorder %s114, %s116
      %p123 = scmp.eq.s32.totalorder %s17, 1
      %p124 = por %p122, %p123
      %p125 = scmp.ne.s32.totalorder %s116, %s117
      %p126 = scmp.eq.s32.totalorder %s17, 0
      %p127 = por %p125, %p126
      %p128 = scmp.ne.s32.totalorder %s116, %s117
      %p129 = scmp.eq.s32.totalorder %s18, 1
      %p130 = por %p128, %p129
      %p132 = scmp.ne.s32.totalorder %s117, %s131
      %p133 = scmp.eq.s32.totalorder %s18, 0
      %p134 = por %p132, %p133
      %s136 = sadd.s32 %s135, 1
      %p139 = scmp.eq.s32.totalorder %s12, 1
      %p140 = scmp.ne.s32.totalorder %s135, %s137
      %p141 = scmp.eq.s32.totalorder %s12, 0
      %p142 = por %p140, %p141
      %p143 = scmp.ne.s32.totalorder %s135, %s137
      %p144 = scmp.eq.s32.totalorder %s17, 1
      %p145 = por %p143, %p144
      %p146 = scmp.ne.s32.totalorder %s137, %s138
      %p147 = scmp.eq.s32.totalorder %s17, 0
      %p148 = por %p146, %p147
      %p149 = scmp.ne.s32.totalorder %s137, %s138
      %p150 = scmp.eq.s32.totalorder %s18, 1
      %p151 = por %p149, %p150
      %p153 = scmp.ne.s32.totalorder %s138, %s152
      %p154 = scmp.eq.s32.totalorder %s18, 0
      %p155 = por %p153, %p154
      %p156 = scmp.le.s32.totalorder 1, %s12
      %p157 = scmp.lt.s32.totalorder %s12, 3
      %p158 = pnand %p156, %p157
      %p159 = pneg %p158
      // Predicated region
      $region9: #{net_forward.3} parent=5 // pred_check
        _
      $region10: #{net_forward.3} parent=5 // pred_check_branch
        %161 = sbr.rel (%p158) target = $region12
      $region11: #{net_forward.3} parent=5 // pred_region
        %s162 = ssub.s32 %s12, 1
        // Predicated region
        $region13: #{net_forward.3} parent=11 // pred_check
          %p163 = pneg %p85
        $region14: #{net_forward.3} parent=11 // pred_check_branch
          %165 = sbr.rel (%p163) target = $region16
        $region15: #{net_forward.3} parent=11 // pred_region
          _
        $region16: #{net_forward.3} parent=11 // pred_fallthru
          _
        // Predicated region
        $region17: #{net_forward.3} parent=11 // pred_check
          %p166 = pneg %p106
        $region18: #{net_forward.3} parent=11 // pred_check_branch
          %168 = sbr.rel (%p166) target = $region20
        $region19: #{net_forward.3} parent=11 // pred_region
          _
        $region20: #{net_forward.3} parent=11 // pred_fallthru
          _
        // Predicated region
        $region21: #{net_forward.3} parent=11 // pred_check
          %p169 = pneg %p127
        $region22: #{net_forward.3} parent=11 // pred_check_branch
          %171 = sbr.rel (%p169) target = $region24
        $region23: #{net_forward.3} parent=11 // pred_region
          _
        $region24: #{net_forward.3} parent=11 // pred_fallthru
          _
      $region12: #{net_forward.3} parent=5 // pred_fallthru
        _
      %p172 = scmp.lt.s32.totalorder %s12, 2
      // Predicated region
      $region25: #{net_forward.3} parent=5 // pred_check
        %p173 = pneg %p172
      $region26: #{net_forward.3} parent=5 // pred_check_branch
        %175 = sbr.rel (%p173) target = $region28
      $region27: #{net_forward.3} parent=5 // pred_region
        // Predicated region
        $region29: #{net_forward.3} parent=27 // pred_check
          %p176 = pneg %p32
        $region30: #{net_forward.3} parent=27 // pred_check_branch
          %178 = sbr.rel (%p176) target = $region32
        $region31: #{net_forward.3} parent=27 // pred_region
          %s179 = smul.u32 36, %s12
          %p180 = scmp.lt.s32.totalorder %s179, 71
          %s181 = scalar_select %p180, %s179, 71
          %s182 = smul.addr %s181, 2
          %s183 = scalar_lea.vmem %s0, %s182
          %s184 = smul.u32 36, %s12
        $region32: #{net_forward.3} parent=27 // pred_fallthru
          _
        // Predicated region
        $region33: #{net_forward.3} parent=27 // pred_check
          %p185 = pneg %p58
        $region34: #{net_forward.3} parent=27 // pred_check_branch
          %187 = sbr.rel (%p185) target = $region36
        $region35: #{net_forward.3} parent=27 // pred_region
          %s188 = smul.u32 576, %s12
          %p189 = scmp.lt.s32.totalorder %s188, 1151
          %s190 = scalar_select %p189, %s188, 1151
          %s191 = smul.addr %s190, 4
          %s192 = scalar_lea.vmem %s1, %s191
          %s193 = smul.u32 576, %s12
        $region36: #{net_forward.3} parent=27 // pred_fallthru
          _
      $region28: #{net_forward.3} parent=5 // pred_fallthru
        _
      %p194 = scmp.le.s32.totalorder 1, %s12
      %p195 = scmp.lt.s32.totalorder %s12, 3
      %p196 = pnand %p194, %p195
      %p197 = pneg %p196
      // Predicated region
      $region37: #{net_forward.3} parent=5 // pred_check
        _
      $region38: #{net_forward.3} parent=5 // pred_check_branch
        %199 = sbr.rel (%p196) target = $region40
      $region39: #{net_forward.3} parent=5 // pred_region
        %s200 = ssub.s32 %s12, 1
        %s201 = smul.u32 36, %s17
        %p202 = scmp.lt.s32.totalorder %s201, 71
        %s203 = scalar_select %p202, %s201, 71
        %s204 = smul.addr %s203, 2
        %s205 = scalar_lea.vmem %s0, %s204
        %p206 = pneg %p38
        %p207 = pneg %p35
        %s208 = smul.u32 576, %s17
        %p209 = scmp.lt.s32.totalorder %s208, 1151
        %s210 = scalar_select %p209, %s208, 1151
        %s211 = smul.addr %s210, 4
        %s212 = scalar_lea.vmem %s1, %s211
        %p213 = pneg %p64
        %p214 = pneg %p61
        %p215 = pneg %p85
        %p216 = pneg %p82
        %p217 = pneg %p106
        %p218 = pneg %p103
        %p219 = pneg %p127
        %p220 = pneg %p124
        %p221 = pneg %p148
        %p222 = pneg %p145
        %s223 = smul.u32 36, %s17
        %p224 = scmp.lt.s32.totalorder %s223, 71
        %s225 = scalar_select %p224, %s223, 71
        %s226 = smul.addr %s225, 2
        %s227 = scalar_lea.vmem %s0, %s226
        %s228 = smul.u32 36, %s17
        %s229 = smul.u32 576, %s17
        %p230 = scmp.lt.s32.totalorder %s229, 1151
        %s231 = scalar_select %p230, %s229, 1151
        %s232 = smul.addr %s231, 4
        %s233 = scalar_lea.vmem %s1, %s232
        %s234 = smul.u32 576, %s17
        %p236 = scmp.eq.s32.totalorder %s17, 0
        // Predicated region
        $region41: #{net_forward.3} parent=39 // pred_check
          %p237 = pneg %p236
        $region42: #{net_forward.3} parent=39 // pred_check_branch
          %239 = sbr.rel (%p237) target = $region44
        $region43: #{net_forward.3} parent=39 // pred_region
          %240 = vst [vmem:[#allocation2] sm:$0x3] 0.0
        $region44: #{net_forward.3} parent=39 // pred_fallthru
          _
        %v241 = vld [vmem:[#allocation2] sm:$0x3]
        %v242 = vld [vmem:[%s227] sm:$0xff]
        %v243 = vld [vmem:[%s227 + $0x8] sm:$0xff]
        %v244 = vld [vmem:[%s227 + $0x10] sm:$0xff]
        %v245 = vld [vmem:[%s227 + $0x18] sm:$0xff]
        %v246 = vld [vmem:[%s227 + $0x20] sm:$0xff]
        %v247 = vld [vmem:[%s227 + $0x28] sm:$0xff]
        %v248 = vld [vmem:[%s227 + $0x30] sm:$0xff]
        %v249 = vld [vmem:[%s227 + $0x38] sm:$0xff]
        %v250 = vld [vmem:[%s227 + $0x40] sm:$0xff]
        %v260 = vcombine.high %v242, %v242
        %v262 = vunpack.c.l.s4 1983009808
        %v263 = vunpack.c.0.s8 %v262
        %v264 = vlaneseq
        %v265 = vshrl.u32 %v264, 7
        %v266 = vsub.s32 %v263, %v265
        %v267 = vrot.slane %v242, %v266
        %v269 = vunpack.c.l.s4 1983009808
        %v270 = vunpack.c.0.s8 %v269
        %v271 = vlaneseq
        %v272 = vshrl.u32 %v271, 7
        %v273 = vsub.s32 %v270, %v272
        %v274 = vrot.slane %v260, %v273
        %v275 = vcombine.high %v267, %v267
        %v276 = vcombine.high %v274, %v274
        %v277 = vcombine.high %v243, %v243
        %v279 = vunpack.c.l.s4 1983009808
        %v280 = vunpack.c.0.s8 %v279
        %v281 = vlaneseq
        %v282 = vshrl.u32 %v281, 7
        %v283 = vsub.s32 %v280, %v282
        %v284 = vrot.slane %v243, %v283
        %v286 = vunpack.c.l.s4 1983009808
        %v287 = vunpack.c.0.s8 %v286
        %v288 = vlaneseq
        %v289 = vshrl.u32 %v288, 7
        %v290 = vsub.s32 %v287, %v289
        %v291 = vrot.slane %v277, %v290
        %v292 = vcombine.high %v284, %v284
        %v293 = vcombine.high %v291, %v291
        %v294 = vcombine.high %v244, %v244
        %v296 = vunpack.c.l.s4 1983009808
        %v297 = vunpack.c.0.s8 %v296
        %v298 = vlaneseq
        %v299 = vshrl.u32 %v298, 7
        %v300 = vsub.s32 %v297, %v299
        %v301 = vrot.slane %v244, %v300
        %v303 = vunpack.c.l.s4 1983009808
        %v304 = vunpack.c.0.s8 %v303
        %v305 = vlaneseq
        %v306 = vshrl.u32 %v305, 7
        %v307 = vsub.s32 %v304, %v306
        %v308 = vrot.slane %v294, %v307
        %v309 = vcombine.high %v301, %v301
        %v310 = vcombine.high %v308, %v308
        %v311 = vcombine.high %v245, %v245
        %v313 = vunpack.c.l.s4 1983009808
        %v314 = vunpack.c.0.s8 %v313
        %v315 = vlaneseq
        %v316 = vshrl.u32 %v315, 7
        %v317 = vsub.s32 %v314, %v316
        %v318 = vrot.slane %v245, %v317
        %v320 = vunpack.c.l.s4 1983009808
        %v321 = vunpack.c.0.s8 %v320
        %v322 = vlaneseq
        %v323 = vshrl.u32 %v322, 7
        %v324 = vsub.s32 %v321, %v323
        %v325 = vrot.slane %v311, %v324
        %v326 = vcombine.high %v318, %v318
        %v327 = vcombine.high %v325, %v325
        %v328 = vcombine.high %v246, %v246
        %v330 = vunpack.c.l.s4 1983009808
        %v331 = vunpack.c.0.s8 %v330
        %v332 = vlaneseq
        %v333 = vshrl.u32 %v332, 7
        %v334 = vsub.s32 %v331, %v333
        %v335 = vrot.slane %v246, %v334
        %v337 = vunpack.c.l.s4 1983009808
        %v338 = vunpack.c.0.s8 %v337
        %v339 = vlaneseq
        %v340 = vshrl.u32 %v339, 7
        %v341 = vsub.s32 %v338, %v340
        %v342 = vrot.slane %v328, %v341
        %v343 = vcombine.high %v335, %v335
        %v344 = vcombine.high %v342, %v342
        %v345 = vcombine.high %v247, %v247
        %v347 = vunpack.c.l.s4 1983009808
        %v348 = vunpack.c.0.s8 %v347
        %v349 = vlaneseq
        %v350 = vshrl.u32 %v349, 7
        %v351 = vsub.s32 %v348, %v350
        %v352 = vrot.slane %v247, %v351
        %v354 = vunpack.c.l.s4 1983009808
        %v355 = vunpack.c.0.s8 %v354
        %v356 = vlaneseq
        %v357 = vshrl.u32 %v356, 7
        %v358 = vsub.s32 %v355, %v357
        %v359 = vrot.slane %v345, %v358
        %v360 = vcombine.high %v352, %v352
        %v361 = vcombine.high %v359, %v359
        %v362 = vcombine.high %v248, %v248
        %v364 = vunpack.c.l.s4 1983009808
        %v365 = vunpack.c.0.s8 %v364
        %v366 = vlaneseq
        %v367 = vshrl.u32 %v366, 7
        %v368 = vsub.s32 %v365, %v367
        %v369 = vrot.slane %v248, %v368
        %v371 = vunpack.c.l.s4 1983009808
        %v372 = vunpack.c.0.s8 %v371
        %v373 = vlaneseq
        %v374 = vshrl.u32 %v373, 7
        %v375 = vsub.s32 %v372, %v374
        %v376 = vrot.slane %v362, %v375
        %v377 = vcombine.high %v369, %v369
        %v378 = vcombine.high %v376, %v376
        %v379 = vcombine.high %v249, %v249
        %v381 = vunpack.c.l.s4 1983009808
        %v382 = vunpack.c.0.s8 %v381
        %v383 = vlaneseq
        %v384 = vshrl.u32 %v383, 7
        %v385 = vsub.s32 %v382, %v384
        %v386 = vrot.slane %v249, %v385
        %v388 = vunpack.c.l.s4 1983009808
        %v389 = vunpack.c.0.s8 %v388
        %v390 = vlaneseq
        %v391 = vshrl.u32 %v390, 7
        %v392 = vsub.s32 %v389, %v391
        %v393 = vrot.slane %v379, %v392
        %v394 = vcombine.high %v386, %v386
        %v395 = vcombine.high %v393, %v393
        %v396 = vcombine.high %v250, %v250
        %v398 = vunpack.c.l.s4 1983009808
        %v399 = vunpack.c.0.s8 %v398
        %v400 = vlaneseq
        %v401 = vshrl.u32 %v400, 7
        %v402 = vsub.s32 %v399, %v401
        %v403 = vrot.slane %v250, %v402
        %v405 = vunpack.c.l.s4 1983009808
        %v406 = vunpack.c.0.s8 %v405
        %v407 = vlaneseq
        %v408 = vshrl.u32 %v407, 7
        %v409 = vsub.s32 %v406, %v408
        %v410 = vrot.slane %v396, %v409
        %v411 = vcombine.high %v403, %v403
        %v412 = vcombine.high %v410, %v410
        %v449 = vpack.c.bf16 %v267, %v267
        %v450 = vpack.c.bf16 %v275, %v275
        %v451 = vpack.c.bf16 %v274, %v274
        %v452 = vpack.c.bf16 %v276, %v276
        %v453 = vpack.c.bf16 %v284, %v284
        %v454 = vpack.c.bf16 %v292, %v292
        %v455 = vpack.c.bf16 %v291, %v291
        %v456 = vpack.c.bf16 %v293, %v293
        %v457 = vpack.c.bf16 %v301, %v301
        %v458 = vpack.c.bf16 %v309, %v309
        %v459 = vpack.c.bf16 %v308, %v308
        %v460 = vpack.c.bf16 %v310, %v310
        %v461 = vpack.c.bf16 %v318, %v318
        %v462 = vpack.c.bf16 %v326, %v326
        %v463 = vpack.c.bf16 %v325, %v325
        %v464 = vpack.c.bf16 %v327, %v327
        %v465 = vpack.c.bf16 %v335, %v335
        %v466 = vpack.c.bf16 %v343, %v343
        %v467 = vpack.c.bf16 %v342, %v342
        %v468 = vpack.c.bf16 %v344, %v344
        %v469 = vpack.c.bf16 %v352, %v352
        %v470 = vpack.c.bf16 %v360, %v360
        %v471 = vpack.c.bf16 %v359, %v359
        %v472 = vpack.c.bf16 %v361, %v361
        %v473 = vpack.c.bf16 %v369, %v369
        %v474 = vpack.c.bf16 %v377, %v377
        %v475 = vpack.c.bf16 %v376, %v376
        %v476 = vpack.c.bf16 %v378, %v378
        %v477 = vpack.c.bf16 %v386, %v386
        %v478 = vpack.c.bf16 %v394, %v394
        %v479 = vpack.c.bf16 %v393, %v393
        %v480 = vpack.c.bf16 %v395, %v395
        %v481 = vpack.c.bf16 %v403, %v403
        %v482 = vpack.c.bf16 %v411, %v411
        %v483 = vpack.c.bf16 %v410, %v410
        %v484 = vpack.c.bf16 %v412, %v412
        %v485 = vld [vmem:[%s233] sm:$0xf]
        %v486 = vld [vmem:[%s233 + $0x4] sm:$0xf]
        %v487 = vld [vmem:[%s233 + $0x8] sm:$0xf]
        %v488 = vld [vmem:[%s233 + $0xc] sm:$0xf]
        %v489 = vld [vmem:[%s233 + $0x10] sm:$0xf]
        %v490 = vld [vmem:[%s233 + $0x14] sm:$0xf]
        %v491 = vld [vmem:[%s233 + $0x18] sm:$0xf]
        %v492 = vld [vmem:[%s233 + $0x1c] sm:$0xf]
        %v493 = vld [vmem:[%s233 + $0x20] sm:$0xf]
        %v494 = vld [vmem:[%s233 + $0x24] sm:$0xf]
        %v495 = vld [vmem:[%s233 + $0x28] sm:$0xf]
        %v496 = vld [vmem:[%s233 + $0x2c] sm:$0xf]
        %v497 = vld [vmem:[%s233 + $0x30] sm:$0xf]
        %v498 = vld [vmem:[%s233 + $0x34] sm:$0xf]
        %v499 = vld [vmem:[%s233 + $0x38] sm:$0xf]
        %v500 = vld [vmem:[%s233 + $0x3c] sm:$0xf]
        %v501 = vld [vmem:[%s233 + $0x40] sm:$0xf]
        %v502 = vld [vmem:[%s233 + $0x44] sm:$0xf]
        %v503 = vld [vmem:[%s233 + $0x48] sm:$0xf]
        %v504 = vld [vmem:[%s233 + $0x4c] sm:$0xf]
        %v505 = vld [vmem:[%s233 + $0x50] sm:$0xf]
        %v506 = vld [vmem:[%s233 + $0x54] sm:$0xf]
        %v507 = vld [vmem:[%s233 + $0x58] sm:$0xf]
        %v508 = vld [vmem:[%s233 + $0x5c] sm:$0xf]
        %v509 = vld [vmem:[%s233 + $0x60] sm:$0xf]
        %v510 = vld [vmem:[%s233 + $0x64] sm:$0xf]
        %v511 = vld [vmem:[%s233 + $0x68] sm:$0xf]
        %v512 = vld [vmem:[%s233 + $0x6c] sm:$0xf]
        %v513 = vld [vmem:[%s233 + $0x70] sm:$0xf]
        %v514 = vld [vmem:[%s233 + $0x74] sm:$0xf]
        %v515 = vld [vmem:[%s233 + $0x78] sm:$0xf]
        %v516 = vld [vmem:[%s233 + $0x7c] sm:$0xf]
        %v517 = vld [vmem:[%s233 + $0x80] sm:$0xf]
        %v518 = vld [vmem:[%s233 + $0x84] sm:$0xf]
        %v519 = vld [vmem:[%s233 + $0x88] sm:$0xf]
        %v520 = vld [vmem:[%s233 + $0x8c] sm:$0xf]
        %v521 = vld [vmem:[%s233 + $0x90] sm:$0xf]
        %v522 = vld [vmem:[%s233 + $0x94] sm:$0xf]
        %v523 = vld [vmem:[%s233 + $0x98] sm:$0xf]
        %v524 = vld [vmem:[%s233 + $0x9c] sm:$0xf]
        %v525 = vld [vmem:[%s233 + $0xa0] sm:$0xf]
        %v526 = vld [vmem:[%s233 + $0xa4] sm:$0xf]
        %v527 = vld [vmem:[%s233 + $0xa8] sm:$0xf]
        %v528 = vld [vmem:[%s233 + $0xac] sm:$0xf]
        %v529 = vld [vmem:[%s233 + $0xb0] sm:$0xf]
        %v530 = vld [vmem:[%s233 + $0xb4] sm:$0xf]
        %v531 = vld [vmem:[%s233 + $0xb8] sm:$0xf]
        %v532 = vld [vmem:[%s233 + $0xbc] sm:$0xf]
        %v533 = vld [vmem:[%s233 + $0xc0] sm:$0xf]
        %v534 = vld [vmem:[%s233 + $0xc4] sm:$0xf]
        %v535 = vld [vmem:[%s233 + $0xc8] sm:$0xf]
        %v536 = vld [vmem:[%s233 + $0xcc] sm:$0xf]
        %v537 = vld [vmem:[%s233 + $0xd0] sm:$0xf]
        %v538 = vld [vmem:[%s233 + $0xd4] sm:$0xf]
        %v539 = vld [vmem:[%s233 + $0xd8] sm:$0xf]
        %v540 = vld [vmem:[%s233 + $0xdc] sm:$0xf]
        %v541 = vld [vmem:[%s233 + $0xe0] sm:$0xf]
        %v542 = vld [vmem:[%s233 + $0xe4] sm:$0xf]
        %v543 = vld [vmem:[%s233 + $0xe8] sm:$0xf]
        %v544 = vld [vmem:[%s233 + $0xec] sm:$0xf]
        %v545 = vld [vmem:[%s233 + $0xf0] sm:$0xf]
        %v546 = vld [vmem:[%s233 + $0xf4] sm:$0xf]
        %v547 = vld [vmem:[%s233 + $0xf8] sm:$0xf]
        %v548 = vld [vmem:[%s233 + $0xfc] sm:$0xf]
        %v549 = vld [vmem:[%s233 + $0x100] sm:$0xf]
        %v550 = vld [vmem:[%s233 + $0x104] sm:$0xf]
        %v551 = vld [vmem:[%s233 + $0x108] sm:$0xf]
        %v552 = vld [vmem:[%s233 + $0x10c] sm:$0xf]
        %v553 = vld [vmem:[%s233 + $0x110] sm:$0xf]
        %v554 = vld [vmem:[%s233 + $0x114] sm:$0xf]
        %v555 = vld [vmem:[%s233 + $0x118] sm:$0xf]
        %v556 = vld [vmem:[%s233 + $0x11c] sm:$0xf]
        %v557 = vld [vmem:[%s233 + $0x120] sm:$0xf]
        %v558 = vld [vmem:[%s233 + $0x124] sm:$0xf]
        %v559 = vld [vmem:[%s233 + $0x128] sm:$0xf]
        %v560 = vld [vmem:[%s233 + $0x12c] sm:$0xf]
        %v561 = vld [vmem:[%s233 + $0x130] sm:$0xf]
        %v562 = vld [vmem:[%s233 + $0x134] sm:$0xf]
        %v563 = vld [vmem:[%s233 + $0x138] sm:$0xf]
        %v564 = vld [vmem:[%s233 + $0x13c] sm:$0xf]
        %v565 = vld [vmem:[%s233 + $0x140] sm:$0xf]
        %v566 = vld [vmem:[%s233 + $0x144] sm:$0xf]
        %v567 = vld [vmem:[%s233 + $0x148] sm:$0xf]
        %v568 = vld [vmem:[%s233 + $0x14c] sm:$0xf]
        %v569 = vld [vmem:[%s233 + $0x150] sm:$0xf]
        %v570 = vld [vmem:[%s233 + $0x154] sm:$0xf]
        %v571 = vld [vmem:[%s233 + $0x158] sm:$0xf]
        %v572 = vld [vmem:[%s233 + $0x15c] sm:$0xf]
        %v573 = vld [vmem:[%s233 + $0x160] sm:$0xf]
        %v574 = vld [vmem:[%s233 + $0x164] sm:$0xf]
        %v575 = vld [vmem:[%s233 + $0x168] sm:$0xf]
        %v576 = vld [vmem:[%s233 + $0x16c] sm:$0xf]
        %v577 = vld [vmem:[%s233 + $0x170] sm:$0xf]
        %v578 = vld [vmem:[%s233 + $0x174] sm:$0xf]
        %v579 = vld [vmem:[%s233 + $0x178] sm:$0xf]
        %v580 = vld [vmem:[%s233 + $0x17c] sm:$0xf]
        %v581 = vld [vmem:[%s233 + $0x180] sm:$0xf]
        %v582 = vld [vmem:[%s233 + $0x184] sm:$0xf]
        %v583 = vld [vmem:[%s233 + $0x188] sm:$0xf]
        %v584 = vld [vmem:[%s233 + $0x18c] sm:$0xf]
        %v585 = vld [vmem:[%s233 + $0x190] sm:$0xf]
        %v586 = vld [vmem:[%s233 + $0x194] sm:$0xf]
        %v587 = vld [vmem:[%s233 + $0x198] sm:$0xf]
        %v588 = vld [vmem:[%s233 + $0x19c] sm:$0xf]
        %v589 = vld [vmem:[%s233 + $0x1a0] sm:$0xf]
        %v590 = vld [vmem:[%s233 + $0x1a4] sm:$0xf]
        %v591 = vld [vmem:[%s233 + $0x1a8] sm:$0xf]
        %v592 = vld [vmem:[%s233 + $0x1ac] sm:$0xf]
        %v593 = vld [vmem:[%s233 + $0x1b0] sm:$0xf]
        %v594 = vld [vmem:[%s233 + $0x1b4] sm:$0xf]
        %v595 = vld [vmem:[%s233 + $0x1b8] sm:$0xf]
        %v596 = vld [vmem:[%s233 + $0x1bc] sm:$0xf]
        %v597 = vld [vmem:[%s233 + $0x1c0] sm:$0xf]
        %v598 = vld [vmem:[%s233 + $0x1c4] sm:$0xf]
        %v599 = vld [vmem:[%s233 + $0x1c8] sm:$0xf]
        %v600 = vld [vmem:[%s233 + $0x1cc] sm:$0xf]
        %v601 = vld [vmem:[%s233 + $0x1d0] sm:$0xf]
        %v602 = vld [vmem:[%s233 + $0x1d4] sm:$0xf]
        %v603 = vld [vmem:[%s233 + $0x1d8] sm:$0xf]
        %v604 = vld [vmem:[%s233 + $0x1dc] sm:$0xf]
        %v605 = vld [vmem:[%s233 + $0x1e0] sm:$0xf]
        %v606 = vld [vmem:[%s233 + $0x1e4] sm:$0xf]
        %v607 = vld [vmem:[%s233 + $0x1e8] sm:$0xf]
        %v608 = vld [vmem:[%s233 + $0x1ec] sm:$0xf]
        %v609 = vld [vmem:[%s233 + $0x1f0] sm:$0xf]
        %v610 = vld [vmem:[%s233 + $0x1f4] sm:$0xf]
        %v611 = vld [vmem:[%s233 + $0x1f8] sm:$0xf]
        %v612 = vld [vmem:[%s233 + $0x1fc] sm:$0xf]
        %v613 = vld [vmem:[%s233 + $0x200] sm:$0xf]
        %v614 = vld [vmem:[%s233 + $0x204] sm:$0xf]
        %v615 = vld [vmem:[%s233 + $0x208] sm:$0xf]
        %v616 = vld [vmem:[%s233 + $0x20c] sm:$0xf]
        %v617 = vld [vmem:[%s233 + $0x210] sm:$0xf]
        %v618 = vld [vmem:[%s233 + $0x214] sm:$0xf]
        %v619 = vld [vmem:[%s233 + $0x218] sm:$0xf]
        %v620 = vld [vmem:[%s233 + $0x21c] sm:$0xf]
        %v621 = vld [vmem:[%s233 + $0x220] sm:$0xf]
        %v622 = vld [vmem:[%s233 + $0x224] sm:$0xf]
        %v623 = vld [vmem:[%s233 + $0x228] sm:$0xf]
        %v624 = vld [vmem:[%s233 + $0x22c] sm:$0xf]
        %v625 = vld [vmem:[%s233 + $0x230] sm:$0xf]
        %v626 = vld [vmem:[%s233 + $0x234] sm:$0xf]
        %v627 = vld [vmem:[%s233 + $0x238] sm:$0xf]
        %v628 = vld [vmem:[%s233 + $0x23c] sm:$0xf]
        %v629 = vld [vmem:[%s233 + $0x240] sm:$0xf]
        %v630 = vld [vmem:[%s233 + $0x244] sm:$0xf]
        %v631 = vld [vmem:[%s233 + $0x248] sm:$0xf]
        %v632 = vld [vmem:[%s233 + $0x24c] sm:$0xf]
        %v633 = vld [vmem:[%s233 + $0x250] sm:$0xf]
        %v634 = vld [vmem:[%s233 + $0x254] sm:$0xf]
        %v635 = vld [vmem:[%s233 + $0x258] sm:$0xf]
        %v636 = vld [vmem:[%s233 + $0x25c] sm:$0xf]
        %v637 = vld [vmem:[%s233 + $0x260] sm:$0xf]
        %v638 = vld [vmem:[%s233 + $0x264] sm:$0xf]
        %v639 = vld [vmem:[%s233 + $0x268] sm:$0xf]
        %v640 = vld [vmem:[%s233 + $0x26c] sm:$0xf]
        %v641 = vld [vmem:[%s233 + $0x270] sm:$0xf]
        %v642 = vld [vmem:[%s233 + $0x274] sm:$0xf]
        %v643 = vld [vmem:[%s233 + $0x278] sm:$0xf]
        %v644 = vld [vmem:[%s233 + $0x27c] sm:$0xf]
        %v645 = vld [vmem:[%s233 + $0x280] sm:$0xf]
        %v646 = vld [vmem:[%s233 + $0x284] sm:$0xf]
        %v647 = vld [vmem:[%s233 + $0x288] sm:$0xf]
        %v648 = vld [vmem:[%s233 + $0x28c] sm:$0xf]
        %v649 = vld [vmem:[%s233 + $0x290] sm:$0xf]
        %v650 = vld [vmem:[%s233 + $0x294] sm:$0xf]
        %v651 = vld [vmem:[%s233 + $0x298] sm:$0xf]
        %v652 = vld [vmem:[%s233 + $0x29c] sm:$0xf]
        %v653 = vld [vmem:[%s233 + $0x2a0] sm:$0xf]
        %v654 = vld [vmem:[%s233 + $0x2a4] sm:$0xf]
        %v655 = vld [vmem:[%s233 + $0x2a8] sm:$0xf]
        %v656 = vld [vmem:[%s233 + $0x2ac] sm:$0xf]
        %v657 = vld [vmem:[%s233 + $0x2b0] sm:$0xf]
        %v658 = vld [vmem:[%s233 + $0x2b4] sm:$0xf]
        %v659 = vld [vmem:[%s233 + $0x2b8] sm:$0xf]
        %v660 = vld [vmem:[%s233 + $0x2bc] sm:$0xf]
        %v661 = vld [vmem:[%s233 + $0x2c0] sm:$0xf]
        %v662 = vld [vmem:[%s233 + $0x2c4] sm:$0xf]
        %v663 = vld [vmem:[%s233 + $0x2c8] sm:$0xf]
        %v664 = vld [vmem:[%s233 + $0x2cc] sm:$0xf]
        %v665 = vld [vmem:[%s233 + $0x2d0] sm:$0xf]
        %v666 = vld [vmem:[%s233 + $0x2d4] sm:$0xf]
        %v667 = vld [vmem:[%s233 + $0x2d8] sm:$0xf]
        %v668 = vld [vmem:[%s233 + $0x2dc] sm:$0xf]
        %v669 = vld [vmem:[%s233 + $0x2e0] sm:$0xf]
        %v670 = vld [vmem:[%s233 + $0x2e4] sm:$0xf]
        %v671 = vld [vmem:[%s233 + $0x2e8] sm:$0xf]
        %v672 = vld [vmem:[%s233 + $0x2ec] sm:$0xf]
        %v673 = vld [vmem:[%s233 + $0x2f0] sm:$0xf]
        %v674 = vld [vmem:[%s233 + $0x2f4] sm:$0xf]
        %v675 = vld [vmem:[%s233 + $0x2f8] sm:$0xf]
        %v676 = vld [vmem:[%s233 + $0x2fc] sm:$0xf]
        %v677 = vld [vmem:[%s233 + $0x300] sm:$0xf]
        %v678 = vld [vmem:[%s233 + $0x304] sm:$0xf]
        %v679 = vld [vmem:[%s233 + $0x308] sm:$0xf]
        %v680 = vld [vmem:[%s233 + $0x30c] sm:$0xf]
        %v681 = vld [vmem:[%s233 + $0x310] sm:$0xf]
        %v682 = vld [vmem:[%s233 + $0x314] sm:$0xf]
        %v683 = vld [vmem:[%s233 + $0x318] sm:$0xf]
        %v684 = vld [vmem:[%s233 + $0x31c] sm:$0xf]
        %v685 = vld [vmem:[%s233 + $0x320] sm:$0xf]
        %v686 = vld [vmem:[%s233 + $0x324] sm:$0xf]
        %v687 = vld [vmem:[%s233 + $0x328] sm:$0xf]
        %v688 = vld [vmem:[%s233 + $0x32c] sm:$0xf]
        %v689 = vld [vmem:[%s233 + $0x330] sm:$0xf]
        %v690 = vld [vmem:[%s233 + $0x334] sm:$0xf]
        %v691 = vld [vmem:[%s233 + $0x338] sm:$0xf]
        %v692 = vld [vmem:[%s233 + $0x33c] sm:$0xf]
        %v693 = vld [vmem:[%s233 + $0x340] sm:$0xf]
        %v694 = vld [vmem:[%s233 + $0x344] sm:$0xf]
        %v695 = vld [vmem:[%s233 + $0x348] sm:$0xf]
        %v696 = vld [vmem:[%s233 + $0x34c] sm:$0xf]
        %v697 = vld [vmem:[%s233 + $0x350] sm:$0xf]
        %v698 = vld [vmem:[%s233 + $0x354] sm:$0xf]
        %v699 = vld [vmem:[%s233 + $0x358] sm:$0xf]
        %v700 = vld [vmem:[%s233 + $0x35c] sm:$0xf]
        %v701 = vld [vmem:[%s233 + $0x360] sm:$0xf]
        %v702 = vld [vmem:[%s233 + $0x364] sm:$0xf]
        %v703 = vld [vmem:[%s233 + $0x368] sm:$0xf]
        %v704 = vld [vmem:[%s233 + $0x36c] sm:$0xf]
        %v705 = vld [vmem:[%s233 + $0x370] sm:$0xf]
        %v706 = vld [vmem:[%s233 + $0x374] sm:$0xf]
        %v707 = vld [vmem:[%s233 + $0x378] sm:$0xf]
        %v708 = vld [vmem:[%s233 + $0x37c] sm:$0xf]
        %v709 = vld [vmem:[%s233 + $0x380] sm:$0xf]
        %v710 = vld [vmem:[%s233 + $0x384] sm:$0xf]
        %v711 = vld [vmem:[%s233 + $0x388] sm:$0xf]
        %v712 = vld [vmem:[%s233 + $0x38c] sm:$0xf]
        %v713 = vld [vmem:[%s233 + $0x390] sm:$0xf]
        %v714 = vld [vmem:[%s233 + $0x394] sm:$0xf]
        %v715 = vld [vmem:[%s233 + $0x398] sm:$0xf]
        %v716 = vld [vmem:[%s233 + $0x39c] sm:$0xf]
        %v717 = vld [vmem:[%s233 + $0x3a0] sm:$0xf]
        %v718 = vld [vmem:[%s233 + $0x3a4] sm:$0xf]
        %v719 = vld [vmem:[%s233 + $0x3a8] sm:$0xf]
        %v720 = vld [vmem:[%s233 + $0x3ac] sm:$0xf]
        %v721 = vld [vmem:[%s233 + $0x3b0] sm:$0xf]
        %v722 = vld [vmem:[%s233 + $0x3b4] sm:$0xf]
        %v723 = vld [vmem:[%s233 + $0x3b8] sm:$0xf]
        %v724 = vld [vmem:[%s233 + $0x3bc] sm:$0xf]
        %v725 = vld [vmem:[%s233 + $0x3c0] sm:$0xf]
        %v726 = vld [vmem:[%s233 + $0x3c4] sm:$0xf]
        %v727 = vld [vmem:[%s233 + $0x3c8] sm:$0xf]
        %v728 = vld [vmem:[%s233 + $0x3cc] sm:$0xf]
        %v729 = vld [vmem:[%s233 + $0x3d0] sm:$0xf]
        %v730 = vld [vmem:[%s233 + $0x3d4] sm:$0xf]
        %v731 = vld [vmem:[%s233 + $0x3d8] sm:$0xf]
        %v732 = vld [vmem:[%s233 + $0x3dc] sm:$0xf]
        %v733 = vld [vmem:[%s233 + $0x3e0] sm:$0xf]
        %v734 = vld [vmem:[%s233 + $0x3e4] sm:$0xf]
        %v735 = vld [vmem:[%s233 + $0x3e8] sm:$0xf]
        %v736 = vld [vmem:[%s233 + $0x3ec] sm:$0xf]
        %v737 = vld [vmem:[%s233 + $0x3f0] sm:$0xf]
        %v738 = vld [vmem:[%s233 + $0x3f4] sm:$0xf]
        %v739 = vld [vmem:[%s233 + $0x3f8] sm:$0xf]
        %v740 = vld [vmem:[%s233 + $0x3fc] sm:$0xf]
        %v741 = vld [vmem:[%s233 + $0x400] sm:$0xf]
        %v742 = vld [vmem:[%s233 + $0x404] sm:$0xf]
        %v743 = vld [vmem:[%s233 + $0x408] sm:$0xf]
        %v744 = vld [vmem:[%s233 + $0x40c] sm:$0xf]
        %v745 = vld [vmem:[%s233 + $0x410] sm:$0xf]
        %v746 = vld [vmem:[%s233 + $0x414] sm:$0xf]
        %v747 = vld [vmem:[%s233 + $0x418] sm:$0xf]
        %v748 = vld [vmem:[%s233 + $0x41c] sm:$0xf]
        %v749 = vld [vmem:[%s233 + $0x420] sm:$0xf]
        %v750 = vld [vmem:[%s233 + $0x424] sm:$0xf]
        %v751 = vld [vmem:[%s233 + $0x428] sm:$0xf]
        %v752 = vld [vmem:[%s233 + $0x42c] sm:$0xf]
        %v753 = vld [vmem:[%s233 + $0x430] sm:$0xf]
        %v754 = vld [vmem:[%s233 + $0x434] sm:$0xf]
        %v755 = vld [vmem:[%s233 + $0x438] sm:$0xf]
        %v756 = vld [vmem:[%s233 + $0x43c] sm:$0xf]
        %v757 = vld [vmem:[%s233 + $0x440] sm:$0xf]
        %v758 = vld [vmem:[%s233 + $0x444] sm:$0xf]
        %v759 = vld [vmem:[%s233 + $0x448] sm:$0xf]
        %v760 = vld [vmem:[%s233 + $0x44c] sm:$0xf]
        %v761 = vld [vmem:[%s233 + $0x450] sm:$0xf]
        %v762 = vld [vmem:[%s233 + $0x454] sm:$0xf]
        %v763 = vld [vmem:[%s233 + $0x458] sm:$0xf]
        %v764 = vld [vmem:[%s233 + $0x45c] sm:$0xf]
        %v765 = vld [vmem:[%s233 + $0x460] sm:$0xf]
        %v766 = vld [vmem:[%s233 + $0x464] sm:$0xf]
        %v767 = vld [vmem:[%s233 + $0x468] sm:$0xf]
        %v768 = vld [vmem:[%s233 + $0x46c] sm:$0xf]
        %v769 = vld [vmem:[%s233 + $0x470] sm:$0xf]
        %v770 = vld [vmem:[%s233 + $0x474] sm:$0xf]
        %v771 = vld [vmem:[%s233 + $0x478] sm:$0xf]
        %v772 = vld [vmem:[%s233 + $0x47c] sm:$0xf]
        %v773 = vld [vmem:[%s233 + $0x480] sm:$0xf]
        %v774 = vld [vmem:[%s233 + $0x484] sm:$0xf]
        %v775 = vld [vmem:[%s233 + $0x488] sm:$0xf]
        %v776 = vld [vmem:[%s233 + $0x48c] sm:$0xf]
        %v777 = vld [vmem:[%s233 + $0x490] sm:$0xf]
        %v778 = vld [vmem:[%s233 + $0x494] sm:$0xf]
        %v779 = vld [vmem:[%s233 + $0x498] sm:$0xf]
        %v780 = vld [vmem:[%s233 + $0x49c] sm:$0xf]
        %v781 = vld [vmem:[%s233 + $0x4a0] sm:$0xf]
        %v782 = vld [vmem:[%s233 + $0x4a4] sm:$0xf]
        %v783 = vld [vmem:[%s233 + $0x4a8] sm:$0xf]
        %v784 = vld [vmem:[%s233 + $0x4ac] sm:$0xf]
        %v785 = vld [vmem:[%s233 + $0x4b0] sm:$0xf]
        %v786 = vld [vmem:[%s233 + $0x4b4] sm:$0xf]
        %v787 = vld [vmem:[%s233 + $0x4b8] sm:$0xf]
        %v788 = vld [vmem:[%s233 + $0x4bc] sm:$0xf]
        %v789 = vld [vmem:[%s233 + $0x4c0] sm:$0xf]
        %v790 = vld [vmem:[%s233 + $0x4c4] sm:$0xf]
        %v791 = vld [vmem:[%s233 + $0x4c8] sm:$0xf]
        %v792 = vld [vmem:[%s233 + $0x4cc] sm:$0xf]
        %v793 = vld [vmem:[%s233 + $0x4d0] sm:$0xf]
        %v794 = vld [vmem:[%s233 + $0x4d4] sm:$0xf]
        %v795 = vld [vmem:[%s233 + $0x4d8] sm:$0xf]
        %v796 = vld [vmem:[%s233 + $0x4dc] sm:$0xf]
        %v797 = vld [vmem:[%s233 + $0x4e0] sm:$0xf]
        %v798 = vld [vmem:[%s233 + $0x4e4] sm:$0xf]
        %v799 = vld [vmem:[%s233 + $0x4e8] sm:$0xf]
        %v800 = vld [vmem:[%s233 + $0x4ec] sm:$0xf]
        %v801 = vld [vmem:[%s233 + $0x4f0] sm:$0xf]
        %v802 = vld [vmem:[%s233 + $0x4f4] sm:$0xf]
        %v803 = vld [vmem:[%s233 + $0x4f8] sm:$0xf]
        %v804 = vld [vmem:[%s233 + $0x4fc] sm:$0xf]
        %v805 = vld [vmem:[%s233 + $0x500] sm:$0xf]
        %v806 = vld [vmem:[%s233 + $0x504] sm:$0xf]
        %v807 = vld [vmem:[%s233 + $0x508] sm:$0xf]
        %v808 = vld [vmem:[%s233 + $0x50c] sm:$0xf]
        %v809 = vld [vmem:[%s233 + $0x510] sm:$0xf]
        %v810 = vld [vmem:[%s233 + $0x514] sm:$0xf]
        %v811 = vld [vmem:[%s233 + $0x518] sm:$0xf]
        %v812 = vld [vmem:[%s233 + $0x51c] sm:$0xf]
        %v813 = vld [vmem:[%s233 + $0x520] sm:$0xf]
        %v814 = vld [vmem:[%s233 + $0x524] sm:$0xf]
        %v815 = vld [vmem:[%s233 + $0x528] sm:$0xf]
        %v816 = vld [vmem:[%s233 + $0x52c] sm:$0xf]
        %v817 = vld [vmem:[%s233 + $0x530] sm:$0xf]
        %v818 = vld [vmem:[%s233 + $0x534] sm:$0xf]
        %v819 = vld [vmem:[%s233 + $0x538] sm:$0xf]
        %v820 = vld [vmem:[%s233 + $0x53c] sm:$0xf]
        %v821 = vld [vmem:[%s233 + $0x540] sm:$0xf]
        %v822 = vld [vmem:[%s233 + $0x544] sm:$0xf]
        %v823 = vld [vmem:[%s233 + $0x548] sm:$0xf]
        %v824 = vld [vmem:[%s233 + $0x54c] sm:$0xf]
        %v825 = vld [vmem:[%s233 + $0x550] sm:$0xf]
        %v826 = vld [vmem:[%s233 + $0x554] sm:$0xf]
        %v827 = vld [vmem:[%s233 + $0x558] sm:$0xf]
        %v828 = vld [vmem:[%s233 + $0x55c] sm:$0xf]
        %v829 = vld [vmem:[%s233 + $0x560] sm:$0xf]
        %v830 = vld [vmem:[%s233 + $0x564] sm:$0xf]
        %v831 = vld [vmem:[%s233 + $0x568] sm:$0xf]
        %v832 = vld [vmem:[%s233 + $0x56c] sm:$0xf]
        %v833 = vld [vmem:[%s233 + $0x570] sm:$0xf]
        %v834 = vld [vmem:[%s233 + $0x574] sm:$0xf]
        %v835 = vld [vmem:[%s233 + $0x578] sm:$0xf]
        %v836 = vld [vmem:[%s233 + $0x57c] sm:$0xf]
        %v837 = vld [vmem:[%s233 + $0x580] sm:$0xf]
        %v838 = vld [vmem:[%s233 + $0x584] sm:$0xf]
        %v839 = vld [vmem:[%s233 + $0x588] sm:$0xf]
        %v840 = vld [vmem:[%s233 + $0x58c] sm:$0xf]
        %v841 = vld [vmem:[%s233 + $0x590] sm:$0xf]
        %v842 = vld [vmem:[%s233 + $0x594] sm:$0xf]
        %v843 = vld [vmem:[%s233 + $0x598] sm:$0xf]
        %v844 = vld [vmem:[%s233 + $0x59c] sm:$0xf]
        %v845 = vld [vmem:[%s233 + $0x5a0] sm:$0xf]
        %v846 = vld [vmem:[%s233 + $0x5a4] sm:$0xf]
        %v847 = vld [vmem:[%s233 + $0x5a8] sm:$0xf]
        %v848 = vld [vmem:[%s233 + $0x5ac] sm:$0xf]
        %v849 = vld [vmem:[%s233 + $0x5b0] sm:$0xf]
        %v850 = vld [vmem:[%s233 + $0x5b4] sm:$0xf]
        %v851 = vld [vmem:[%s233 + $0x5b8] sm:$0xf]
        %v852 = vld [vmem:[%s233 + $0x5bc] sm:$0xf]
        %v853 = vld [vmem:[%s233 + $0x5c0] sm:$0xf]
        %v854 = vld [vmem:[%s233 + $0x5c4] sm:$0xf]
        %v855 = vld [vmem:[%s233 + $0x5c8] sm:$0xf]
        %v856 = vld [vmem:[%s233 + $0x5cc] sm:$0xf]
        %v857 = vld [vmem:[%s233 + $0x5d0] sm:$0xf]
        %v858 = vld [vmem:[%s233 + $0x5d4] sm:$0xf]
        %v859 = vld [vmem:[%s233 + $0x5d8] sm:$0xf]
        %v860 = vld [vmem:[%s233 + $0x5dc] sm:$0xf]
        %v861 = vld [vmem:[%s233 + $0x5e0] sm:$0xf]
        %v862 = vld [vmem:[%s233 + $0x5e4] sm:$0xf]
        %v863 = vld [vmem:[%s233 + $0x5e8] sm:$0xf]
        %v864 = vld [vmem:[%s233 + $0x5ec] sm:$0xf]
        %v865 = vld [vmem:[%s233 + $0x5f0] sm:$0xf]
        %v866 = vld [vmem:[%s233 + $0x5f4] sm:$0xf]
        %v867 = vld [vmem:[%s233 + $0x5f8] sm:$0xf]
        %v868 = vld [vmem:[%s233 + $0x5fc] sm:$0xf]
        %v869 = vld [vmem:[%s233 + $0x600] sm:$0xf]
        %v870 = vld [vmem:[%s233 + $0x604] sm:$0xf]
        %v871 = vld [vmem:[%s233 + $0x608] sm:$0xf]
        %v872 = vld [vmem:[%s233 + $0x60c] sm:$0xf]
        %v873 = vld [vmem:[%s233 + $0x610] sm:$0xf]
        %v874 = vld [vmem:[%s233 + $0x614] sm:$0xf]
        %v875 = vld [vmem:[%s233 + $0x618] sm:$0xf]
        %v876 = vld [vmem:[%s233 + $0x61c] sm:$0xf]
        %v877 = vld [vmem:[%s233 + $0x620] sm:$0xf]
        %v878 = vld [vmem:[%s233 + $0x624] sm:$0xf]
        %v879 = vld [vmem:[%s233 + $0x628] sm:$0xf]
        %v880 = vld [vmem:[%s233 + $0x62c] sm:$0xf]
        %v881 = vld [vmem:[%s233 + $0x630] sm:$0xf]
        %v882 = vld [vmem:[%s233 + $0x634] sm:$0xf]
        %v883 = vld [vmem:[%s233 + $0x638] sm:$0xf]
        %v884 = vld [vmem:[%s233 + $0x63c] sm:$0xf]
        %v885 = vld [vmem:[%s233 + $0x640] sm:$0xf]
        %v886 = vld [vmem:[%s233 + $0x644] sm:$0xf]
        %v887 = vld [vmem:[%s233 + $0x648] sm:$0xf]
        %v888 = vld [vmem:[%s233 + $0x64c] sm:$0xf]
        %v889 = vld [vmem:[%s233 + $0x650] sm:$0xf]
        %v890 = vld [vmem:[%s233 + $0x654] sm:$0xf]
        %v891 = vld [vmem:[%s233 + $0x658] sm:$0xf]
        %v892 = vld [vmem:[%s233 + $0x65c] sm:$0xf]
        %v893 = vld [vmem:[%s233 + $0x660] sm:$0xf]
        %v894 = vld [vmem:[%s233 + $0x664] sm:$0xf]
        %v895 = vld [vmem:[%s233 + $0x668] sm:$0xf]
        %v896 = vld [vmem:[%s233 + $0x66c] sm:$0xf]
        %v897 = vld [vmem:[%s233 + $0x670] sm:$0xf]
        %v898 = vld [vmem:[%s233 + $0x674] sm:$0xf]
        %v899 = vld [vmem:[%s233 + $0x678] sm:$0xf]
        %v900 = vld [vmem:[%s233 + $0x67c] sm:$0xf]
        %v901 = vld [vmem:[%s233 + $0x680] sm:$0xf]
        %v902 = vld [vmem:[%s233 + $0x684] sm:$0xf]
        %v903 = vld [vmem:[%s233 + $0x688] sm:$0xf]
        %v904 = vld [vmem:[%s233 + $0x68c] sm:$0xf]
        %v905 = vld [vmem:[%s233 + $0x690] sm:$0xf]
        %v906 = vld [vmem:[%s233 + $0x694] sm:$0xf]
        %v907 = vld [vmem:[%s233 + $0x698] sm:$0xf]
        %v908 = vld [vmem:[%s233 + $0x69c] sm:$0xf]
        %v909 = vld [vmem:[%s233 + $0x6a0] sm:$0xf]
        %v910 = vld [vmem:[%s233 + $0x6a4] sm:$0xf]
        %v911 = vld [vmem:[%s233 + $0x6a8] sm:$0xf]
        %v912 = vld [vmem:[%s233 + $0x6ac] sm:$0xf]
        %v913 = vld [vmem:[%s233 + $0x6b0] sm:$0xf]
        %v914 = vld [vmem:[%s233 + $0x6b4] sm:$0xf]
        %v915 = vld [vmem:[%s233 + $0x6b8] sm:$0xf]
        %v916 = vld [vmem:[%s233 + $0x6bc] sm:$0xf]
        %v917 = vld [vmem:[%s233 + $0x6c0] sm:$0xf]
        %v918 = vld [vmem:[%s233 + $0x6c4] sm:$0xf]
        %v919 = vld [vmem:[%s233 + $0x6c8] sm:$0xf]
        %v920 = vld [vmem:[%s233 + $0x6cc] sm:$0xf]
        %v921 = vld [vmem:[%s233 + $0x6d0] sm:$0xf]
        %v922 = vld [vmem:[%s233 + $0x6d4] sm:$0xf]
        %v923 = vld [vmem:[%s233 + $0x6d8] sm:$0xf]
        %v924 = vld [vmem:[%s233 + $0x6dc] sm:$0xf]
        %v925 = vld [vmem:[%s233 + $0x6e0] sm:$0xf]
        %v926 = vld [vmem:[%s233 + $0x6e4] sm:$0xf]
        %v927 = vld [vmem:[%s233 + $0x6e8] sm:$0xf]
        %v928 = vld [vmem:[%s233 + $0x6ec] sm:$0xf]
        %v929 = vld [vmem:[%s233 + $0x6f0] sm:$0xf]
        %v930 = vld [vmem:[%s233 + $0x6f4] sm:$0xf]
        %v931 = vld [vmem:[%s233 + $0x6f8] sm:$0xf]
        %v932 = vld [vmem:[%s233 + $0x6fc] sm:$0xf]
        %v933 = vld [vmem:[%s233 + $0x700] sm:$0xf]
        %v934 = vld [vmem:[%s233 + $0x704] sm:$0xf]
        %v935 = vld [vmem:[%s233 + $0x708] sm:$0xf]
        %v936 = vld [vmem:[%s233 + $0x70c] sm:$0xf]
        %v937 = vld [vmem:[%s233 + $0x710] sm:$0xf]
        %v938 = vld [vmem:[%s233 + $0x714] sm:$0xf]
        %v939 = vld [vmem:[%s233 + $0x718] sm:$0xf]
        %v940 = vld [vmem:[%s233 + $0x71c] sm:$0xf]
        %v941 = vld [vmem:[%s233 + $0x720] sm:$0xf]
        %v942 = vld [vmem:[%s233 + $0x724] sm:$0xf]
        %v943 = vld [vmem:[%s233 + $0x728] sm:$0xf]
        %v944 = vld [vmem:[%s233 + $0x72c] sm:$0xf]
        %v945 = vld [vmem:[%s233 + $0x730] sm:$0xf]
        %v946 = vld [vmem:[%s233 + $0x734] sm:$0xf]
        %v947 = vld [vmem:[%s233 + $0x738] sm:$0xf]
        %v948 = vld [vmem:[%s233 + $0x73c] sm:$0xf]
        %v949 = vld [vmem:[%s233 + $0x740] sm:$0xf]
        %v950 = vld [vmem:[%s233 + $0x744] sm:$0xf]
        %v951 = vld [vmem:[%s233 + $0x748] sm:$0xf]
        %v952 = vld [vmem:[%s233 + $0x74c] sm:$0xf]
        %v953 = vld [vmem:[%s233 + $0x750] sm:$0xf]
        %v954 = vld [vmem:[%s233 + $0x754] sm:$0xf]
        %v955 = vld [vmem:[%s233 + $0x758] sm:$0xf]
        %v956 = vld [vmem:[%s233 + $0x75c] sm:$0xf]
        %v957 = vld [vmem:[%s233 + $0x760] sm:$0xf]
        %v958 = vld [vmem:[%s233 + $0x764] sm:$0xf]
        %v959 = vld [vmem:[%s233 + $0x768] sm:$0xf]
        %v960 = vld [vmem:[%s233 + $0x76c] sm:$0xf]
        %v961 = vld [vmem:[%s233 + $0x770] sm:$0xf]
        %v962 = vld [vmem:[%s233 + $0x774] sm:$0xf]
        %v963 = vld [vmem:[%s233 + $0x778] sm:$0xf]
        %v964 = vld [vmem:[%s233 + $0x77c] sm:$0xf]
        %v965 = vld [vmem:[%s233 + $0x780] sm:$0xf]
        %v966 = vld [vmem:[%s233 + $0x784] sm:$0xf]
        %v967 = vld [vmem:[%s233 + $0x788] sm:$0xf]
        %v968 = vld [vmem:[%s233 + $0x78c] sm:$0xf]
        %v969 = vld [vmem:[%s233 + $0x790] sm:$0xf]
        %v970 = vld [vmem:[%s233 + $0x794] sm:$0xf]
        %v971 = vld [vmem:[%s233 + $0x798] sm:$0xf]
        %v972 = vld [vmem:[%s233 + $0x79c] sm:$0xf]
        %v973 = vld [vmem:[%s233 + $0x7a0] sm:$0xf]
        %v974 = vld [vmem:[%s233 + $0x7a4] sm:$0xf]
        %v975 = vld [vmem:[%s233 + $0x7a8] sm:$0xf]
        %v976 = vld [vmem:[%s233 + $0x7ac] sm:$0xf]
        %v977 = vld [vmem:[%s233 + $0x7b0] sm:$0xf]
        %v978 = vld [vmem:[%s233 + $0x7b4] sm:$0xf]
        %v979 = vld [vmem:[%s233 + $0x7b8] sm:$0xf]
        %v980 = vld [vmem:[%s233 + $0x7bc] sm:$0xf]
        %v981 = vld [vmem:[%s233 + $0x7c0] sm:$0xf]
        %v982 = vld [vmem:[%s233 + $0x7c4] sm:$0xf]
        %v983 = vld [vmem:[%s233 + $0x7c8] sm:$0xf]
        %v984 = vld [vmem:[%s233 + $0x7cc] sm:$0xf]
        %v985 = vld [vmem:[%s233 + $0x7d0] sm:$0xf]
        %v986 = vld [vmem:[%s233 + $0x7d4] sm:$0xf]
        %v987 = vld [vmem:[%s233 + $0x7d8] sm:$0xf]
        %v988 = vld [vmem:[%s233 + $0x7dc] sm:$0xf]
        %v989 = vld [vmem:[%s233 + $0x7e0] sm:$0xf]
        %v990 = vld [vmem:[%s233 + $0x7e4] sm:$0xf]
        %v991 = vld [vmem:[%s233 + $0x7e8] sm:$0xf]
        %v992 = vld [vmem:[%s233 + $0x7ec] sm:$0xf]
        %v993 = vld [vmem:[%s233 + $0x7f0] sm:$0xf]
        %v994 = vld [vmem:[%s233 + $0x7f4] sm:$0xf]
        %v995 = vld [vmem:[%s233 + $0x7f8] sm:$0xf]
        %v996 = vld [vmem:[%s233 + $0x7fc] sm:$0xf]
        %v997 = vld [vmem:[%s233 + $0x800] sm:$0xf]
        %v998 = vld [vmem:[%s233 + $0x804] sm:$0xf]
        %v999 = vld [vmem:[%s233 + $0x808] sm:$0xf]
        %v1000 = vld [vmem:[%s233 + $0x80c] sm:$0xf]
        %v1001 = vld [vmem:[%s233 + $0x810] sm:$0xf]
        %v1002 = vld [vmem:[%s233 + $0x814] sm:$0xf]
        %v1003 = vld [vmem:[%s233 + $0x818] sm:$0xf]
        %v1004 = vld [vmem:[%s233 + $0x81c] sm:$0xf]
        %v1005 = vld [vmem:[%s233 + $0x820] sm:$0xf]
        %v1006 = vld [vmem:[%s233 + $0x824] sm:$0xf]
        %v1007 = vld [vmem:[%s233 + $0x828] sm:$0xf]
        %v1008 = vld [vmem:[%s233 + $0x82c] sm:$0xf]
        %v1009 = vld [vmem:[%s233 + $0x830] sm:$0xf]
        %v1010 = vld [vmem:[%s233 + $0x834] sm:$0xf]
        %v1011 = vld [vmem:[%s233 + $0x838] sm:$0xf]
        %v1012 = vld [vmem:[%s233 + $0x83c] sm:$0xf]
        %v1013 = vld [vmem:[%s233 + $0x840] sm:$0xf]
        %v1014 = vld [vmem:[%s233 + $0x844] sm:$0xf]
        %v1015 = vld [vmem:[%s233 + $0x848] sm:$0xf]
        %v1016 = vld [vmem:[%s233 + $0x84c] sm:$0xf]
        %v1017 = vld [vmem:[%s233 + $0x850] sm:$0xf]
        %v1018 = vld [vmem:[%s233 + $0x854] sm:$0xf]
        %v1019 = vld [vmem:[%s233 + $0x858] sm:$0xf]
        %v1020 = vld [vmem:[%s233 + $0x85c] sm:$0xf]
        %v1021 = vld [vmem:[%s233 + $0x860] sm:$0xf]
        %v1022 = vld [vmem:[%s233 + $0x864] sm:$0xf]
        %v1023 = vld [vmem:[%s233 + $0x868] sm:$0xf]
        %v1024 = vld [vmem:[%s233 + $0x86c] sm:$0xf]
        %v1025 = vld [vmem:[%s233 + $0x870] sm:$0xf]
        %v1026 = vld [vmem:[%s233 + $0x874] sm:$0xf]
        %v1027 = vld [vmem:[%s233 + $0x878] sm:$0xf]
        %v1028 = vld [vmem:[%s233 + $0x87c] sm:$0xf]
        %v1029 = vld [vmem:[%s233 + $0x880] sm:$0xf]
        %v1030 = vld [vmem:[%s233 + $0x884] sm:$0xf]
        %v1031 = vld [vmem:[%s233 + $0x888] sm:$0xf]
        %v1032 = vld [vmem:[%s233 + $0x88c] sm:$0xf]
        %v1033 = vld [vmem:[%s233 + $0x890] sm:$0xf]
        %v1034 = vld [vmem:[%s233 + $0x894] sm:$0xf]
        %v1035 = vld [vmem:[%s233 + $0x898] sm:$0xf]
        %v1036 = vld [vmem:[%s233 + $0x89c] sm:$0xf]
        %v1037 = vld [vmem:[%s233 + $0x8a0] sm:$0xf]
        %v1038 = vld [vmem:[%s233 + $0x8a4] sm:$0xf]
        %v1039 = vld [vmem:[%s233 + $0x8a8] sm:$0xf]
        %v1040 = vld [vmem:[%s233 + $0x8ac] sm:$0xf]
        %v1041 = vld [vmem:[%s233 + $0x8b0] sm:$0xf]
        %v1042 = vld [vmem:[%s233 + $0x8b4] sm:$0xf]
        %v1043 = vld [vmem:[%s233 + $0x8b8] sm:$0xf]
        %v1044 = vld [vmem:[%s233 + $0x8bc] sm:$0xf]
        %v1045 = vld [vmem:[%s233 + $0x8c0] sm:$0xf]
        %v1046 = vld [vmem:[%s233 + $0x8c4] sm:$0xf]
        %v1047 = vld [vmem:[%s233 + $0x8c8] sm:$0xf]
        %v1048 = vld [vmem:[%s233 + $0x8cc] sm:$0xf]
        %v1049 = vld [vmem:[%s233 + $0x8d0] sm:$0xf]
        %v1050 = vld [vmem:[%s233 + $0x8d4] sm:$0xf]
        %v1051 = vld [vmem:[%s233 + $0x8d8] sm:$0xf]
        %v1052 = vld [vmem:[%s233 + $0x8dc] sm:$0xf]
        %v1053 = vld [vmem:[%s233 + $0x8e0] sm:$0xf]
        %v1054 = vld [vmem:[%s233 + $0x8e4] sm:$0xf]
        %v1055 = vld [vmem:[%s233 + $0x8e8] sm:$0xf]
        %v1056 = vld [vmem:[%s233 + $0x8ec] sm:$0xf]
        %v1057 = vld [vmem:[%s233 + $0x8f0] sm:$0xf]
        %v1058 = vld [vmem:[%s233 + $0x8f4] sm:$0xf]
        %v1059 = vld [vmem:[%s233 + $0x8f8] sm:$0xf]
        %v1060 = vld [vmem:[%s233 + $0x8fc] sm:$0xf]
        %v1637 = vunpack.c.l.b16 %v485
        %v1638 = vunpack.c.l.b16 %v486
        %v1639 = vunpack.c.l.b16 %v487
        %v1640 = vunpack.c.l.b16 %v488
        %v1641 = vunpack.c.l.b16 %v489
        %v1642 = vunpack.c.l.b16 %v490
        %v1643 = vunpack.c.l.b16 %v491
        %v1644 = vunpack.c.l.b16 %v492
        %v1645 = vunpack.c.l.b16 %v493
        %v1646 = vunpack.c.l.b16 %v494
        %v1647 = vunpack.c.l.b16 %v495
        %v1648 = vunpack.c.l.b16 %v496
        %v1649 = vunpack.c.l.b16 %v497
        %v1650 = vunpack.c.l.b16 %v498
        %v1651 = vunpack.c.l.b16 %v499
        %v1652 = vunpack.c.l.b16 %v500
        %v1653 = vunpack.c.l.b16 %v501
        %v1654 = vunpack.c.l.b16 %v502
        %v1655 = vunpack.c.l.b16 %v503
        %v1656 = vunpack.c.l.b16 %v504
        %v1657 = vunpack.c.l.b16 %v505
        %v1658 = vunpack.c.l.b16 %v506
        %v1659 = vunpack.c.l.b16 %v507
        %v1660 = vunpack.c.l.b16 %v508
        %v1661 = vunpack.c.l.b16 %v509
        %v1662 = vunpack.c.l.b16 %v510
        %v1663 = vunpack.c.l.b16 %v511
        %v1664 = vunpack.c.l.b16 %v512
        %v1665 = vunpack.c.l.b16 %v513
        %v1666 = vunpack.c.l.b16 %v514
        %v1667 = vunpack.c.l.b16 %v515
        %v1668 = vunpack.c.l.b16 %v516
        %v1669 = vunpack.c.l.b16 %v517
        %v1670 = vunpack.c.l.b16 %v518
        %v1671 = vunpack.c.l.b16 %v519
        %v1672 = vunpack.c.l.b16 %v520
        %v1673 = vunpack.c.l.b16 %v521
        %v1674 = vunpack.c.l.b16 %v522
        %v1675 = vunpack.c.l.b16 %v523
        %v1676 = vunpack.c.l.b16 %v524
        %v1677 = vunpack.c.l.b16 %v525
        %v1678 = vunpack.c.l.b16 %v526
        %v1679 = vunpack.c.l.b16 %v527
        %v1680 = vunpack.c.l.b16 %v528
        %v1681 = vunpack.c.l.b16 %v529
        %v1682 = vunpack.c.l.b16 %v530
        %v1683 = vunpack.c.l.b16 %v531
        %v1684 = vunpack.c.l.b16 %v532
        %v1685 = vunpack.c.l.b16 %v533
        %v1686 = vunpack.c.l.b16 %v534
        %v1687 = vunpack.c.l.b16 %v535
        %v1688 = vunpack.c.l.b16 %v536
        %v1689 = vunpack.c.l.b16 %v537
        %v1690 = vunpack.c.l.b16 %v538
        %v1691 = vunpack.c.l.b16 %v539
        %v1692 = vunpack.c.l.b16 %v540
        %v1693 = vunpack.c.l.b16 %v541
        %v1694 = vunpack.c.l.b16 %v542
        %v1695 = vunpack.c.l.b16 %v543
        %v1696 = vunpack.c.l.b16 %v544
        %v1697 = vunpack.c.l.b16 %v545
        %v1698 = vunpack.c.l.b16 %v546
        %v1699 = vunpack.c.l.b16 %v547
        %v1700 = vunpack.c.l.b16 %v548
        %v1701 = vunpack.c.l.b16 %v549
        %v1702 = vunpack.c.l.b16 %v550
        %v1703 = vunpack.c.l.b16 %v551
        %v1704 = vunpack.c.l.b16 %v552
        %v1705 = vunpack.c.l.b16 %v553
        %v1706 = vunpack.c.l.b16 %v554
        %v1707 = vunpack.c.l.b16 %v555
        %v1708 = vunpack.c.l.b16 %v556
        %v1709 = vunpack.c.l.b16 %v557
        %v1710 = vunpack.c.l.b16 %v558
        %v1711 = vunpack.c.l.b16 %v559
        %v1712 = vunpack.c.l.b16 %v560
        %v1713 = vunpack.c.l.b16 %v561
        %v1714 = vunpack.c.l.b16 %v562
        %v1715 = vunpack.c.l.b16 %v563
        %v1716 = vunpack.c.l.b16 %v564
        %v1717 = vunpack.c.l.b16 %v565
        %v1718 = vunpack.c.l.b16 %v566
        %v1719 = vunpack.c.l.b16 %v567
        %v1720 = vunpack.c.l.b16 %v568
        %v1721 = vunpack.c.l.b16 %v569
        %v1722 = vunpack.c.l.b16 %v570
        %v1723 = vunpack.c.l.b16 %v571
        %v1724 = vunpack.c.l.b16 %v572
        %v1725 = vunpack.c.l.b16 %v573
        %v1726 = vunpack.c.l.b16 %v574
        %v1727 = vunpack.c.l.b16 %v575
        %v1728 = vunpack.c.l.b16 %v576
        %v1729 = vunpack.c.l.b16 %v577
        %v1730 = vunpack.c.l.b16 %v578
        %v1731 = vunpack.c.l.b16 %v579
        %v1732 = vunpack.c.l.b16 %v580
        %v1733 = vunpack.c.l.b16 %v581
        %v1734 = vunpack.c.l.b16 %v582
        %v1735 = vunpack.c.l.b16 %v583
        %v1736 = vunpack.c.l.b16 %v584
        %v1737 = vunpack.c.l.b16 %v585
        %v1738 = vunpack.c.l.b16 %v586
        %v1739 = vunpack.c.l.b16 %v587
        %v1740 = vunpack.c.l.b16 %v588
        %v1741 = vunpack.c.l.b16 %v589
        %v1742 = vunpack.c.l.b16 %v590
        %v1743 = vunpack.c.l.b16 %v591
        %v1744 = vunpack.c.l.b16 %v592
        %v1745 = vunpack.c.l.b16 %v593
        %v1746 = vunpack.c.l.b16 %v594
        %v1747 = vunpack.c.l.b16 %v595
        %v1748 = vunpack.c.l.b16 %v596
        %v1749 = vunpack.c.l.b16 %v597
        %v1750 = vunpack.c.l.b16 %v598
        %v1751 = vunpack.c.l.b16 %v599
        %v1752 = vunpack.c.l.b16 %v600
        %v1753 = vunpack.c.l.b16 %v601
        %v1754 = vunpack.c.l.b16 %v602
        %v1755 = vunpack.c.l.b16 %v603
        %v1756 = vunpack.c.l.b16 %v604
        %v1757 = vunpack.c.l.b16 %v605
        %v1758 = vunpack.c.l.b16 %v606
        %v1759 = vunpack.c.l.b16 %v607
        %v1760 = vunpack.c.l.b16 %v608
        %v1761 = vunpack.c.l.b16 %v609
        %v1762 = vunpack.c.l.b16 %v610
        %v1763 = vunpack.c.l.b16 %v611
        %v1764 = vunpack.c.l.b16 %v612
        %v1765 = vunpack.c.l.b16 %v613
        %v1766 = vunpack.c.l.b16 %v614
        %v1767 = vunpack.c.l.b16 %v615
        %v1768 = vunpack.c.l.b16 %v616
        %v1769 = vunpack.c.l.b16 %v617
        %v1770 = vunpack.c.l.b16 %v618
        %v1771 = vunpack.c.l.b16 %v619
        %v1772 = vunpack.c.l.b16 %v620
        %v1773 = vunpack.c.l.b16 %v621
        %v1774 = vunpack.c.l.b16 %v622
        %v1775 = vunpack.c.l.b16 %v623
        %v1776 = vunpack.c.l.b16 %v624
        %v1777 = vunpack.c.l.b16 %v625
        %v1778 = vunpack.c.l.b16 %v626
        %v1779 = vunpack.c.l.b16 %v627
        %v1780 = vunpack.c.l.b16 %v628
        %v1781 = vunpack.c.l.b16 %v629
        %v1782 = vunpack.c.l.b16 %v630
        %v1783 = vunpack.c.l.b16 %v631
        %v1784 = vunpack.c.l.b16 %v632
        %v1785 = vunpack.c.l.b16 %v633
        %v1786 = vunpack.c.l.b16 %v634
        %v1787 = vunpack.c.l.b16 %v635
        %v1788 = vunpack.c.l.b16 %v636
        %v1789 = vunpack.c.l.b16 %v637
        %v1790 = vunpack.c.l.b16 %v638
        %v1791 = vunpack.c.l.b16 %v639
        %v1792 = vunpack.c.l.b16 %v640
        %v1793 = vunpack.c.l.b16 %v641
        %v1794 = vunpack.c.l.b16 %v642
        %v1795 = vunpack.c.l.b16 %v643
        %v1796 = vunpack.c.l.b16 %v644
        %v1797 = vunpack.c.l.b16 %v645
        %v1798 = vunpack.c.l.b16 %v646
        %v1799 = vunpack.c.l.b16 %v647
        %v1800 = vunpack.c.l.b16 %v648
        %v1801 = vunpack.c.l.b16 %v649
        %v1802 = vunpack.c.l.b16 %v650
        %v1803 = vunpack.c.l.b16 %v651
        %v1804 = vunpack.c.l.b16 %v652
        %v1805 = vunpack.c.l.b16 %v653
        %v1806 = vunpack.c.l.b16 %v654
        %v1807 = vunpack.c.l.b16 %v655
        %v1808 = vunpack.c.l.b16 %v656
        %v1809 = vunpack.c.l.b16 %v657
        %v1810 = vunpack.c.l.b16 %v658
        %v1811 = vunpack.c.l.b16 %v659
        %v1812 = vunpack.c.l.b16 %v660
        %v1813 = vunpack.c.l.b16 %v661
        %v1814 = vunpack.c.l.b16 %v662
        %v1815 = vunpack.c.l.b16 %v663
        %v1816 = vunpack.c.l.b16 %v664
        %v1817 = vunpack.c.l.b16 %v665
        %v1818 = vunpack.c.l.b16 %v666
        %v1819 = vunpack.c.l.b16 %v667
        %v1820 = vunpack.c.l.b16 %v668
        %v1821 = vunpack.c.l.b16 %v669
        %v1822 = vunpack.c.l.b16 %v670
        %v1823 = vunpack.c.l.b16 %v671
        %v1824 = vunpack.c.l.b16 %v672
        %v1825 = vunpack.c.l.b16 %v673
        %v1826 = vunpack.c.l.b16 %v674
        %v1827 = vunpack.c.l.b16 %v675
        %v1828 = vunpack.c.l.b16 %v676
        %v1829 = vunpack.c.l.b16 %v677
        %v1830 = vunpack.c.l.b16 %v678
        %v1831 = vunpack.c.l.b16 %v679
        %v1832 = vunpack.c.l.b16 %v680
        %v1833 = vunpack.c.l.b16 %v681
        %v1834 = vunpack.c.l.b16 %v682
        %v1835 = vunpack.c.l.b16 %v683
        %v1836 = vunpack.c.l.b16 %v684
        %v1837 = vunpack.c.l.b16 %v685
        %v1838 = vunpack.c.l.b16 %v686
        %v1839 = vunpack.c.l.b16 %v687
        %v1840 = vunpack.c.l.b16 %v688
        %v1841 = vunpack.c.l.b16 %v689
        %v1842 = vunpack.c.l.b16 %v690
        %v1843 = vunpack.c.l.b16 %v691
        %v1844 = vunpack.c.l.b16 %v692
        %v1845 = vunpack.c.l.b16 %v693
        %v1846 = vunpack.c.l.b16 %v694
        %v1847 = vunpack.c.l.b16 %v695
        %v1848 = vunpack.c.l.b16 %v696
        %v1849 = vunpack.c.l.b16 %v697
        %v1850 = vunpack.c.l.b16 %v698
        %v1851 = vunpack.c.l.b16 %v699
        %v1852 = vunpack.c.l.b16 %v700
        %v1853 = vunpack.c.l.b16 %v701
        %v1854 = vunpack.c.l.b16 %v702
        %v1855 = vunpack.c.l.b16 %v703
        %v1856 = vunpack.c.l.b16 %v704
        %v1857 = vunpack.c.l.b16 %v705
        %v1858 = vunpack.c.l.b16 %v706
        %v1859 = vunpack.c.l.b16 %v707
        %v1860 = vunpack.c.l.b16 %v708
        %v1861 = vunpack.c.l.b16 %v709
        %v1862 = vunpack.c.l.b16 %v710
        %v1863 = vunpack.c.l.b16 %v711
        %v1864 = vunpack.c.l.b16 %v712
        %v1865 = vunpack.c.l.b16 %v713
        %v1866 = vunpack.c.l.b16 %v714
        %v1867 = vunpack.c.l.b16 %v715
        %v1868 = vunpack.c.l.b16 %v716
        %v1869 = vunpack.c.l.b16 %v717
        %v1870 = vunpack.c.l.b16 %v718
        %v1871 = vunpack.c.l.b16 %v719
        %v1872 = vunpack.c.l.b16 %v720
        %v1873 = vunpack.c.l.b16 %v721
        %v1874 = vunpack.c.l.b16 %v722
        %v1875 = vunpack.c.l.b16 %v723
        %v1876 = vunpack.c.l.b16 %v724
        %v1877 = vunpack.c.l.b16 %v725
        %v1878 = vunpack.c.l.b16 %v726
        %v1879 = vunpack.c.l.b16 %v727
        %v1880 = vunpack.c.l.b16 %v728
        %v1881 = vunpack.c.l.b16 %v729
        %v1882 = vunpack.c.l.b16 %v730
        %v1883 = vunpack.c.l.b16 %v731
        %v1884 = vunpack.c.l.b16 %v732
        %v1885 = vunpack.c.l.b16 %v733
        %v1886 = vunpack.c.l.b16 %v734
        %v1887 = vunpack.c.l.b16 %v735
        %v1888 = vunpack.c.l.b16 %v736
        %v1889 = vunpack.c.l.b16 %v737
        %v1890 = vunpack.c.l.b16 %v738
        %v1891 = vunpack.c.l.b16 %v739
        %v1892 = vunpack.c.l.b16 %v740
        %v1893 = vunpack.c.l.b16 %v741
        %v1894 = vunpack.c.l.b16 %v742
        %v1895 = vunpack.c.l.b16 %v743
        %v1896 = vunpack.c.l.b16 %v744
        %v1897 = vunpack.c.l.b16 %v745
        %v1898 = vunpack.c.l.b16 %v746
        %v1899 = vunpack.c.l.b16 %v747
        %v1900 = vunpack.c.l.b16 %v748
        %v1901 = vunpack.c.l.b16 %v749
        %v1902 = vunpack.c.l.b16 %v750
        %v1903 = vunpack.c.l.b16 %v751
        %v1904 = vunpack.c.l.b16 %v752
        %v1905 = vunpack.c.l.b16 %v753
        %v1906 = vunpack.c.l.b16 %v754
        %v1907 = vunpack.c.l.b16 %v755
        %v1908 = vunpack.c.l.b16 %v756
        %v1909 = vunpack.c.l.b16 %v757
        %v1910 = vunpack.c.l.b16 %v758
        %v1911 = vunpack.c.l.b16 %v759
        %v1912 = vunpack.c.l.b16 %v760
        %v1913 = vunpack.c.l.b16 %v761
        %v1914 = vunpack.c.l.b16 %v762
        %v1915 = vunpack.c.l.b16 %v763
        %v1916 = vunpack.c.l.b16 %v764
        %v1917 = vunpack.c.l.b16 %v765
        %v1918 = vunpack.c.l.b16 %v766
        %v1919 = vunpack.c.l.b16 %v767
        %v1920 = vunpack.c.l.b16 %v768
        %v1921 = vunpack.c.l.b16 %v769
        %v1922 = vunpack.c.l.b16 %v770
        %v1923 = vunpack.c.l.b16 %v771
        %v1924 = vunpack.c.l.b16 %v772
        %v1925 = vunpack.c.l.b16 %v773
        %v1926 = vunpack.c.l.b16 %v774
        %v1927 = vunpack.c.l.b16 %v775
        %v1928 = vunpack.c.l.b16 %v776
        %v1929 = vunpack.c.l.b16 %v777
        %v1930 = vunpack.c.l.b16 %v778
        %v1931 = vunpack.c.l.b16 %v779
        %v1932 = vunpack.c.l.b16 %v780
        %v1933 = vunpack.c.l.b16 %v781
        %v1934 = vunpack.c.l.b16 %v782
        %v1935 = vunpack.c.l.b16 %v783
        %v1936 = vunpack.c.l.b16 %v784
        %v1937 = vunpack.c.l.b16 %v785
        %v1938 = vunpack.c.l.b16 %v786
        %v1939 = vunpack.c.l.b16 %v787
        %v1940 = vunpack.c.l.b16 %v788
        %v1941 = vunpack.c.l.b16 %v789
        %v1942 = vunpack.c.l.b16 %v790
        %v1943 = vunpack.c.l.b16 %v791
        %v1944 = vunpack.c.l.b16 %v792
        %v1945 = vunpack.c.l.b16 %v793
        %v1946 = vunpack.c.l.b16 %v794
        %v1947 = vunpack.c.l.b16 %v795
        %v1948 = vunpack.c.l.b16 %v796
        %v1949 = vunpack.c.l.b16 %v797
        %v1950 = vunpack.c.l.b16 %v798
        %v1951 = vunpack.c.l.b16 %v799
        %v1952 = vunpack.c.l.b16 %v800
        %v1953 = vunpack.c.l.b16 %v801
        %v1954 = vunpack.c.l.b16 %v802
        %v1955 = vunpack.c.l.b16 %v803
        %v1956 = vunpack.c.l.b16 %v804
        %v1957 = vunpack.c.l.b16 %v805
        %v1958 = vunpack.c.l.b16 %v806
        %v1959 = vunpack.c.l.b16 %v807
        %v1960 = vunpack.c.l.b16 %v808
        %v1961 = vunpack.c.l.b16 %v809
        %v1962 = vunpack.c.l.b16 %v810
        %v1963 = vunpack.c.l.b16 %v811
        %v1964 = vunpack.c.l.b16 %v812
        %v1965 = vunpack.c.l.b16 %v813
        %v1966 = vunpack.c.l.b16 %v814
        %v1967 = vunpack.c.l.b16 %v815
        %v1968 = vunpack.c.l.b16 %v816
        %v1969 = vunpack.c.l.b16 %v817
        %v1970 = vunpack.c.l.b16 %v818
        %v1971 = vunpack.c.l.b16 %v819
        %v1972 = vunpack.c.l.b16 %v820
        %v1973 = vunpack.c.l.b16 %v821
        %v1974 = vunpack.c.l.b16 %v822
        %v1975 = vunpack.c.l.b16 %v823
        %v1976 = vunpack.c.l.b16 %v824
        %v1977 = vunpack.c.l.b16 %v825
        %v1978 = vunpack.c.l.b16 %v826
        %v1979 = vunpack.c.l.b16 %v827
        %v1980 = vunpack.c.l.b16 %v828
        %v1981 = vunpack.c.l.b16 %v829
        %v1982 = vunpack.c.l.b16 %v830
        %v1983 = vunpack.c.l.b16 %v831
        %v1984 = vunpack.c.l.b16 %v832
        %v1985 = vunpack.c.l.b16 %v833
        %v1986 = vunpack.c.l.b16 %v834
        %v1987 = vunpack.c.l.b16 %v835
        %v1988 = vunpack.c.l.b16 %v836
        %v1989 = vunpack.c.l.b16 %v837
        %v1990 = vunpack.c.l.b16 %v838
        %v1991 = vunpack.c.l.b16 %v839
        %v1992 = vunpack.c.l.b16 %v840
        %v1993 = vunpack.c.l.b16 %v841
        %v1994 = vunpack.c.l.b16 %v842
        %v1995 = vunpack.c.l.b16 %v843
        %v1996 = vunpack.c.l.b16 %v844
        %v1997 = vunpack.c.l.b16 %v845
        %v1998 = vunpack.c.l.b16 %v846
        %v1999 = vunpack.c.l.b16 %v847
        %v2000 = vunpack.c.l.b16 %v848
        %v2001 = vunpack.c.l.b16 %v849
        %v2002 = vunpack.c.l.b16 %v850
        %v2003 = vunpack.c.l.b16 %v851
        %v2004 = vunpack.c.l.b16 %v852
        %v2005 = vunpack.c.l.b16 %v853
        %v2006 = vunpack.c.l.b16 %v854
        %v2007 = vunpack.c.l.b16 %v855
        %v2008 = vunpack.c.l.b16 %v856
        %v2009 = vunpack.c.l.b16 %v857
        %v2010 = vunpack.c.l.b16 %v858
        %v2011 = vunpack.c.l.b16 %v859
        %v2012 = vunpack.c.l.b16 %v860
        %v2013 = vunpack.c.l.b16 %v861
        %v2014 = vunpack.c.l.b16 %v862
        %v2015 = vunpack.c.l.b16 %v863
        %v2016 = vunpack.c.l.b16 %v864
        %v2017 = vunpack.c.l.b16 %v865
        %v2018 = vunpack.c.l.b16 %v866
        %v2019 = vunpack.c.l.b16 %v867
        %v2020 = vunpack.c.l.b16 %v868
        %v2021 = vunpack.c.l.b16 %v869
        %v2022 = vunpack.c.l.b16 %v870
        %v2023 = vunpack.c.l.b16 %v871
        %v2024 = vunpack.c.l.b16 %v872
        %v2025 = vunpack.c.l.b16 %v873
        %v2026 = vunpack.c.l.b16 %v874
        %v2027 = vunpack.c.l.b16 %v875
        %v2028 = vunpack.c.l.b16 %v876
        %v2029 = vunpack.c.l.b16 %v877
        %v2030 = vunpack.c.l.b16 %v878
        %v2031 = vunpack.c.l.b16 %v879
        %v2032 = vunpack.c.l.b16 %v880
        %v2033 = vunpack.c.l.b16 %v881
        %v2034 = vunpack.c.l.b16 %v882
        %v2035 = vunpack.c.l.b16 %v883
        %v2036 = vunpack.c.l.b16 %v884
        %v2037 = vunpack.c.l.b16 %v885
        %v2038 = vunpack.c.l.b16 %v886
        %v2039 = vunpack.c.l.b16 %v887
        %v2040 = vunpack.c.l.b16 %v888
        %v2041 = vunpack.c.l.b16 %v889
        %v2042 = vunpack.c.l.b16 %v890
        %v2043 = vunpack.c.l.b16 %v891
        %v2044 = vunpack.c.l.b16 %v892
        %v2045 = vunpack.c.l.b16 %v893
        %v2046 = vunpack.c.l.b16 %v894
        %v2047 = vunpack.c.l.b16 %v895
        %v2048 = vunpack.c.l.b16 %v896
        %v2049 = vunpack.c.l.b16 %v897
        %v2050 = vunpack.c.l.b16 %v898
        %v2051 = vunpack.c.l.b16 %v899
        %v2052 = vunpack.c.l.b16 %v900
        %v2053 = vunpack.c.l.b16 %v901
        %v2054 = vunpack.c.l.b16 %v902
        %v2055 = vunpack.c.l.b16 %v903
        %v2056 = vunpack.c.l.b16 %v904
        %v2057 = vunpack.c.l.b16 %v905
        %v2058 = vunpack.c.l.b16 %v906
        %v2059 = vunpack.c.l.b16 %v907
        %v2060 = vunpack.c.l.b16 %v908
        %v2061 = vunpack.c.l.b16 %v909
        %v2062 = vunpack.c.l.b16 %v910
        %v2063 = vunpack.c.l.b16 %v911
        %v2064 = vunpack.c.l.b16 %v912
        %v2065 = vunpack.c.l.b16 %v913
        %v2066 = vunpack.c.l.b16 %v914
        %v2067 = vunpack.c.l.b16 %v915
        %v2068 = vunpack.c.l.b16 %v916
        %v2069 = vunpack.c.l.b16 %v917
        %v2070 = vunpack.c.l.b16 %v918
        %v2071 = vunpack.c.l.b16 %v919
        %v2072 = vunpack.c.l.b16 %v920
        %v2073 = vunpack.c.l.b16 %v921
        %v2074 = vunpack.c.l.b16 %v922
        %v2075 = vunpack.c.l.b16 %v923
        %v2076 = vunpack.c.l.b16 %v924
        %v2077 = vunpack.c.l.b16 %v925
        %v2078 = vunpack.c.l.b16 %v926
        %v2079 = vunpack.c.l.b16 %v927
        %v2080 = vunpack.c.l.b16 %v928
        %v2081 = vunpack.c.l.b16 %v929
        %v2082 = vunpack.c.l.b16 %v930
        %v2083 = vunpack.c.l.b16 %v931
        %v2084 = vunpack.c.l.b16 %v932
        %v2085 = vunpack.c.l.b16 %v933
        %v2086 = vunpack.c.l.b16 %v934
        %v2087 = vunpack.c.l.b16 %v935
        %v2088 = vunpack.c.l.b16 %v936
        %v2089 = vunpack.c.l.b16 %v937
        %v2090 = vunpack.c.l.b16 %v938
        %v2091 = vunpack.c.l.b16 %v939
        %v2092 = vunpack.c.l.b16 %v940
        %v2093 = vunpack.c.l.b16 %v941
        %v2094 = vunpack.c.l.b16 %v942
        %v2095 = vunpack.c.l.b16 %v943
        %v2096 = vunpack.c.l.b16 %v944
        %v2097 = vunpack.c.l.b16 %v945
        %v2098 = vunpack.c.l.b16 %v946
        %v2099 = vunpack.c.l.b16 %v947
        %v2100 = vunpack.c.l.b16 %v948
        %v2101 = vunpack.c.l.b16 %v949
        %v2102 = vunpack.c.l.b16 %v950
        %v2103 = vunpack.c.l.b16 %v951
        %v2104 = vunpack.c.l.b16 %v952
        %v2105 = vunpack.c.l.b16 %v953
        %v2106 = vunpack.c.l.b16 %v954
        %v2107 = vunpack.c.l.b16 %v955
        %v2108 = vunpack.c.l.b16 %v956
        %v2109 = vunpack.c.l.b16 %v957
        %v2110 = vunpack.c.l.b16 %v958
        %v2111 = vunpack.c.l.b16 %v959
        %v2112 = vunpack.c.l.b16 %v960
        %v2113 = vunpack.c.l.b16 %v961
        %v2114 = vunpack.c.l.b16 %v962
        %v2115 = vunpack.c.l.b16 %v963
        %v2116 = vunpack.c.l.b16 %v964
        %v2117 = vunpack.c.l.b16 %v965
        %v2118 = vunpack.c.l.b16 %v966
        %v2119 = vunpack.c.l.b16 %v967
        %v2120 = vunpack.c.l.b16 %v968
        %v2121 = vunpack.c.l.b16 %v969
        %v2122 = vunpack.c.l.b16 %v970
        %v2123 = vunpack.c.l.b16 %v971
        %v2124 = vunpack.c.l.b16 %v972
        %v2125 = vunpack.c.l.b16 %v973
        %v2126 = vunpack.c.l.b16 %v974
        %v2127 = vunpack.c.l.b16 %v975
        %v2128 = vunpack.c.l.b16 %v976
        %v2129 = vunpack.c.l.b16 %v977
        %v2130 = vunpack.c.l.b16 %v978
        %v2131 = vunpack.c.l.b16 %v979
        %v2132 = vunpack.c.l.b16 %v980
        %v2133 = vunpack.c.l.b16 %v981
        %v2134 = vunpack.c.l.b16 %v982
        %v2135 = vunpack.c.l.b16 %v983
        %v2136 = vunpack.c.l.b16 %v984
        %v2137 = vunpack.c.l.b16 %v985
        %v2138 = vunpack.c.l.b16 %v986
        %v2139 = vunpack.c.l.b16 %v987
        %v2140 = vunpack.c.l.b16 %v988
        %v2141 = vunpack.c.l.b16 %v989
        %v2142 = vunpack.c.l.b16 %v990
        %v2143 = vunpack.c.l.b16 %v991
        %v2144 = vunpack.c.l.b16 %v992
        %v2145 = vunpack.c.l.b16 %v993
        %v2146 = vunpack.c.l.b16 %v994
        %v2147 = vunpack.c.l.b16 %v995
        %v2148 = vunpack.c.l.b16 %v996
        %v2149 = vunpack.c.l.b16 %v997
        %v2150 = vunpack.c.l.b16 %v998
        %v2151 = vunpack.c.l.b16 %v999
        %v2152 = vunpack.c.l.b16 %v1000
        %v2153 = vunpack.c.l.b16 %v1001
        %v2154 = vunpack.c.l.b16 %v1002
        %v2155 = vunpack.c.l.b16 %v1003
        %v2156 = vunpack.c.l.b16 %v1004
        %v2157 = vunpack.c.l.b16 %v1005
        %v2158 = vunpack.c.l.b16 %v1006
        %v2159 = vunpack.c.l.b16 %v1007
        %v2160 = vunpack.c.l.b16 %v1008
        %v2161 = vunpack.c.l.b16 %v1009
        %v2162 = vunpack.c.l.b16 %v1010
        %v2163 = vunpack.c.l.b16 %v1011
        %v2164 = vunpack.c.l.b16 %v1012
        %v2165 = vunpack.c.l.b16 %v1013
        %v2166 = vunpack.c.l.b16 %v1014
        %v2167 = vunpack.c.l.b16 %v1015
        %v2168 = vunpack.c.l.b16 %v1016
        %v2169 = vunpack.c.l.b16 %v1017
        %v2170 = vunpack.c.l.b16 %v1018
        %v2171 = vunpack.c.l.b16 %v1019
        %v2172 = vunpack.c.l.b16 %v1020
        %v2173 = vunpack.c.l.b16 %v1021
        %v2174 = vunpack.c.l.b16 %v1022
        %v2175 = vunpack.c.l.b16 %v1023
        %v2176 = vunpack.c.l.b16 %v1024
        %v2177 = vunpack.c.l.b16 %v1025
        %v2178 = vunpack.c.l.b16 %v1026
        %v2179 = vunpack.c.l.b16 %v1027
        %v2180 = vunpack.c.l.b16 %v1028
        %v2181 = vunpack.c.l.b16 %v1029
        %v2182 = vunpack.c.l.b16 %v1030
        %v2183 = vunpack.c.l.b16 %v1031
        %v2184 = vunpack.c.l.b16 %v1032
        %v2185 = vunpack.c.l.b16 %v1033
        %v2186 = vunpack.c.l.b16 %v1034
        %v2187 = vunpack.c.l.b16 %v1035
        %v2188 = vunpack.c.l.b16 %v1036
        %v2189 = vunpack.c.l.b16 %v1037
        %v2190 = vunpack.c.l.b16 %v1038
        %v2191 = vunpack.c.l.b16 %v1039
        %v2192 = vunpack.c.l.b16 %v1040
        %v2193 = vunpack.c.l.b16 %v1041
        %v2194 = vunpack.c.l.b16 %v1042
        %v2195 = vunpack.c.l.b16 %v1043
        %v2196 = vunpack.c.l.b16 %v1044
        %v2197 = vunpack.c.l.b16 %v1045
        %v2198 = vunpack.c.l.b16 %v1046
        %v2199 = vunpack.c.l.b16 %v1047
        %v2200 = vunpack.c.l.b16 %v1048
        %v2201 = vunpack.c.l.b16 %v1049
        %v2202 = vunpack.c.l.b16 %v1050
        %v2203 = vunpack.c.l.b16 %v1051
        %v2204 = vunpack.c.l.b16 %v1052
        %v2205 = vunpack.c.l.b16 %v1053
        %v2206 = vunpack.c.l.b16 %v1054
        %v2207 = vunpack.c.l.b16 %v1055
        %v2208 = vunpack.c.l.b16 %v1056
        %v2209 = vunpack.c.l.b16 %v1057
        %v2210 = vunpack.c.l.b16 %v1058
        %v2211 = vunpack.c.l.b16 %v1059
        %v2212 = vunpack.c.l.b16 %v1060
        %v2213 = vpack.c.b16 %v1638, %v1637
        %v2214 = vpack.c.b16 %v1640, %v1639
        %v2215 = vpack.c.b16 %v1642, %v1641
        %v2216 = vpack.c.b16 %v1644, %v1643
        %v2217 = vpack.c.b16 %v1646, %v1645
        %v2218 = vpack.c.b16 %v1648, %v1647
        %v2219 = vpack.c.b16 %v1650, %v1649
        %v2220 = vpack.c.b16 %v1652, %v1651
        %v2221 = vpack.c.b16 %v1654, %v1653
        %v2222 = vpack.c.b16 %v1656, %v1655
        %v2223 = vpack.c.b16 %v1658, %v1657
        %v2224 = vpack.c.b16 %v1660, %v1659
        %v2225 = vpack.c.b16 %v1662, %v1661
        %v2226 = vpack.c.b16 %v1664, %v1663
        %v2227 = vpack.c.b16 %v1666, %v1665
        %v2228 = vpack.c.b16 %v1668, %v1667
        %v2229 = vpack.c.b16 %v1670, %v1669
        %v2230 = vpack.c.b16 %v1672, %v1671
        %v2231 = vpack.c.b16 %v1674, %v1673
        %v2232 = vpack.c.b16 %v1676, %v1675
        %v2233 = vpack.c.b16 %v1678, %v1677
        %v2234 = vpack.c.b16 %v1680, %v1679
        %v2235 = vpack.c.b16 %v1682, %v1681
        %v2236 = vpack.c.b16 %v1684, %v1683
        %v2237 = vpack.c.b16 %v1686, %v1685
        %v2238 = vpack.c.b16 %v1688, %v1687
        %v2239 = vpack.c.b16 %v1690, %v1689
        %v2240 = vpack.c.b16 %v1692, %v1691
        %v2241 = vpack.c.b16 %v1694, %v1693
        %v2242 = vpack.c.b16 %v1696, %v1695
        %v2243 = vpack.c.b16 %v1698, %v1697
        %v2244 = vpack.c.b16 %v1700, %v1699
        %v2245 = vpack.c.b16 %v1702, %v1701
        %v2246 = vpack.c.b16 %v1704, %v1703
        %v2247 = vpack.c.b16 %v1706, %v1705
        %v2248 = vpack.c.b16 %v1708, %v1707
        %v2249 = vpack.c.b16 %v1710, %v1709
        %v2250 = vpack.c.b16 %v1712, %v1711
        %v2251 = vpack.c.b16 %v1714, %v1713
        %v2252 = vpack.c.b16 %v1716, %v1715
        %v2253 = vpack.c.b16 %v1718, %v1717
        %v2254 = vpack.c.b16 %v1720, %v1719
        %v2255 = vpack.c.b16 %v1722, %v1721
        %v2256 = vpack.c.b16 %v1724, %v1723
        %v2257 = vpack.c.b16 %v1726, %v1725
        %v2258 = vpack.c.b16 %v1728, %v1727
        %v2259 = vpack.c.b16 %v1730, %v1729
        %v2260 = vpack.c.b16 %v1732, %v1731
        %v2261 = vpack.c.b16 %v1734, %v1733
        %v2262 = vpack.c.b16 %v1736, %v1735
        %v2263 = vpack.c.b16 %v1738, %v1737
        %v2264 = vpack.c.b16 %v1740, %v1739
        %v2265 = vpack.c.b16 %v1742, %v1741
        %v2266 = vpack.c.b16 %v1744, %v1743
        %v2267 = vpack.c.b16 %v1746, %v1745
        %v2268 = vpack.c.b16 %v1748, %v1747
        %v2269 = vpack.c.b16 %v1750, %v1749
        %v2270 = vpack.c.b16 %v1752, %v1751
        %v2271 = vpack.c.b16 %v1754, %v1753
        %v2272 = vpack.c.b16 %v1756, %v1755
        %v2273 = vpack.c.b16 %v1758, %v1757
        %v2274 = vpack.c.b16 %v1760, %v1759
        %v2275 = vpack.c.b16 %v1762, %v1761
        %v2276 = vpack.c.b16 %v1764, %v1763
        %v2277 = vpack.c.b16 %v1766, %v1765
        %v2278 = vpack.c.b16 %v1768, %v1767
        %v2279 = vpack.c.b16 %v1770, %v1769
        %v2280 = vpack.c.b16 %v1772, %v1771
        %v2281 = vpack.c.b16 %v1774, %v1773
        %v2282 = vpack.c.b16 %v1776, %v1775
        %v2283 = vpack.c.b16 %v1778, %v1777
        %v2284 = vpack.c.b16 %v1780, %v1779
        %v2285 = vpack.c.b16 %v1782, %v1781
        %v2286 = vpack.c.b16 %v1784, %v1783
        %v2287 = vpack.c.b16 %v1786, %v1785
        %v2288 = vpack.c.b16 %v1788, %v1787
        %v2289 = vpack.c.b16 %v1790, %v1789
        %v2290 = vpack.c.b16 %v1792, %v1791
        %v2291 = vpack.c.b16 %v1794, %v1793
        %v2292 = vpack.c.b16 %v1796, %v1795
        %v2293 = vpack.c.b16 %v1798, %v1797
        %v2294 = vpack.c.b16 %v1800, %v1799
        %v2295 = vpack.c.b16 %v1802, %v1801
        %v2296 = vpack.c.b16 %v1804, %v1803
        %v2297 = vpack.c.b16 %v1806, %v1805
        %v2298 = vpack.c.b16 %v1808, %v1807
        %v2299 = vpack.c.b16 %v1810, %v1809
        %v2300 = vpack.c.b16 %v1812, %v1811
        %v2301 = vpack.c.b16 %v1814, %v1813
        %v2302 = vpack.c.b16 %v1816, %v1815
        %v2303 = vpack.c.b16 %v1818, %v1817
        %v2304 = vpack.c.b16 %v1820, %v1819
        %v2305 = vpack.c.b16 %v1822, %v1821
        %v2306 = vpack.c.b16 %v1824, %v1823
        %v2307 = vpack.c.b16 %v1826, %v1825
        %v2308 = vpack.c.b16 %v1828, %v1827
        %v2309 = vpack.c.b16 %v1830, %v1829
        %v2310 = vpack.c.b16 %v1832, %v1831
        %v2311 = vpack.c.b16 %v1834, %v1833
        %v2312 = vpack.c.b16 %v1836, %v1835
        %v2313 = vpack.c.b16 %v1838, %v1837
        %v2314 = vpack.c.b16 %v1840, %v1839
        %v2315 = vpack.c.b16 %v1842, %v1841
        %v2316 = vpack.c.b16 %v1844, %v1843
        %v2317 = vpack.c.b16 %v1846, %v1845
        %v2318 = vpack.c.b16 %v1848, %v1847
        %v2319 = vpack.c.b16 %v1850, %v1849
        %v2320 = vpack.c.b16 %v1852, %v1851
        %v2321 = vpack.c.b16 %v1854, %v1853
        %v2322 = vpack.c.b16 %v1856, %v1855
        %v2323 = vpack.c.b16 %v1858, %v1857
        %v2324 = vpack.c.b16 %v1860, %v1859
        %v2325 = vpack.c.b16 %v1862, %v1861
        %v2326 = vpack.c.b16 %v1864, %v1863
        %v2327 = vpack.c.b16 %v1866, %v1865
        %v2328 = vpack.c.b16 %v1868, %v1867
        %v2329 = vpack.c.b16 %v1870, %v1869
        %v2330 = vpack.c.b16 %v1872, %v1871
        %v2331 = vpack.c.b16 %v1874, %v1873
        %v2332 = vpack.c.b16 %v1876, %v1875
        %v2333 = vpack.c.b16 %v1878, %v1877
        %v2334 = vpack.c.b16 %v1880, %v1879
        %v2335 = vpack.c.b16 %v1882, %v1881
        %v2336 = vpack.c.b16 %v1884, %v1883
        %v2337 = vpack.c.b16 %v1886, %v1885
        %v2338 = vpack.c.b16 %v1888, %v1887
        %v2339 = vpack.c.b16 %v1890, %v1889
        %v2340 = vpack.c.b16 %v1892, %v1891
        %v2341 = vpack.c.b16 %v1894, %v1893
        %v2342 = vpack.c.b16 %v1896, %v1895
        %v2343 = vpack.c.b16 %v1898, %v1897
        %v2344 = vpack.c.b16 %v1900, %v1899
        %v2345 = vpack.c.b16 %v1902, %v1901
        %v2346 = vpack.c.b16 %v1904, %v1903
        %v2347 = vpack.c.b16 %v1906, %v1905
        %v2348 = vpack.c.b16 %v1908, %v1907
        %v2349 = vpack.c.b16 %v1910, %v1909
        %v2350 = vpack.c.b16 %v1912, %v1911
        %v2351 = vpack.c.b16 %v1914, %v1913
        %v2352 = vpack.c.b16 %v1916, %v1915
        %v2353 = vpack.c.b16 %v1918, %v1917
        %v2354 = vpack.c.b16 %v1920, %v1919
        %v2355 = vpack.c.b16 %v1922, %v1921
        %v2356 = vpack.c.b16 %v1924, %v1923
        %v2357 = vpack.c.b16 %v1926, %v1925
        %v2358 = vpack.c.b16 %v1928, %v1927
        %v2359 = vpack.c.b16 %v1930, %v1929
        %v2360 = vpack.c.b16 %v1932, %v1931
        %v2361 = vpack.c.b16 %v1934, %v1933
        %v2362 = vpack.c.b16 %v1936, %v1935
        %v2363 = vpack.c.b16 %v1938, %v1937
        %v2364 = vpack.c.b16 %v1940, %v1939
        %v2365 = vpack.c.b16 %v1942, %v1941
        %v2366 = vpack.c.b16 %v1944, %v1943
        %v2367 = vpack.c.b16 %v1946, %v1945
        %v2368 = vpack.c.b16 %v1948, %v1947
        %v2369 = vpack.c.b16 %v1950, %v1949
        %v2370 = vpack.c.b16 %v1952, %v1951
        %v2371 = vpack.c.b16 %v1954, %v1953
        %v2372 = vpack.c.b16 %v1956, %v1955
        %v2373 = vpack.c.b16 %v1958, %v1957
        %v2374 = vpack.c.b16 %v1960, %v1959
        %v2375 = vpack.c.b16 %v1962, %v1961
        %v2376 = vpack.c.b16 %v1964, %v1963
        %v2377 = vpack.c.b16 %v1966, %v1965
        %v2378 = vpack.c.b16 %v1968, %v1967
        %v2379 = vpack.c.b16 %v1970, %v1969
        %v2380 = vpack.c.b16 %v1972, %v1971
        %v2381 = vpack.c.b16 %v1974, %v1973
        %v2382 = vpack.c.b16 %v1976, %v1975
        %v2383 = vpack.c.b16 %v1978, %v1977
        %v2384 = vpack.c.b16 %v1980, %v1979
        %v2385 = vpack.c.b16 %v1982, %v1981
        %v2386 = vpack.c.b16 %v1984, %v1983
        %v2387 = vpack.c.b16 %v1986, %v1985
        %v2388 = vpack.c.b16 %v1988, %v1987
        %v2389 = vpack.c.b16 %v1990, %v1989
        %v2390 = vpack.c.b16 %v1992, %v1991
        %v2391 = vpack.c.b16 %v1994, %v1993
        %v2392 = vpack.c.b16 %v1996, %v1995
        %v2393 = vpack.c.b16 %v1998, %v1997
        %v2394 = vpack.c.b16 %v2000, %v1999
        %v2395 = vpack.c.b16 %v2002, %v2001
        %v2396 = vpack.c.b16 %v2004, %v2003
        %v2397 = vpack.c.b16 %v2006, %v2005
        %v2398 = vpack.c.b16 %v2008, %v2007
        %v2399 = vpack.c.b16 %v2010, %v2009
        %v2400 = vpack.c.b16 %v2012, %v2011
        %v2401 = vpack.c.b16 %v2014, %v2013
        %v2402 = vpack.c.b16 %v2016, %v2015
        %v2403 = vpack.c.b16 %v2018, %v2017
        %v2404 = vpack.c.b16 %v2020, %v2019
        %v2405 = vpack.c.b16 %v2022, %v2021
        %v2406 = vpack.c.b16 %v2024, %v2023
        %v2407 = vpack.c.b16 %v2026, %v2025
        %v2408 = vpack.c.b16 %v2028, %v2027
        %v2409 = vpack.c.b16 %v2030, %v2029
        %v2410 = vpack.c.b16 %v2032, %v2031
        %v2411 = vpack.c.b16 %v2034, %v2033
        %v2412 = vpack.c.b16 %v2036, %v2035
        %v2413 = vpack.c.b16 %v2038, %v2037
        %v2414 = vpack.c.b16 %v2040, %v2039
        %v2415 = vpack.c.b16 %v2042, %v2041
        %v2416 = vpack.c.b16 %v2044, %v2043
        %v2417 = vpack.c.b16 %v2046, %v2045
        %v2418 = vpack.c.b16 %v2048, %v2047
        %v2419 = vpack.c.b16 %v2050, %v2049
        %v2420 = vpack.c.b16 %v2052, %v2051
        %v2421 = vpack.c.b16 %v2054, %v2053
        %v2422 = vpack.c.b16 %v2056, %v2055
        %v2423 = vpack.c.b16 %v2058, %v2057
        %v2424 = vpack.c.b16 %v2060, %v2059
        %v2425 = vpack.c.b16 %v2062, %v2061
        %v2426 = vpack.c.b16 %v2064, %v2063
        %v2427 = vpack.c.b16 %v2066, %v2065
        %v2428 = vpack.c.b16 %v2068, %v2067
        %v2429 = vpack.c.b16 %v2070, %v2069
        %v2430 = vpack.c.b16 %v2072, %v2071
        %v2431 = vpack.c.b16 %v2074, %v2073
        %v2432 = vpack.c.b16 %v2076, %v2075
        %v2433 = vpack.c.b16 %v2078, %v2077
        %v2434 = vpack.c.b16 %v2080, %v2079
        %v2435 = vpack.c.b16 %v2082, %v2081
        %v2436 = vpack.c.b16 %v2084, %v2083
        %v2437 = vpack.c.b16 %v2086, %v2085
        %v2438 = vpack.c.b16 %v2088, %v2087
        %v2439 = vpack.c.b16 %v2090, %v2089
        %v2440 = vpack.c.b16 %v2092, %v2091
        %v2441 = vpack.c.b16 %v2094, %v2093
        %v2442 = vpack.c.b16 %v2096, %v2095
        %v2443 = vpack.c.b16 %v2098, %v2097
        %v2444 = vpack.c.b16 %v2100, %v2099
        %v2445 = vpack.c.b16 %v2102, %v2101
        %v2446 = vpack.c.b16 %v2104, %v2103
        %v2447 = vpack.c.b16 %v2106, %v2105
        %v2448 = vpack.c.b16 %v2108, %v2107
        %v2449 = vpack.c.b16 %v2110, %v2109
        %v2450 = vpack.c.b16 %v2112, %v2111
        %v2451 = vpack.c.b16 %v2114, %v2113
        %v2452 = vpack.c.b16 %v2116, %v2115
        %v2453 = vpack.c.b16 %v2118, %v2117
        %v2454 = vpack.c.b16 %v2120, %v2119
        %v2455 = vpack.c.b16 %v2122, %v2121
        %v2456 = vpack.c.b16 %v2124, %v2123
        %v2457 = vpack.c.b16 %v2126, %v2125
        %v2458 = vpack.c.b16 %v2128, %v2127
        %v2459 = vpack.c.b16 %v2130, %v2129
        %v2460 = vpack.c.b16 %v2132, %v2131
        %v2461 = vpack.c.b16 %v2134, %v2133
        %v2462 = vpack.c.b16 %v2136, %v2135
        %v2463 = vpack.c.b16 %v2138, %v2137
        %v2464 = vpack.c.b16 %v2140, %v2139
        %v2465 = vpack.c.b16 %v2142, %v2141
        %v2466 = vpack.c.b16 %v2144, %v2143
        %v2467 = vpack.c.b16 %v2146, %v2145
        %v2468 = vpack.c.b16 %v2148, %v2147
        %v2469 = vpack.c.b16 %v2150, %v2149
        %v2470 = vpack.c.b16 %v2152, %v2151
        %v2471 = vpack.c.b16 %v2154, %v2153
        %v2472 = vpack.c.b16 %v2156, %v2155
        %v2473 = vpack.c.b16 %v2158, %v2157
        %v2474 = vpack.c.b16 %v2160, %v2159
        %v2475 = vpack.c.b16 %v2162, %v2161
        %v2476 = vpack.c.b16 %v2164, %v2163
        %v2477 = vpack.c.b16 %v2166, %v2165
        %v2478 = vpack.c.b16 %v2168, %v2167
        %v2479 = vpack.c.b16 %v2170, %v2169
        %v2480 = vpack.c.b16 %v2172, %v2171
        %v2481 = vpack.c.b16 %v2174, %v2173
        %v2482 = vpack.c.b16 %v2176, %v2175
        %v2483 = vpack.c.b16 %v2178, %v2177
        %v2484 = vpack.c.b16 %v2180, %v2179
        %v2485 = vpack.c.b16 %v2182, %v2181
        %v2486 = vpack.c.b16 %v2184, %v2183
        %v2487 = vpack.c.b16 %v2186, %v2185
        %v2488 = vpack.c.b16 %v2188, %v2187
        %v2489 = vpack.c.b16 %v2190, %v2189
        %v2490 = vpack.c.b16 %v2192, %v2191
        %v2491 = vpack.c.b16 %v2194, %v2193
        %v2492 = vpack.c.b16 %v2196, %v2195
        %v2493 = vpack.c.b16 %v2198, %v2197
        %v2494 = vpack.c.b16 %v2200, %v2199
        %v2495 = vpack.c.b16 %v2202, %v2201
        %v2496 = vpack.c.b16 %v2204, %v2203
        %v2497 = vpack.c.b16 %v2206, %v2205
        %v2498 = vpack.c.b16 %v2208, %v2207
        %v2499 = vpack.c.b16 %v2210, %v2209
        %v2500 = vpack.c.b16 %v2212, %v2211
        %2789 = vmatprep.subr.bf16.mxu0 0
        %2790 = vmatpush1.bf16.msra.mxu0 %v2213
        %2791 = vmatprep.subr.bf16.mxu0 0
        %2792 = vmatpush1.bf16.msra.mxu0 %v2214
        %2793 = vmatprep.subr.bf16.mxu0 0
        %2794 = vmatpush1.bf16.msra.mxu0 %v2215
        %2795 = vmatprep.subr.bf16.mxu0 0
        %2796 = vmatpush1.bf16.msra.mxu0 %v2216
        %2797 = vmatprep.subr.bf16.mxu0 0
        %2798 = vmatpush1.bf16.msra.mxu0 %v2217
        %2799 = vmatprep.subr.bf16.mxu0 0
        %2800 = vmatpush1.bf16.msra.mxu0 %v2218
        %2801 = vmatprep.subr.bf16.mxu0 0
        %2802 = vmatpush1.bf16.msra.mxu0 %v2219
        %2803 = vmatprep.subr.bf16.mxu0 0
        %2804 = vmatpush1.bf16.msra.mxu0 %v2220
        %2805 = vmatprep.subr.bf16.mxu0 0
        %2806 = vmatpush1.bf16.msra.mxu0 %v2221
        %2807 = vmatprep.subr.bf16.mxu0 0
        %2808 = vmatpush1.bf16.msra.mxu0 %v2222
        %2809 = vmatprep.subr.bf16.mxu0 0
        %2810 = vmatpush1.bf16.msra.mxu0 %v2223
        %2811 = vmatprep.subr.bf16.mxu0 0
        %2812 = vmatpush1.bf16.msra.mxu0 %v2224
        %2813 = vmatprep.subr.bf16.mxu0 0
        %2814 = vmatpush1.bf16.msra.mxu0 %v2225
        %2815 = vmatprep.subr.bf16.mxu0 0
        %2816 = vmatpush1.bf16.msra.mxu0 %v2226
        %2817 = vmatprep.subr.bf16.mxu0 0
        %2818 = vmatpush1.bf16.msra.mxu0 %v2227
        %2819 = vmatprep.subr.bf16.mxu0 0
        %2820 = vmatpush1.bf16.msra.mxu0 %v2228
        %2821 = vmatprep.mubr.bf16.mxu0 %v450
        %2822 = vmatmul.mubr.bf16.gmra.mrb[0].mxu0 %v449
        %v2823 = vpop.f32.mrb[0].mxu0
        %v2824 = vadd.f32 0.0, %v2823
        %v2825 = vpop.f32.mrb[0].mxu0
        %v2826 = vpop.f32.mrb[0].mxu0
        %v2827 = vpop.f32.mrb[0].mxu0
        %2828 = vdwg.mxu0
        %2829 = vmatprep.subr.bf16.mxu0 0
        %2830 = vmatpush1.bf16.msra.mxu0 %v2229
        %2831 = vmatprep.subr.bf16.mxu0 0
        %2832 = vmatpush1.bf16.msra.mxu0 %v2230
        %2833 = vmatprep.subr.bf16.mxu0 0
        %2834 = vmatpush1.bf16.msra.mxu0 %v2231
        %2835 = vmatprep.subr.bf16.mxu0 0
        %2836 = vmatpush1.bf16.msra.mxu0 %v2232
        %2837 = vmatprep.subr.bf16.mxu0 0
        %2838 = vmatpush1.bf16.msra.mxu0 %v2233
        %2839 = vmatprep.subr.bf16.mxu0 0
        %2840 = vmatpush1.bf16.msra.mxu0 %v2234
        %2841 = vmatprep.subr.bf16.mxu0 0
        %2842 = vmatpush1.bf16.msra.mxu0 %v2235
        %2843 = vmatprep.subr.bf16.mxu0 0
        %2844 = vmatpush1.bf16.msra.mxu0 %v2236
        %2845 = vmatprep.subr.bf16.mxu0 0
        %2846 = vmatpush1.bf16.msra.mxu0 %v2237
        %2847 = vmatprep.subr.bf16.mxu0 0
        %2848 = vmatpush1.bf16.msra.mxu0 %v2238
        %2849 = vmatprep.subr.bf16.mxu0 0
        %2850 = vmatpush1.bf16.msra.mxu0 %v2239
        %2851 = vmatprep.subr.bf16.mxu0 0
        %2852 = vmatpush1.bf16.msra.mxu0 %v2240
        %2853 = vmatprep.subr.bf16.mxu0 0
        %2854 = vmatpush1.bf16.msra.mxu0 %v2241
        %2855 = vmatprep.subr.bf16.mxu0 0
        %2856 = vmatpush1.bf16.msra.mxu0 %v2242
        %2857 = vmatprep.subr.bf16.mxu0 0
        %2858 = vmatpush1.bf16.msra.mxu0 %v2243
        %2859 = vmatprep.subr.bf16.mxu0 0
        %2860 = vmatpush1.bf16.msra.mxu0 %v2244
        %2861 = vmatprep.mubr.bf16.mxu0 %v452
        %2862 = vmatmul.mubr.bf16.gmra.mrb[0].mxu0 %v451
        %v2863 = vpop.f32.mrb[0].mxu0
        %v2864 = vadd.f32 %v2824, %v2863
        %v2865 = vpop.f32.mrb[0].mxu0
        %v2866 = vpop.f32.mrb[0].mxu0
        %v2867 = vpop.f32.mrb[0].mxu0
        %2868 = vdwg.mxu0
        %2869 = vmatprep.subr.bf16.mxu0 0
        %2870 = vmatpush1.bf16.msra.mxu0 %v2245
        %2871 = vmatprep.subr.bf16.mxu0 0
        %2872 = vmatpush1.bf16.msra.mxu0 %v2246
        %2873 = vmatprep.subr.bf16.mxu0 0
        %2874 = vmatpush1.bf16.msra.mxu0 %v2247
        %2875 = vmatprep.subr.bf16.mxu0 0
        %2876 = vmatpush1.bf16.msra.mxu0 %v2248
        %2877 = vmatprep.subr.bf16.mxu0 0
        %2878 = vmatpush1.bf16.msra.mxu0 %v2249
        %2879 = vmatprep.subr.bf16.mxu0 0
        %2880 = vmatpush1.bf16.msra.mxu0 %v2250
        %2881 = vmatprep.subr.bf16.mxu0 0
        %2882 = vmatpush1.bf16.msra.mxu0 %v2251
        %2883 = vmatprep.subr.bf16.mxu0 0
        %2884 = vmatpush1.bf16.msra.mxu0 %v2252
        %2885 = vmatprep.subr.bf16.mxu0 0
        %2886 = vmatpush1.bf16.msra.mxu0 %v2253
        %2887 = vmatprep.subr.bf16.mxu0 0
        %2888 = vmatpush1.bf16.msra.mxu0 %v2254
        %2889 = vmatprep.subr.bf16.mxu0 0
        %2890 = vmatpush1.bf16.msra.mxu0 %v2255
        %2891 = vmatprep.subr.bf16.mxu0 0
        %2892 = vmatpush1.bf16.msra.mxu0 %v2256
        %2893 = vmatprep.subr.bf16.mxu0 0
        %2894 = vmatpush1.bf16.msra.mxu0 %v2257
        %2895 = vmatprep.subr.bf16.mxu0 0
        %2896 = vmatpush1.bf16.msra.mxu0 %v2258
        %2897 = vmatprep.subr.bf16.mxu0 0
        %2898 = vmatpush1.bf16.msra.mxu0 %v2259
        %2899 = vmatprep.subr.bf16.mxu0 0
        %2900 = vmatpush1.bf16.msra.mxu0 %v2260
        %2901 = vmatprep.mubr.bf16.mxu0 %v454
        %2902 = vmatmul.mubr.bf16.gmra.mrb[0].mxu0 %v453
        %v2903 = vpop.f32.mrb[0].mxu0
        %v2904 = vadd.f32 %v2864, %v2903
        %v2905 = vpop.f32.mrb[0].mxu0
        %v2906 = vpop.f32.mrb[0].mxu0
        %v2907 = vpop.f32.mrb[0].mxu0
        %2908 = vdwg.mxu0
        %2909 = vmatprep.subr.bf16.mxu0 0
        %2910 = vmatpush1.bf16.msra.mxu0 %v2261
        %2911 = vmatprep.subr.bf16.mxu0 0
        %2912 = vmatpush1.bf16.msra.mxu0 %v2262
        %2913 = vmatprep.subr.bf16.mxu0 0
        %2914 = vmatpush1.bf16.msra.mxu0 %v2263
        %2915 = vmatprep.subr.bf16.mxu0 0
        %2916 = vmatpush1.bf16.msra.mxu0 %v2264
        %2917 = vmatprep.subr.bf16.mxu0 0
        %2918 = vmatpush1.bf16.msra.mxu0 %v2265
        %2919 = vmatprep.subr.bf16.mxu0 0
        %2920 = vmatpush1.bf16.msra.mxu0 %v2266
        %2921 = vmatprep.subr.bf16.mxu0 0
        %2922 = vmatpush1.bf16.msra.mxu0 %v2267
        %2923 = vmatprep.subr.bf16.mxu0 0
        %2924 = vmatpush1.bf16.msra.mxu0 %v2268
        %2925 = vmatprep.subr.bf16.mxu0 0
        %2926 = vmatpush1.bf16.msra.mxu0 %v2269
        %2927 = vmatprep.subr.bf16.mxu0 0
        %2928 = vmatpush1.bf16.msra.mxu0 %v2270
        %2929 = vmatprep.subr.bf16.mxu0 0
        %2930 = vmatpush1.bf16.msra.mxu0 %v2271
        %2931 = vmatprep.subr.bf16.mxu0 0
        %2932 = vmatpush1.bf16.msra.mxu0 %v2272
        %2933 = vmatprep.subr.bf16.mxu0 0
        %2934 = vmatpush1.bf16.msra.mxu0 %v2273
        %2935 = vmatprep.subr.bf16.mxu0 0
        %2936 = vmatpush1.bf16.msra.mxu0 %v2274
        %2937 = vmatprep.subr.bf16.mxu0 0
        %2938 = vmatpush1.bf16.msra.mxu0 %v2275
        %2939 = vmatprep.subr.bf16.mxu0 0
        %2940 = vmatpush1.bf16.msra.mxu0 %v2276
        %2941 = vmatprep.mubr.bf16.mxu0 %v456
        %2942 = vmatmul.mubr.bf16.gmra.mrb[0].mxu0 %v455
        %v2943 = vpop.f32.mrb[0].mxu0
        %v2944 = vadd.f32 %v2904, %v2943
        %v2945 = vpop.f32.mrb[0].mxu0
        %v2946 = vpop.f32.mrb[0].mxu0
        %v2947 = vpop.f32.mrb[0].mxu0
        %2948 = vdwg.mxu0
        %2949 = vmatprep.subr.bf16.mxu0 0
        %2950 = vmatpush1.bf16.msra.mxu0 %v2277
        %2951 = vmatprep.subr.bf16.mxu0 0
        %2952 = vmatpush1.bf16.msra.mxu0 %v2278
        %2953 = vmatprep.subr.bf16.mxu0 0
        %2954 = vmatpush1.bf16.msra.mxu0 %v2279
        %2955 = vmatprep.subr.bf16.mxu0 0
        %2956 = vmatpush1.bf16.msra.mxu0 %v2280
        %2957 = vmatprep.subr.bf16.mxu0 0
        %2958 = vmatpush1.bf16.msra.mxu0 %v2281
        %2959 = vmatprep.subr.bf16.mxu0 0
        %2960 = vmatpush1.bf16.msra.mxu0 %v2282
        %2961 = vmatprep.subr.bf16.mxu0 0
        %2962 = vmatpush1.bf16.msra.mxu0 %v2283
        %2963 = vmatprep.subr.bf16.mxu0 0
        %2964 = vmatpush1.bf16.msra.mxu0 %v2284
        %2965 = vmatprep.subr.bf16.mxu0 0
        %2966 = vmatpush1.bf16.msra.mxu0 %v2285
        %2967 = vmatprep.subr.bf16.mxu0 0
        %2968 = vmatpush1.bf16.msra.mxu0 %v2286
        %2969 = vmatprep.subr.bf16.mxu0 0
        %2970 = vmatpush1.bf16.msra.mxu0 %v2287
        %2971 = vmatprep.subr.bf16.mxu0 0
        %2972 = vmatpush1.bf16.msra.mxu0 %v2288
        %2973 = vmatprep.subr.bf16.mxu0 0
        %2974 = vmatpush1.bf16.msra.mxu0 %v2289
        %2975 = vmatprep.subr.bf16.mxu0 0
        %2976 = vmatpush1.bf16.msra.mxu0 %v2290
        %2977 = vmatprep.subr.bf16.mxu0 0
        %2978 = vmatpush1.bf16.msra.mxu0 %v2291
        %2979 = vmatprep.subr.bf16.mxu0 0
        %2980 = vmatpush1.bf16.msra.mxu0 %v2292
        %2981 = vmatprep.mubr.bf16.mxu0 %v458
        %2982 = vmatmul.mubr.bf16.gmra.mrb[0].mxu0 %v457
        %v2983 = vpop.f32.mrb[0].mxu0
        %v2984 = vadd.f32 %v2944, %v2983
        %v2985 = vpop.f32.mrb[0].mxu0
        %v2986 = vpop.f32.mrb[0].mxu0
        %v2987 = vpop.f32.mrb[0].mxu0
        %2988 = vdwg.mxu0
        %2989 = vmatprep.subr.bf16.mxu0 0
        %2990 = vmatpush1.bf16.msra.mxu0 %v2293
        %2991 = vmatprep.subr.bf16.mxu0 0
        %2992 = vmatpush1.bf16.msra.mxu0 %v2294
        %2993 = vmatprep.subr.bf16.mxu0 0
        %2994 = vmatpush1.bf16.msra.mxu0 %v2295
        %2995 = vmatprep.subr.bf16.mxu0 0
        %2996 = vmatpush1.bf16.msra.mxu0 %v2296
        %2997 = vmatprep.subr.bf16.mxu0 0
        %2998 = vmatpush1.bf16.msra.mxu0 %v2297
        %2999 = vmatprep.subr.bf16.mxu0 0
        %3000 = vmatpush1.bf16.msra.mxu0 %v2298
        %3001 = vmatprep.subr.bf16.mxu0 0
        %3002 = vmatpush1.bf16.msra.mxu0 %v2299
        %3003 = vmatprep.subr.bf16.mxu0 0
        %3004 = vmatpush1.bf16.msra.mxu0 %v2300
        %3005 = vmatprep.subr.bf16.mxu0 0
        %3006 = vmatpush1.bf16.msra.mxu0 %v2301
        %3007 = vmatprep.subr.bf16.mxu0 0
        %3008 = vmatpush1.bf16.msra.mxu0 %v2302
        %3009 = vmatprep.subr.bf16.mxu0 0
        %3010 = vmatpush1.bf16.msra.mxu0 %v2303
        %3011 = vmatprep.subr.bf16.mxu0 0
        %3012 = vmatpush1.bf16.msra.mxu0 %v2304
        %3013 = vmatprep.subr.bf16.mxu0 0
        %3014 = vmatpush1.bf16.msra.mxu0 %v2305
        %3015 = vmatprep.subr.bf16.mxu0 0
        %3016 = vmatpush1.bf16.msra.mxu0 %v2306
        %3017 = vmatprep.subr.bf16.mxu0 0
        %3018 = vmatpush1.bf16.msra.mxu0 %v2307
        %3019 = vmatprep.subr.bf16.mxu0 0
        %3020 = vmatpush1.bf16.msra.mxu0 %v2308
        %3021 = vmatprep.mubr.bf16.mxu0 %v460
        %3022 = vmatmul.mubr.bf16.gmra.mrb[0].mxu0 %v459
        %v3023 = vpop.f32.mrb[0].mxu0
        %v3024 = vadd.f32 %v2984, %v3023
        %v3025 = vpop.f32.mrb[0].mxu0
        %v3026 = vpop.f32.mrb[0].mxu0
        %v3027 = vpop.f32.mrb[0].mxu0
        %3028 = vdwg.mxu0
        %3029 = vmatprep.subr.bf16.mxu0 0
        %3030 = vmatpush1.bf16.msra.mxu0 %v2309
        %3031 = vmatprep.subr.bf16.mxu0 0
        %3032 = vmatpush1.bf16.msra.mxu0 %v2310
        %3033 = vmatprep.subr.bf16.mxu0 0
        %3034 = vmatpush1.bf16.msra.mxu0 %v2311
        %3035 = vmatprep.subr.bf16.mxu0 0
        %3036 = vmatpush1.bf16.msra.mxu0 %v2312
        %3037 = vmatprep.subr.bf16.mxu0 0
        %3038 = vmatpush1.bf16.msra.mxu0 %v2313
        %3039 = vmatprep.subr.bf16.mxu0 0
        %3040 = vmatpush1.bf16.msra.mxu0 %v2314
        %3041 = vmatprep.subr.bf16.mxu0 0
        %3042 = vmatpush1.bf16.msra.mxu0 %v2315
        %3043 = vmatprep.subr.bf16.mxu0 0
        %3044 = vmatpush1.bf16.msra.mxu0 %v2316
        %3045 = vmatprep.subr.bf16.mxu0 0
        %3046 = vmatpush1.bf16.msra.mxu0 %v2317
        %3047 = vmatprep.subr.bf16.mxu0 0
        %3048 = vmatpush1.bf16.msra.mxu0 %v2318
        %3049 = vmatprep.subr.bf16.mxu0 0
        %3050 = vmatpush1.bf16.msra.mxu0 %v2319
        %3051 = vmatprep.subr.bf16.mxu0 0
        %3052 = vmatpush1.bf16.msra.mxu0 %v2320
        %3053 = vmatprep.subr.bf16.mxu0 0
        %3054 = vmatpush1.bf16.msra.mxu0 %v2321
        %3055 = vmatprep.subr.bf16.mxu0 0
        %3056 = vmatpush1.bf16.msra.mxu0 %v2322
        %3057 = vmatprep.subr.bf16.mxu0 0
        %3058 = vmatpush1.bf16.msra.mxu0 %v2323
        %3059 = vmatprep.subr.bf16.mxu0 0
        %3060 = vmatpush1.bf16.msra.mxu0 %v2324
        %3061 = vmatprep.mubr.bf16.mxu0 %v462
        %3062 = vmatmul.mubr.bf16.gmra.mrb[0].mxu0 %v461
        %v3063 = vpop.f32.mrb[0].mxu0
        %v3064 = vadd.f32 %v3024, %v3063
        %v3065 = vpop.f32.mrb[0].mxu0
        %v3066 = vpop.f32.mrb[0].mxu0
        %v3067 = vpop.f32.mrb[0].mxu0
        %3068 = vdwg.mxu0
        %3069 = vmatprep.subr.bf16.mxu0 0
        %3070 = vmatpush1.bf16.msra.mxu0 %v2325
        %3071 = vmatprep.subr.bf16.mxu0 0
        %3072 = vmatpush1.bf16.msra.mxu0 %v2326
        %3073 = vmatprep.subr.bf16.mxu0 0
        %3074 = vmatpush1.bf16.msra.mxu0 %v2327
        %3075 = vmatprep.subr.bf16.mxu0 0
        %3076 = vmatpush1.bf16.msra.mxu0 %v2328
        %3077 = vmatprep.subr.bf16.mxu0 0
        %3078 = vmatpush1.bf16.msra.mxu0 %v2329
        %3079 = vmatprep.subr.bf16.mxu0 0
        %3080 = vmatpush1.bf16.msra.mxu0 %v2330
        %3081 = vmatprep.subr.bf16.mxu0 0
        %3082 = vmatpush1.bf16.msra.mxu0 %v2331
        %3083 = vmatprep.subr.bf16.mxu0 0
        %3084 = vmatpush1.bf16.msra.mxu0 %v2332
        %3085 = vmatprep.subr.bf16.mxu0 0
        %3086 = vmatpush1.bf16.msra.mxu0 %v2333
        %3087 = vmatprep.subr.bf16.mxu0 0
        %3088 = vmatpush1.bf16.msra.mxu0 %v2334
        %3089 = vmatprep.subr.bf16.mxu0 0
        %3090 = vmatpush1.bf16.msra.mxu0 %v2335
        %3091 = vmatprep.subr.bf16.mxu0 0
        %3092 = vmatpush1.bf16.msra.mxu0 %v2336
        %3093 = vmatprep.subr.bf16.mxu0 0
        %3094 = vmatpush1.bf16.msra.mxu0 %v2337
        %3095 = vmatprep.subr.bf16.mxu0 0
        %3096 = vmatpush1.bf16.msra.mxu0 %v2338
        %3097 = vmatprep.subr.bf16.mxu0 0
        %3098 = vmatpush1.bf16.msra.mxu0 %v2339
        %3099 = vmatprep.subr.bf16.mxu0 0
        %3100 = vmatpush1.bf16.msra.mxu0 %v2340
        %3101 = vmatprep.mubr.bf16.mxu0 %v464
        %3102 = vmatmul.mubr.bf16.gmra.mrb[0].mxu0 %v463
        %v3103 = vpop.f32.mrb[0].mxu0
        %v3104 = vadd.f32 %v3064, %v3103
        %v3105 = vpop.f32.mrb[0].mxu0
        %v3106 = vpop.f32.mrb[0].mxu0
        %v3107 = vpop.f32.mrb[0].mxu0
        %3108 = vdwg.mxu0
        %3109 = vmatprep.subr.bf16.mxu0 0
        %3110 = vmatpush1.bf16.msra.mxu0 %v2341
        %3111 = vmatprep.subr.bf16.mxu0 0
        %3112 = vmatpush1.bf16.msra.mxu0 %v2342
        %3113 = vmatprep.subr.bf16.mxu0 0
        %3114 = vmatpush1.bf16.msra.mxu0 %v2343
        %3115 = vmatprep.subr.bf16.mxu0 0
        %3116 = vmatpush1.bf16.msra.mxu0 %v2344
        %3117 = vmatprep.subr.bf16.mxu0 0
        %3118 = vmatpush1.bf16.msra.mxu0 %v2345
        %3119 = vmatprep.subr.bf16.mxu0 0
        %3120 = vmatpush1.bf16.msra.mxu0 %v2346
        %3121 = vmatprep.subr.bf16.mxu0 0
        %3122 = vmatpush1.bf16.msra.mxu0 %v2347
        %3123 = vmatprep.subr.bf16.mxu0 0
        %3124 = vmatpush1.bf16.msra.mxu0 %v2348
        %3125 = vmatprep.subr.bf16.mxu0 0
        %3126 = vmatpush1.bf16.msra.mxu0 %v2349
        %3127 = vmatprep.subr.bf16.mxu0 0
        %3128 = vmatpush1.bf16.msra.mxu0 %v2350
        %3129 = vmatprep.subr.bf16.mxu0 0
        %3130 = vmatpush1.bf16.msra.mxu0 %v2351
        %3131 = vmatprep.subr.bf16.mxu0 0
        %3132 = vmatpush1.bf16.msra.mxu0 %v2352
        %3133 = vmatprep.subr.bf16.mxu0 0
        %3134 = vmatpush1.bf16.msra.mxu0 %v2353
        %3135 = vmatprep.subr.bf16.mxu0 0
        %3136 = vmatpush1.bf16.msra.mxu0 %v2354
        %3137 = vmatprep.subr.bf16.mxu0 0
        %3138 = vmatpush1.bf16.msra.mxu0 %v2355
        %3139 = vmatprep.subr.bf16.mxu0 0
        %3140 = vmatpush1.bf16.msra.mxu0 %v2356
        %3141 = vmatprep.mubr.bf16.mxu0 %v466
        %3142 = vmatmul.mubr.bf16.gmra.mrb[0].mxu0 %v465
        %v3143 = vpop.f32.mrb[0].mxu0
        %v3144 = vadd.f32 %v3104, %v3143
        %v3145 = vpop.f32.mrb[0].mxu0
        %v3146 = vpop.f32.mrb[0].mxu0
        %v3147 = vpop.f32.mrb[0].mxu0
        %3148 = vdwg.mxu0
        %3149 = vmatprep.subr.bf16.mxu0 0
        %3150 = vmatpush1.bf16.msra.mxu0 %v2357
        %3151 = vmatprep.subr.bf16.mxu0 0
        %3152 = vmatpush1.bf16.msra.mxu0 %v2358
        %3153 = vmatprep.subr.bf16.mxu0 0
        %3154 = vmatpush1.bf16.msra.mxu0 %v2359
        %3155 = vmatprep.subr.bf16.mxu0 0
        %3156 = vmatpush1.bf16.msra.mxu0 %v2360
        %3157 = vmatprep.subr.bf16.mxu0 0
        %3158 = vmatpush1.bf16.msra.mxu0 %v2361
        %3159 = vmatprep.subr.bf16.mxu0 0
        %3160 = vmatpush1.bf16.msra.mxu0 %v2362
        %3161 = vmatprep.subr.bf16.mxu0 0
        %3162 = vmatpush1.bf16.msra.mxu0 %v2363
        %3163 = vmatprep.subr.bf16.mxu0 0
        %3164 = vmatpush1.bf16.msra.mxu0 %v2364
        %3165 = vmatprep.subr.bf16.mxu0 0
        %3166 = vmatpush1.bf16.msra.mxu0 %v2365
        %3167 = vmatprep.subr.bf16.mxu0 0
        %3168 = vmatpush1.bf16.msra.mxu0 %v2366
        %3169 = vmatprep.subr.bf16.mxu0 0
        %3170 = vmatpush1.bf16.msra.mxu0 %v2367
        %3171 = vmatprep.subr.bf16.mxu0 0
        %3172 = vmatpush1.bf16.msra.mxu0 %v2368
        %3173 = vmatprep.subr.bf16.mxu0 0
        %3174 = vmatpush1.bf16.msra.mxu0 %v2369
        %3175 = vmatprep.subr.bf16.mxu0 0
        %3176 = vmatpush1.bf16.msra.mxu0 %v2370
        %3177 = vmatprep.subr.bf16.mxu0 0
        %3178 = vmatpush1.bf16.msra.mxu0 %v2371
        %3179 = vmatprep.subr.bf16.mxu0 0
        %3180 = vmatpush1.bf16.msra.mxu0 %v2372
        %3181 = vmatprep.mubr.bf16.mxu0 %v468
        %3182 = vmatmul.mubr.bf16.gmra.mrb[0].mxu0 %v467
        %v3183 = vpop.f32.mrb[0].mxu0
        %v3184 = vadd.f32 %v3144, %v3183
        %v3185 = vpop.f32.mrb[0].mxu0
        %v3186 = vpop.f32.mrb[0].mxu0
        %v3187 = vpop.f32.mrb[0].mxu0
        %3188 = vdwg.mxu0
        %3189 = vmatprep.subr.bf16.mxu0 0
        %3190 = vmatpush1.bf16.msra.mxu0 %v2373
        %3191 = vmatprep.subr.bf16.mxu0 0
        %3192 = vmatpush1.bf16.msra.mxu0 %v2374
        %3193 = vmatprep.subr.bf16.mxu0 0
        %3194 = vmatpush1.bf16.msra.mxu0 %v2375
        %3195 = vmatprep.subr.bf16.mxu0 0
        %3196 = vmatpush1.bf16.msra.mxu0 %v2376
        %3197 = vmatprep.subr.bf16.mxu0 0
        %3198 = vmatpush1.bf16.msra.mxu0 %v2377
        %3199 = vmatprep.subr.bf16.mxu0 0
        %3200 = vmatpush1.bf16.msra.mxu0 %v2378
        %3201 = vmatprep.subr.bf16.mxu0 0
        %3202 = vmatpush1.bf16.msra.mxu0 %v2379
        %3203 = vmatprep.subr.bf16.mxu0 0
        %3204 = vmatpush1.bf16.msra.mxu0 %v2380
        %3205 = vmatprep.subr.bf16.mxu0 0
        %3206 = vmatpush1.bf16.msra.mxu0 %v2381
        %3207 = vmatprep.subr.bf16.mxu0 0
        %3208 = vmatpush1.bf16.msra.mxu0 %v2382
        %3209 = vmatprep.subr.bf16.mxu0 0
        %3210 = vmatpush1.bf16.msra.mxu0 %v2383
        %3211 = vmatprep.subr.bf16.mxu0 0
        %3212 = vmatpush1.bf16.msra.mxu0 %v2384
        %3213 = vmatprep.subr.bf16.mxu0 0
        %3214 = vmatpush1.bf16.msra.mxu0 %v2385
        %3215 = vmatprep.subr.bf16.mxu0 0
        %3216 = vmatpush1.bf16.msra.mxu0 %v2386
        %3217 = vmatprep.subr.bf16.mxu0 0
        %3218 = vmatpush1.bf16.msra.mxu0 %v2387
        %3219 = vmatprep.subr.bf16.mxu0 0
        %3220 = vmatpush1.bf16.msra.mxu0 %v2388
        %3221 = vmatprep.mubr.bf16.mxu0 %v470
        %3222 = vmatmul.mubr.bf16.gmra.mrb[0].mxu0 %v469
        %v3223 = vpop.f32.mrb[0].mxu0
        %v3224 = vadd.f32 %v3184, %v3223
        %v3225 = vpop.f32.mrb[0].mxu0
        %v3226 = vpop.f32.mrb[0].mxu0
        %v3227 = vpop.f32.mrb[0].mxu0
        %3228 = vdwg.mxu0
        %3229 = vmatprep.subr.bf16.mxu0 0
        %3230 = vmatpush1.bf16.msra.mxu0 %v2389
        %3231 = vmatprep.subr.bf16.mxu0 0
        %3232 = vmatpush1.bf16.msra.mxu0 %v2390
        %3233 = vmatprep.subr.bf16.mxu0 0
        %3234 = vmatpush1.bf16.msra.mxu0 %v2391
        %3235 = vmatprep.subr.bf16.mxu0 0
        %3236 = vmatpush1.bf16.msra.mxu0 %v2392
        %3237 = vmatprep.subr.bf16.mxu0 0
        %3238 = vmatpush1.bf16.msra.mxu0 %v2393
        %3239 = vmatprep.subr.bf16.mxu0 0
        %3240 = vmatpush1.bf16.msra.mxu0 %v2394
        %3241 = vmatprep.subr.bf16.mxu0 0
        %3242 = vmatpush1.bf16.msra.mxu0 %v2395
        %3243 = vmatprep.subr.bf16.mxu0 0
        %3244 = vmatpush1.bf16.msra.mxu0 %v2396
        %3245 = vmatprep.subr.bf16.mxu0 0
        %3246 = vmatpush1.bf16.msra.mxu0 %v2397
        %3247 = vmatprep.subr.bf16.mxu0 0
        %3248 = vmatpush1.bf16.msra.mxu0 %v2398
        %3249 = vmatprep.subr.bf16.mxu0 0
        %3250 = vmatpush1.bf16.msra.mxu0 %v2399
        %3251 = vmatprep.subr.bf16.mxu0 0
        %3252 = vmatpush1.bf16.msra.mxu0 %v2400
        %3253 = vmatprep.subr.bf16.mxu0 0
        %3254 = vmatpush1.bf16.msra.mxu0 %v2401
        %3255 = vmatprep.subr.bf16.mxu0 0
        %3256 = vmatpush1.bf16.msra.mxu0 %v2402
        %3257 = vmatprep.subr.bf16.mxu0 0
        %3258 = vmatpush1.bf16.msra.mxu0 %v2403
        %3259 = vmatprep.subr.bf16.mxu0 0
        %3260 = vmatpush1.bf16.msra.mxu0 %v2404
        %3261 = vmatprep.mubr.bf16.mxu0 %v472
        %3262 = vmatmul.mubr.bf16.gmra.mrb[0].mxu0 %v471
        %v3263 = vpop.f32.mrb[0].mxu0
        %v3264 = vadd.f32 %v3224, %v3263
        %v3265 = vpop.f32.mrb[0].mxu0
        %v3266 = vpop.f32.mrb[0].mxu0
        %v3267 = vpop.f32.mrb[0].mxu0
        %3268 = vdwg.mxu0
        %3269 = vmatprep.subr.bf16.mxu0 0
        %3270 = vmatpush1.bf16.msra.mxu0 %v2405
        %3271 = vmatprep.subr.bf16.mxu0 0
        %3272 = vmatpush1.bf16.msra.mxu0 %v2406
        %3273 = vmatprep.subr.bf16.mxu0 0
        %3274 = vmatpush1.bf16.msra.mxu0 %v2407
        %3275 = vmatprep.subr.bf16.mxu0 0
        %3276 = vmatpush1.bf16.msra.mxu0 %v2408
        %3277 = vmatprep.subr.bf16.mxu0 0
        %3278 = vmatpush1.bf16.msra.mxu0 %v2409
        %3279 = vmatprep.subr.bf16.mxu0 0
        %3280 = vmatpush1.bf16.msra.mxu0 %v2410
        %3281 = vmatprep.subr.bf16.mxu0 0
        %3282 = vmatpush1.bf16.msra.mxu0 %v2411
        %3283 = vmatprep.subr.bf16.mxu0 0
        %3284 = vmatpush1.bf16.msra.mxu0 %v2412
        %3285 = vmatprep.subr.bf16.mxu0 0
        %3286 = vmatpush1.bf16.msra.mxu0 %v2413
        %3287 = vmatprep.subr.bf16.mxu0 0
        %3288 = vmatpush1.bf16.msra.mxu0 %v2414
        %3289 = vmatprep.subr.bf16.mxu0 0
        %3290 = vmatpush1.bf16.msra.mxu0 %v2415
        %3291 = vmatprep.subr.bf16.mxu0 0
        %3292 = vmatpush1.bf16.msra.mxu0 %v2416
        %3293 = vmatprep.subr.bf16.mxu0 0
        %3294 = vmatpush1.bf16.msra.mxu0 %v2417
        %3295 = vmatprep.subr.bf16.mxu0 0
        %3296 = vmatpush1.bf16.msra.mxu0 %v2418
        %3297 = vmatprep.subr.bf16.mxu0 0
        %3298 = vmatpush1.bf16.msra.mxu0 %v2419
        %3299 = vmatprep.subr.bf16.mxu0 0
        %3300 = vmatpush1.bf16.msra.mxu0 %v2420
        %3301 = vmatprep.mubr.bf16.mxu0 %v474
        %3302 = vmatmul.mubr.bf16.gmra.mrb[0].mxu0 %v473
        %v3303 = vpop.f32.mrb[0].mxu0
        %v3304 = vadd.f32 %v3264, %v3303
        %v3305 = vpop.f32.mrb[0].mxu0
        %v3306 = vpop.f32.mrb[0].mxu0
        %v3307 = vpop.f32.mrb[0].mxu0
        %3308 = vdwg.mxu0
        %3309 = vmatprep.subr.bf16.mxu0 0
        %3310 = vmatpush1.bf16.msra.mxu0 %v2421
        %3311 = vmatprep.subr.bf16.mxu0 0
        %3312 = vmatpush1.bf16.msra.mxu0 %v2422
        %3313 = vmatprep.subr.bf16.mxu0 0
        %3314 = vmatpush1.bf16.msra.mxu0 %v2423
        %3315 = vmatprep.subr.bf16.mxu0 0
        %3316 = vmatpush1.bf16.msra.mxu0 %v2424
        %3317 = vmatprep.subr.bf16.mxu0 0
        %3318 = vmatpush1.bf16.msra.mxu0 %v2425
        %3319 = vmatprep.subr.bf16.mxu0 0
        %3320 = vmatpush1.bf16.msra.mxu0 %v2426
        %3321 = vmatprep.subr.bf16.mxu0 0
        %3322 = vmatpush1.bf16.msra.mxu0 %v2427
        %3323 = vmatprep.subr.bf16.mxu0 0
        %3324 = vmatpush1.bf16.msra.mxu0 %v2428
        %3325 = vmatprep.subr.bf16.mxu0 0
        %3326 = vmatpush1.bf16.msra.mxu0 %v2429
        %3327 = vmatprep.subr.bf16.mxu0 0
        %3328 = vmatpush1.bf16.msra.mxu0 %v2430
        %3329 = vmatprep.subr.bf16.mxu0 0
        %3330 = vmatpush1.bf16.msra.mxu0 %v2431
        %3331 = vmatprep.subr.bf16.mxu0 0
        %3332 = vmatpush1.bf16.msra.mxu0 %v2432
        %3333 = vmatprep.subr.bf16.mxu0 0
        %3334 = vmatpush1.bf16.msra.mxu0 %v2433
        %3335 = vmatprep.subr.bf16.mxu0 0
        %3336 = vmatpush1.bf16.msra.mxu0 %v2434
        %3337 = vmatprep.subr.bf16.mxu0 0
        %3338 = vmatpush1.bf16.msra.mxu0 %v2435
        %3339 = vmatprep.subr.bf16.mxu0 0
        %3340 = vmatpush1.bf16.msra.mxu0 %v2436
        %3341 = vmatprep.mubr.bf16.mxu0 %v476
        %3342 = vmatmul.mubr.bf16.gmra.mrb[0].mxu0 %v475
        %v3343 = vpop.f32.mrb[0].mxu0
        %v3344 = vadd.f32 %v3304, %v3343
        %v3345 = vpop.f32.mrb[0].mxu0
        %v3346 = vpop.f32.mrb[0].mxu0
        %v3347 = vpop.f32.mrb[0].mxu0
        %3348 = vdwg.mxu0
        %3349 = vmatprep.subr.bf16.mxu0 0
        %3350 = vmatpush1.bf16.msra.mxu0 %v2437
        %3351 = vmatprep.subr.bf16.mxu0 0
        %3352 = vmatpush1.bf16.msra.mxu0 %v2438
        %3353 = vmatprep.subr.bf16.mxu0 0
        %3354 = vmatpush1.bf16.msra.mxu0 %v2439
        %3355 = vmatprep.subr.bf16.mxu0 0
        %3356 = vmatpush1.bf16.msra.mxu0 %v2440
        %3357 = vmatprep.subr.bf16.mxu0 0
        %3358 = vmatpush1.bf16.msra.mxu0 %v2441
        %3359 = vmatprep.subr.bf16.mxu0 0
        %3360 = vmatpush1.bf16.msra.mxu0 %v2442
        %3361 = vmatprep.subr.bf16.mxu0 0
        %3362 = vmatpush1.bf16.msra.mxu0 %v2443
        %3363 = vmatprep.subr.bf16.mxu0 0
        %3364 = vmatpush1.bf16.msra.mxu0 %v2444
        %3365 = vmatprep.subr.bf16.mxu0 0
        %3366 = vmatpush1.bf16.msra.mxu0 %v2445
        %3367 = vmatprep.subr.bf16.mxu0 0
        %3368 = vmatpush1.bf16.msra.mxu0 %v2446
        %3369 = vmatprep.subr.bf16.mxu0 0
        %3370 = vmatpush1.bf16.msra.mxu0 %v2447
        %3371 = vmatprep.subr.bf16.mxu0 0
        %3372 = vmatpush1.bf16.msra.mxu0 %v2448
        %3373 = vmatprep.subr.bf16.mxu0 0
        %3374 = vmatpush1.bf16.msra.mxu0 %v2449
        %3375 = vmatprep.subr.bf16.mxu0 0
        %3376 = vmatpush1.bf16.msra.mxu0 %v2450
        %3377 = vmatprep.subr.bf16.mxu0 0
        %3378 = vmatpush1.bf16.msra.mxu0 %v2451
        %3379 = vmatprep.subr.bf16.mxu0 0
        %3380 = vmatpush1.bf16.msra.mxu0 %v2452
        %3381 = vmatprep.mubr.bf16.mxu0 %v478
        %3382 = vmatmul.mubr.bf16.gmra.mrb[0].mxu0 %v477
        %v3383 = vpop.f32.mrb[0].mxu0
        %v3384 = vadd.f32 %v3344, %v3383
        %v3385 = vpop.f32.mrb[0].mxu0
        %v3386 = vpop.f32.mrb[0].mxu0
        %v3387 = vpop.f32.mrb[0].mxu0
        %3388 = vdwg.mxu0
        %3389 = vmatprep.subr.bf16.mxu0 0
        %3390 = vmatpush1.bf16.msra.mxu0 %v2453
        %3391 = vmatprep.subr.bf16.mxu0 0
        %3392 = vmatpush1.bf16.msra.mxu0 %v2454
        %3393 = vmatprep.subr.bf16.mxu0 0
        %3394 = vmatpush1.bf16.msra.mxu0 %v2455
        %3395 = vmatprep.subr.bf16.mxu0 0
        %3396 = vmatpush1.bf16.msra.mxu0 %v2456
        %3397 = vmatprep.subr.bf16.mxu0 0
        %3398 = vmatpush1.bf16.msra.mxu0 %v2457
        %3399 = vmatprep.subr.bf16.mxu0 0
        %3400 = vmatpush1.bf16.msra.mxu0 %v2458
        %3401 = vmatprep.subr.bf16.mxu0 0
        %3402 = vmatpush1.bf16.msra.mxu0 %v2459
        %3403 = vmatprep.subr.bf16.mxu0 0
        %3404 = vmatpush1.bf16.msra.mxu0 %v2460
        %3405 = vmatprep.subr.bf16.mxu0 0
        %3406 = vmatpush1.bf16.msra.mxu0 %v2461
        %3407 = vmatprep.subr.bf16.mxu0 0
        %3408 = vmatpush1.bf16.msra.mxu0 %v2462
        %3409 = vmatprep.subr.bf16.mxu0 0
        %3410 = vmatpush1.bf16.msra.mxu0 %v2463
        %3411 = vmatprep.subr.bf16.mxu0 0
        %3412 = vmatpush1.bf16.msra.mxu0 %v2464
        %3413 = vmatprep.subr.bf16.mxu0 0
        %3414 = vmatpush1.bf16.msra.mxu0 %v2465
        %3415 = vmatprep.subr.bf16.mxu0 0
        %3416 = vmatpush1.bf16.msra.mxu0 %v2466
        %3417 = vmatprep.subr.bf16.mxu0 0
        %3418 = vmatpush1.bf16.msra.mxu0 %v2467
        %3419 = vmatprep.subr.bf16.mxu0 0
        %3420 = vmatpush1.bf16.msra.mxu0 %v2468
        %3421 = vmatprep.mubr.bf16.mxu0 %v480
        %3422 = vmatmul.mubr.bf16.gmra.mrb[0].mxu0 %v479
        %v3423 = vpop.f32.mrb[0].mxu0
        %v3424 = vadd.f32 %v3384, %v3423
        %v3425 = vpop.f32.mrb[0].mxu0
        %v3426 = vpop.f32.mrb[0].mxu0
        %v3427 = vpop.f32.mrb[0].mxu0
        %3428 = vdwg.mxu0
        %3429 = vmatprep.subr.bf16.mxu0 0
        %3430 = vmatpush1.bf16.msra.mxu0 %v2469
        %3431 = vmatprep.subr.bf16.mxu0 0
        %3432 = vmatpush1.bf16.msra.mxu0 %v2470
        %3433 = vmatprep.subr.bf16.mxu0 0
        %3434 = vmatpush1.bf16.msra.mxu0 %v2471
        %3435 = vmatprep.subr.bf16.mxu0 0
        %3436 = vmatpush1.bf16.msra.mxu0 %v2472
        %3437 = vmatprep.subr.bf16.mxu0 0
        %3438 = vmatpush1.bf16.msra.mxu0 %v2473
        %3439 = vmatprep.subr.bf16.mxu0 0
        %3440 = vmatpush1.bf16.msra.mxu0 %v2474
        %3441 = vmatprep.subr.bf16.mxu0 0
        %3442 = vmatpush1.bf16.msra.mxu0 %v2475
        %3443 = vmatprep.subr.bf16.mxu0 0
        %3444 = vmatpush1.bf16.msra.mxu0 %v2476
        %3445 = vmatprep.subr.bf16.mxu0 0
        %3446 = vmatpush1.bf16.msra.mxu0 %v2477
        %3447 = vmatprep.subr.bf16.mxu0 0
        %3448 = vmatpush1.bf16.msra.mxu0 %v2478
        %3449 = vmatprep.subr.bf16.mxu0 0
        %3450 = vmatpush1.bf16.msra.mxu0 %v2479
        %3451 = vmatprep.subr.bf16.mxu0 0
        %3452 = vmatpush1.bf16.msra.mxu0 %v2480
        %3453 = vmatprep.subr.bf16.mxu0 0
        %3454 = vmatpush1.bf16.msra.mxu0 %v2481
        %3455 = vmatprep.subr.bf16.mxu0 0
        %3456 = vmatpush1.bf16.msra.mxu0 %v2482
        %3457 = vmatprep.subr.bf16.mxu0 0
        %3458 = vmatpush1.bf16.msra.mxu0 %v2483
        %3459 = vmatprep.subr.bf16.mxu0 0
        %3460 = vmatpush1.bf16.msra.mxu0 %v2484
        %3461 = vmatprep.mubr.bf16.mxu0 %v482
        %3462 = vmatmul.mubr.bf16.gmra.mrb[0].mxu0 %v481
        %v3463 = vpop.f32.mrb[0].mxu0
        %v3464 = vadd.f32 %v3424, %v3463
        %v3465 = vpop.f32.mrb[0].mxu0
        %v3466 = vpop.f32.mrb[0].mxu0
        %v3467 = vpop.f32.mrb[0].mxu0
        %3468 = vdwg.mxu0
        %3469 = vmatprep.subr.bf16.mxu0 0
        %3470 = vmatpush1.bf16.msra.mxu0 %v2485
        %3471 = vmatprep.subr.bf16.mxu0 0
        %3472 = vmatpush1.bf16.msra.mxu0 %v2486
        %3473 = vmatprep.subr.bf16.mxu0 0
        %3474 = vmatpush1.bf16.msra.mxu0 %v2487
        %3475 = vmatprep.subr.bf16.mxu0 0
        %3476 = vmatpush1.bf16.msra.mxu0 %v2488
        %3477 = vmatprep.subr.bf16.mxu0 0
        %3478 = vmatpush1.bf16.msra.mxu0 %v2489
        %3479 = vmatprep.subr.bf16.mxu0 0
        %3480 = vmatpush1.bf16.msra.mxu0 %v2490
        %3481 = vmatprep.subr.bf16.mxu0 0
        %3482 = vmatpush1.bf16.msra.mxu0 %v2491
        %3483 = vmatprep.subr.bf16.mxu0 0
        %3484 = vmatpush1.bf16.msra.mxu0 %v2492
        %3485 = vmatprep.subr.bf16.mxu0 0
        %3486 = vmatpush1.bf16.msra.mxu0 %v2493
        %3487 = vmatprep.subr.bf16.mxu0 0
        %3488 = vmatpush1.bf16.msra.mxu0 %v2494
        %3489 = vmatprep.subr.bf16.mxu0 0
        %3490 = vmatpush1.bf16.msra.mxu0 %v2495
        %3491 = vmatprep.subr.bf16.mxu0 0
        %3492 = vmatpush1.bf16.msra.mxu0 %v2496
        %3493 = vmatprep.subr.bf16.mxu0 0
        %3494 = vmatpush1.bf16.msra.mxu0 %v2497
        %3495 = vmatprep.subr.bf16.mxu0 0
        %3496 = vmatpush1.bf16.msra.mxu0 %v2498
        %3497 = vmatprep.subr.bf16.mxu0 0
        %3498 = vmatpush1.bf16.msra.mxu0 %v2499
        %3499 = vmatprep.subr.bf16.mxu0 0
        %3500 = vmatpush1.bf16.msra.mxu0 %v2500
        %3501 = vmatprep.mubr.bf16.mxu0 %v484
        %3502 = vmatmul.mubr.bf16.gmra.mrb[0].mxu0 %v483
        %v3503 = vpop.f32.mrb[0].mxu0
        %v3504 = vadd.f32 %v3464, %v3503
        %v3505 = vpop.f32.mrb[0].mxu0
        %v3506 = vpop.f32.mrb[0].mxu0
        %v3507 = vpop.f32.mrb[0].mxu0
        %3508 = vdwg.mxu0
        %v3509 = vadd.f32 %v241, %v3504
        %3510 = vst [vmem:[#allocation2] sm:$0x3] %v3509
        %p3511 = scmp.eq.s32.totalorder %s17, 1
        // Predicated region
        $region45: #{net_forward.3} parent=39 // pred_check
          %p3512 = pneg %p3511
        $region46: #{net_forward.3} parent=39 // pred_check_branch
          %3514 = sbr.rel (%p3512) target = $region48
        $region47: #{net_forward.3} parent=39 // pred_region
          %v3515 = vld [vmem:[#allocation2] sm:$0x3]
          %v3516 = vld [vmem:[%s2] sm:$0x1]
          %v3518 = vlaneseq
          %v3519 = vshrl.u32 %v3518, 7
          %v3520 = vsub.s32 0, %v3519
          %v3521 = vrot.slane %v3516, %v3520
          %v3523 = vadd.f32 %v3515, %v3521
          %v3524 = vmax.f32 %v3523, 0.0
          %v3525 = vld [vmem:[%s3] sm:$0xff]
          %v3526 = vld [vmem:[%s3 + $0x8] sm:$0xff]
          %v3527 = vld [vmem:[%s3 + $0x10] sm:$0xff]
          %v3528 = vld [vmem:[%s3 + $0x18] sm:$0xff]
          %v3529 = vld [vmem:[%s3 + $0x20] sm:$0xff]
          %v3530 = vld [vmem:[%s3 + $0x28] sm:$0xff]
          %v3531 = vld [vmem:[%s3 + $0x30] sm:$0xff]
          %v3532 = vld [vmem:[%s3 + $0x38] sm:$0xff]
          %v3533 = vld [vmem:[%s3 + $0x40] sm:$0xff]
          %v3534 = vld [vmem:[%s3 + $0x48] sm:$0xff]
          %v3535 = vld [vmem:[%s3 + $0x50] sm:$0xff]
          %v3536 = vld [vmem:[%s3 + $0x58] sm:$0xff]
          %v3537 = vld [vmem:[%s3 + $0x60] sm:$0xff]
          %v3538 = vld [vmem:[%s3 + $0x68] sm:$0xff]
          %v3539 = vld [vmem:[%s3 + $0x70] sm:$0xff]
          %v3540 = vld [vmem:[%s3 + $0x78] sm:$0xff]
          %v3541 = vld [vmem:[%s4] sm:$0x1]
          %v3543 = vlaneseq
          %v3544 = vshrl.u32 %v3543, 7
          %v3545 = vsub.s32 0, %v3544
          %v3546 = vrot.slane %v3541, %v3545
          %3548 = vmatprep.subr.mxu0 0.0
          %3549 = vmatpush1.msra.mxu0 %v3525
          %3550 = vmatprep.subr.mxu0 0.0
          %3551 = vmatpush1.msra.mxu0 %v3526
          %3552 = vmatprep.subr.mxu0 0.0
          %3553 = vmatpush1.msra.mxu0 %v3527
          %3554 = vmatprep.subr.mxu0 0.0
          %3555 = vmatpush1.msra.mxu0 %v3528
          %3556 = vmatprep.subr.mxu0 0.0
          %3557 = vmatpush1.msra.mxu0 %v3529
          %3558 = vmatprep.subr.mxu0 0.0
          %3559 = vmatpush1.msra.mxu0 %v3530
          %3560 = vmatprep.subr.mxu0 0.0
          %3561 = vmatpush1.msra.mxu0 %v3531
          %3562 = vmatprep.subr.mxu0 0.0
          %3563 = vmatpush1.msra.mxu0 %v3532
          %3564 = vmatprep.subr.mxu0 0.0
          %3565 = vmatpush1.msra.mxu0 %v3533
          %3566 = vmatprep.subr.mxu0 0.0
          %3567 = vmatpush1.msra.mxu0 %v3534
          %3568 = vmatprep.subr.mxu0 0.0
          %3569 = vmatpush1.msra.mxu0 %v3535
          %3570 = vmatprep.subr.mxu0 0.0
          %3571 = vmatpush1.msra.mxu0 %v3536
          %3572 = vmatprep.subr.mxu0 0.0
          %3573 = vmatpush1.msra.mxu0 %v3537
          %3574 = vmatprep.subr.mxu0 0.0
          %3575 = vmatpush1.msra.mxu0 %v3538
          %3576 = vmatprep.subr.mxu0 0.0
          %3577 = vmatpush1.msra.mxu0 %v3539
          %3578 = vmatprep.subr.mxu0 0.0
          %3579 = vmatpush1.msra.mxu0 %v3540
          %3580 = vmatprep.subr.mxu0 0.0
          %3581 = vmatpush1.msra.mxu0 0.0
          %3582 = vmatprep.subr.mxu0 0.0
          %3583 = vmatpush1.msra.mxu0 0.0
          %3584 = vmatprep.subr.mxu0 0.0
          %3585 = vmatpush1.msra.mxu0 0.0
          %3586 = vmatprep.subr.mxu0 0.0
          %3587 = vmatpush1.msra.mxu0 0.0
          %3588 = vmatprep.subr.mxu0 0.0
          %3589 = vmatpush1.msra.mxu0 0.0
          %3590 = vmatprep.subr.mxu0 0.0
          %3591 = vmatpush1.msra.mxu0 0.0
          %3592 = vmatprep.subr.mxu0 0.0
          %3593 = vmatpush1.msra.mxu0 0.0
          %3594 = vmatprep.subr.mxu0 0.0
          %3595 = vmatpush1.msra.mxu0 0.0
          %3596 = vmatprep.subr.mxu0 0.0
          %3597 = vmatpush1.msra.mxu0 0.0
          %3598 = vmatprep.subr.mxu0 0.0
          %3599 = vmatpush1.msra.mxu0 0.0
          %3600 = vmatprep.subr.mxu0 0.0
          %3601 = vmatpush1.msra.mxu0 0.0
          %3602 = vmatprep.subr.mxu0 0.0
          %3603 = vmatpush1.msra.mxu0 0.0
          %3604 = vmatprep.subr.mxu0 0.0
          %3605 = vmatpush1.msra.mxu0 0.0
          %3606 = vmatprep.subr.mxu0 0.0
          %3607 = vmatpush1.msra.mxu0 0.0
          %3608 = vmatprep.subr.mxu0 0.0
          %3609 = vmatpush1.msra.mxu0 0.0
          %3610 = vmatprep.subr.mxu0 0.0
          %3611 = vmatpush1.msra.mxu0 0.0
          %3612 = vmatprep.mubr.f32.mxu0 0.0
          %3613 = vmatmul.mubr.f32.gmra.mrb[0].mxu0 %v3524
          %v3614 = vpop.f32.mrb[0].mxu0
          %v3615 = vadd.f32 %v3546, %v3614
          %v3616 = vpop.f32.mrb[0].mxu0
          %3617 = vdwg.mxu0
          %vm3618 = vcmask 74752
          %v3619 = vsel %vm3618, %v3615, -inf
          %3620 = vmax.xlane.f32.xlu0 %v3619
          %v3621 = vpop.xlane.xlu0 %3620
          %v3622 = vsub.f32 %v3615, %v3621
          %v3623 = vmul.f32 %v3622, 1.442695
          %v3624 = vpow.pop %v3623
          %v3625 = vsel %vm3618, %v3624, 0.0
          %3626 = vadd.xlane.f32.xlu0 %v3625
          %v3627 = vpop.xlane.xlu0 %3626
          %v3628 = vlog2.pop %v3627
          %v3629 = vmul.f32 %v3628, 0.6931472
          %v3630 = vsub.f32 %v3622, %v3629
          %3631 = vst.msk [vmem:[#allocation3] sm:$0x3] %vm3618, %v3630
        $region48: #{net_forward.3} parent=39 // pred_fallthru
          _
        // Predicated region
        $region49: #{net_forward.3} parent=39 // pred_check
          %p3632 = pneg %p145
        $region50: #{net_forward.3} parent=39 // pred_check_branch
          %3634 = sbr.rel (%p3632) target = $region52
        $region51: #{net_forward.3} parent=39 // pred_region
          %s3636 = ssub.s32 32, 32
          %3637 = vsyncadd [#allocation4], %s3636
          %s3639 = sshll.u32 [#allocation3], 4
          %s3640 = int_to_ptr.vmem [resolvable:$true] %s3639
          %3642 = dma.vmem_to_hbm [thread:$0]  %s3640, 32, %s5, [#allocation4]
        $region52: #{net_forward.3} parent=39 // pred_fallthru
          _
        // Predicated region
        $region53: #{net_forward.3} parent=39 // pred_check
          %p3643 = pneg %p145
        $region54: #{net_forward.3} parent=39 // pred_check_branch
          %3645 = sbr.rel (%p3643) target = $region56
        $region55: #{net_forward.3} parent=39 // pred_region
          %3646 = dma.done [#allocation4], 32
        $region56: #{net_forward.3} parent=39 // pred_fallthru
          _
      $region40: #{net_forward.3} parent=5 // pred_fallthru
        _
      %p3647 = scmp.le.s32.totalorder 2, %s12
      // Predicated region
      $region57: #{net_forward.3} parent=5 // pred_check
        %p3648 = pneg %p3647
      $region58: #{net_forward.3} parent=5 // pred_check_branch
        %3650 = sbr.rel (%p3648) target = $region60
      $region59: #{net_forward.3} parent=5 // pred_region
        %s3651 = ssub.s32 %s12, 2
      $region60: #{net_forward.3} parent=5 // pred_fallthru
        _
    $region6: #{net_forward.3} parent=1 // loop_footer
      %s16 = sadd.s32 1, %s12
    $region7: #{net_forward.3} parent=1 // loop_footer_branch
      %11 = sbr.rel target = $region3
    $region8: #{net_forward.3} parent=1 // loop_exit
      _
    %3652 = vsyncpa [#allocation4], 1
    %s3653 = scalar_lea.sflag [#allocation4], 1
    %3654 = vsyncpa %s3653, 1

</llo_original>
